<compile_context>
chip_gen: v7x
topology: tpu7x:2x2x1
jax: 0.10.0
libtpu: 0.0.40
codegen_flags: <defaults>
</compile_context>

<pallas_src>
import numpy as np
import jax
import jax.numpy as jnp
from jax import lax
from jax.experimental import pallas as pl
from jax.experimental.pallas import tpu as pltpu

# ----------------------------- configuration -----------------------------
B = 2                 # batch
C1 = 64               # input channels
C2 = 64               # output channels
HEIGHT = WIDTH = 16   # spatial size
K = 5                 # max-pool kernel (stride 1, padding K//2)
PAD = K // 2
C_ = C1 // 2          # hidden channels (c1 // 2)
HW = HEIGHT * WIDTH
BN_EPS = 1e-5         # PyTorch BatchNorm2d default


# ------------------------- in-kernel pooling helpers -----------------------
def _shifted(a, s, axis):
    """out[..., i, ...] = a[..., i+s, ...]; out-of-range positions are -inf."""
    if s == 0:
        return a
    pad_shape = list(a.shape)
    pad_shape[axis] = abs(s)
    pad = jnp.full(pad_shape, -jnp.inf, a.dtype)
    idx = [slice(None)] * a.ndim
    if s > 0:
        idx[axis] = slice(s, None)
        return jnp.concatenate([a[tuple(idx)], pad], axis=axis)
    idx[axis] = slice(0, a.shape[axis] + s)
    return jnp.concatenate([pad, a[tuple(idx)]], axis=axis)


def _maxpool5(a):
    """5x5 max pool, stride 1, pad 2 (-inf padding), over axes (0, 1) of (H, W, C).

    Separable: 5-tap max along H, then 5-tap max along W.
    """
    for axis in (0, 1):
        m = a
        for s in (-PAD, -1, 1, PAD):
            m = jnp.maximum(m, _shifted(a, s, axis))
        a = m
    return a


def _silu(x):
    return x * (1.0 / (1.0 + jnp.exp(-x)))


# ------------------------------- the kernel --------------------------------
def _sppf_kernel(x_ref, w1_ref, b1_ref, w2_ref, b2_ref, o_ref):
    """One batch image per grid step: cv1 -> 3x maxpool -> cv2 (BN folded)."""
    x = x_ref[0].reshape(HW, C1)                                  # (H*W, C1)

    # --- cv1: folded 1x1 conv + BN, then SiLU --------------------------------
    h = jnp.dot(x, w1_ref[...], preferred_element_type=jnp.float32) + b1_ref[0]
    h = _silu(h)
    y0 = h.reshape(HEIGHT, WIDTH, C_)

    # --- three cascaded 5x5 / stride-1 / pad-2 max pools ---------------------
    y1 = _maxpool5(y0)
    y2 = _maxpool5(y1)
    y3 = _maxpool5(y2)

    # --- cv2 on cat([y0,y1,y2,y3], channel): per-branch accumulation ---------
    z = jnp.dot(y0.reshape(HW, C_), w2_ref[0], preferred_element_type=jnp.float32)
    z = z + jnp.dot(y1.reshape(HW, C_), w2_ref[1], preferred_element_type=jnp.float32)
    z = z + jnp.dot(y2.reshape(HW, C_), w2_ref[2], preferred_element_type=jnp.float32)
    z = z + jnp.dot(y3.reshape(HW, C_), w2_ref[3], preferred_element_type=jnp.float32)
    z = _silu(z + b2_ref[0])

    o_ref[0] = z.reshape(HEIGHT, WIDTH, C2).astype(o_ref.dtype)


# ------------------------------- wrapper ------------------------------------
def sppf_forward(x_nchw, params):
    """x_nchw: (B, C1, H, W) float32 -> (B, C2, H, W)."""
    x = jnp.transpose(x_nchw, (0, 2, 3, 1))                       # NHWC

    out = pl.pallas_call(
        _sppf_kernel,
        out_shape=jax.ShapeDtypeStruct((B, HEIGHT, WIDTH, C2), x.dtype),
        grid=(B,),
        in_specs=[
            pl.BlockSpec((1, HEIGHT, WIDTH, C1), lambda b: (b, 0, 0, 0)),  # x image
            pl.BlockSpec((C1, C_), lambda b: (0, 0)),                      # cv1 W^T (BN folded)
            pl.BlockSpec((1, C_), lambda b: (0, 0)),                       # cv1 bias (BN folded)
            pl.BlockSpec((4, C_, C2), lambda b: (0, 0, 0)),                # cv2 W^T split per branch
            pl.BlockSpec((1, C2), lambda b: (0, 0)),                       # cv2 bias (BN folded)
        ],
        out_specs=pl.BlockSpec((1, HEIGHT, WIDTH, C2), lambda b: (b, 0, 0, 0)),
        compiler_params=pltpu.CompilerParams(
            dimension_semantics=("parallel",)),                   # v7x: 2 TCs split the batch
    )(x, params["w1_eff"], params["b1_eff"], params["w2_eff_split"],
      params["b2_eff"])

    return jnp.transpose(out, (0, 3, 1, 2))                       # back to NCHW


# -------------------------- pure-JAX reference -------------------------------
def reference_forward(x_nchw, p):
    """Unfused reference: 1x1 conv + BatchNorm(eval) + SiLU, explicit maxpools."""
    x = jnp.transpose(x_nchw, (0, 2, 3, 1))                       # NHWC

    def conv_bn_silu(t, w, g, bta, mean, var):
        y = jnp.einsum("bhwc,oc->bhwo", t, w)
        y = (y - mean) / jnp.sqrt(var + BN_EPS) * g + bta
        return y * (1.0 / (1.0 + jnp.exp(-y)))

    y0 = conv_bn_silu(x, p["conv1_w"], p["bn1_g"], p["bn1_b"], p["bn1_m"], p["bn1_v"])

    def pool(t):
        return lax.reduce_window(t, -jnp.inf, lax.max,
                                 (1, K, K, 1), (1, 1, 1, 1), "SAME")

    y1 = pool(y0)
    y2 = pool(y1)
    y3 = pool(y2)
    cat = jnp.concatenate([y0, y1, y2, y3], axis=-1)
    z = conv_bn_silu(cat, p["conv2_w"], p["bn2_g"], p["bn2_b"], p["bn2_m"], p["bn2_v"])
    return jnp.transpose(z, (0, 3, 1, 2))


# ------------------------------ parameters -----------------------------------
def make_params(key):
    ks = jax.random.split(key, 12)
    f32 = jnp.float32

    conv1_w = jax.random.normal(ks[0], (C_, C1), f32) * 0.05      # 1x1 conv, no bias
    bn1_g = 1.0 + 0.1 * jax.random.normal(ks[1], (C_,), f32)
    bn1_b = 0.1 * jax.random.normal(ks[2], (C_,), f32)
    bn1_m = 0.1 * jax.random.normal(ks[3], (C_,), f32)
    bn1_v = 0.5 + jax.random.uniform(ks[4], (C_,), dtype=f32)

    conv2_w = jax.random.normal(ks[5], (C2, 4 * C_), f32) * 0.05
    bn2_g = 1.0 + 0.1 * jax.random.normal(ks[6], (C2,), f32)
    bn2_b = 0.1 * jax.random.normal(ks[7], (C2,), f32)
    bn2_m = 0.1 * jax.random.normal(ks[8], (C2,), f32)
    bn2_v = 0.5 + jax.random.uniform(ks[9], (C2,), dtype=f32)

    # Fold eval-mode BatchNorm into the 1x1 convs (scale + bias).
    s1 = bn1_g / jnp.sqrt(bn1_v + BN_EPS)
    w1_eff = (conv1_w * s1[:, None]).T                            # (C1, C_)
    b1_eff = (bn1_b - bn1_m * s1).reshape(1, C_)

    s2 = bn2_g / jnp.sqrt(bn2_v + BN_EPS)
    w2_eff = (conv2_w * s2[:, None]).T                            # (4*C_, C2)
    w2_eff_split = w2_eff.reshape(4, C_, C2)                      # per concat branch
    b2_eff = (bn2_b - bn2_m * s2).reshape(1, C2)

    return dict(
        conv1_w=conv1_w, bn1_g=bn1_g, bn1_b=bn1_b, bn1_m=bn1_m, bn1_v=bn1_v,
        conv2_w=conv2_w, bn2_g=bn2_g, bn2_b=bn2_b, bn2_m=bn2_m, bn2_v=bn2_v,
        w1_eff=w1_eff, b1_eff=b1_eff, w2_eff_split=w2_eff_split, b2_eff=b2_eff,
    )


# --------------------------------- main ---------------------------------------
if __name__ == "__main__":
    key = jax.random.PRNGKey(0)
    kx, kp = jax.random.split(key)
    x = jax.random.normal(kx, (B, C1, HEIGHT, WIDTH), jnp.float32)
    params = make_params(kp)

    out = jax.block_until_ready(sppf_forward(x, params))
    ref = jax.block_until_ready(reference_forward(x, params))

    np.testing.assert_allclose(np.asarray(out), np.asarray(ref),
                               rtol=1e-3, atol=1e-3)
    print("KERNEL_OK")
</pallas_src>

<mosaic_0001>
module attributes {stable_mosaic.version = 11 : i64} {
  func.func @_sppf_kernel(%arg0: i32, %arg1: memref<1x16x16x64xf32, #tpu.memory_space<vmem>>, %arg2: memref<64x32xf32, #tpu.memory_space<vmem>>, %arg3: memref<1x32xf32, #tpu.memory_space<vmem>>, %arg4: memref<4x32x64xf32, #tpu.memory_space<vmem>>, %arg5: memref<1x64xf32, #tpu.memory_space<vmem>>, %arg6: memref<1x16x16x64xf32, #tpu.memory_space<vmem>>) attributes {dimension_semantics = [#tpu.dimension_semantics<parallel>], iteration_bounds = array<i64: 2>, scalar_prefetch = 0 : i64, scratch_operands = 0 : i64, tpu.core_type = #tpu.core_type<tc>, window_params = [{transform_indices = @transform_0, window_bounds = array<i64: 1, 16, 16, 64>}, {pipeline_mode = #tpu.pipeline_mode<synchronous>, transform_indices = @transform_1, window_bounds = array<i64: 64, 32>}, {pipeline_mode = #tpu.pipeline_mode<synchronous>, transform_indices = @transform_2, window_bounds = array<i64: 1, 32>}, {pipeline_mode = #tpu.pipeline_mode<synchronous>, transform_indices = @transform_3, window_bounds = array<i64: 4, 32, 64>}, {pipeline_mode = #tpu.pipeline_mode<synchronous>, transform_indices = @transform_4, window_bounds = array<i64: 1, 64>}, {transform_indices = @transform_5, window_bounds = array<i64: 1, 16, 16, 64>}]} {
    %c0 = arith.constant 0 : index
    %c0_0 = arith.constant 0 : index
    %c0_1 = arith.constant 0 : index
    %c0_2 = arith.constant 0 : index
    %0 = vector.load %arg1[%c0, %c0_0, %c0_1, %c0_2] : memref<1x16x16x64xf32, #tpu.memory_space<vmem>>, vector<1x16x16x64xf32>
    %1 = vector.shape_cast %0 : vector<1x16x16x64xf32> to vector<16x16x64xf32>
    %2 = vector.shape_cast %1 : vector<16x16x64xf32> to vector<256x64xf32>
    %c0_3 = arith.constant 0 : index
    %c0_4 = arith.constant 0 : index
    %3 = vector.load %arg2[%c0_3, %c0_4] : memref<64x32xf32, #tpu.memory_space<vmem>>, vector<64x32xf32>
    %cst = arith.constant dense<0.000000e+00> : vector<256x32xf32>
    %4 = tpu.matmul %2, %3, %cst {dimension_numbers = #tpu.dot_dimension_numbers<[1], [0], [0], [1], [0, 0, 1, 1], [], []>} : vector<256x64xf32>, vector<64x32xf32>, vector<256x32xf32> -> vector<256x32xf32>
    %c0_5 = arith.constant 0 : index
    %c0_6 = arith.constant 0 : index
    %5 = vector.load %arg3[%c0_5, %c0_6] : memref<1x32xf32, #tpu.memory_space<vmem>>, vector<1x32xf32>
    %6 = vector.shape_cast %5 : vector<1x32xf32> to vector<32xf32>
    %7 = vector.shape_cast %6 : vector<32xf32> to vector<1x32xf32>
    %8 = vector.broadcast %7 : vector<1x32xf32> to vector<256x32xf32>
    %9 = arith.addf %4, %8 : vector<256x32xf32>
    %cst_7 = arith.constant 0.000000e+00 : f32
    %10 = vector.broadcast %cst_7 : f32 to vector<256x32xf32>
    %11 = arith.subf %10, %9 : vector<256x32xf32>
    %12 = math.exp %11 : vector<256x32xf32>
    %cst_8 = arith.constant 1.000000e+00 : f32
    %13 = vector.broadcast %cst_8 : f32 to vector<256x32xf32>
    %14 = arith.addf %13, %12 : vector<256x32xf32>
    %cst_9 = arith.constant 1.000000e+00 : f32
    %15 = vector.broadcast %cst_9 : f32 to vector<256x32xf32>
    %16 = arith.divf %15, %14 : vector<256x32xf32>
    %17 = arith.mulf %9, %16 : vector<256x32xf32>
    %18 = vector.shape_cast %17 : vector<256x32xf32> to vector<16x16x32xf32>
    %cst_10 = arith.constant 0xFF800000 : f32
    %19 = vector.broadcast %cst_10 : f32 to vector<2x16x32xf32>
    %20 = vector.extract_strided_slice %18 {offsets = [0, 0, 0], sizes = [14, 16, 32], strides = [1, 1, 1]} : vector<16x16x32xf32> to vector<14x16x32xf32>
    %21 = tpu.concatenate %19, %20 in 0 : vector<2x16x32xf32>, vector<14x16x32xf32> -> vector<16x16x32xf32>
    %22 = arith.maximumf %18, %21 : vector<16x16x32xf32>
    %cst_11 = arith.constant 0xFF800000 : f32
    %23 = vector.broadcast %cst_11 : f32 to vector<1x16x32xf32>
    %24 = vector.extract_strided_slice %18 {offsets = [0, 0, 0], sizes = [15, 16, 32], strides = [1, 1, 1]} : vector<16x16x32xf32> to vector<15x16x32xf32>
    %25 = tpu.concatenate %23, %24 in 0 : vector<1x16x32xf32>, vector<15x16x32xf32> -> vector<16x16x32xf32>
    %26 = arith.maximumf %22, %25 : vector<16x16x32xf32>
    %cst_12 = arith.constant 0xFF800000 : f32
    %27 = vector.broadcast %cst_12 : f32 to vector<1x16x32xf32>
    %28 = vector.extract_strided_slice %18 {offsets = [1, 0, 0], sizes = [15, 16, 32], strides = [1, 1, 1]} : vector<16x16x32xf32> to vector<15x16x32xf32>
    %29 = tpu.concatenate %28, %27 in 0 : vector<15x16x32xf32>, vector<1x16x32xf32> -> vector<16x16x32xf32>
    %30 = arith.maximumf %26, %29 : vector<16x16x32xf32>
    %cst_13 = arith.constant 0xFF800000 : f32
    %31 = vector.broadcast %cst_13 : f32 to vector<2x16x32xf32>
    %32 = vector.extract_strided_slice %18 {offsets = [2, 0, 0], sizes = [14, 16, 32], strides = [1, 1, 1]} : vector<16x16x32xf32> to vector<14x16x32xf32>
    %33 = tpu.concatenate %32, %31 in 0 : vector<14x16x32xf32>, vector<2x16x32xf32> -> vector<16x16x32xf32>
    %34 = arith.maximumf %30, %33 : vector<16x16x32xf32>
    %cst_14 = arith.constant 0xFF800000 : f32
    %35 = vector.broadcast %cst_14 : f32 to vector<16x2x32xf32>
    %36 = vector.extract_strided_slice %34 {offsets = [0, 0, 0], sizes = [16, 14, 32], strides = [1, 1, 1]} : vector<16x16x32xf32> to vector<16x14x32xf32>
    %37 = tpu.concatenate %35, %36 in 1 : vector<16x2x32xf32>, vector<16x14x32xf32> -> vector<16x16x32xf32>
    %38 = arith.maximumf %34, %37 : vector<16x16x32xf32>
    %cst_15 = arith.constant 0xFF800000 : f32
    %39 = vector.broadcast %cst_15 : f32 to vector<16x1x32xf32>
    %40 = vector.extract_strided_slice %34 {offsets = [0, 0, 0], sizes = [16, 15, 32], strides = [1, 1, 1]} : vector<16x16x32xf32> to vector<16x15x32xf32>
    %41 = tpu.concatenate %39, %40 in 1 : vector<16x1x32xf32>, vector<16x15x32xf32> -> vector<16x16x32xf32>
    %42 = arith.maximumf %38, %41 : vector<16x16x32xf32>
    %cst_16 = arith.constant 0xFF800000 : f32
    %43 = vector.broadcast %cst_16 : f32 to vector<16x1x32xf32>
    %44 = vector.extract_strided_slice %34 {offsets = [0, 1, 0], sizes = [16, 15, 32], strides = [1, 1, 1]} : vector<16x16x32xf32> to vector<16x15x32xf32>
    %45 = tpu.concatenate %44, %43 in 1 : vector<16x15x32xf32>, vector<16x1x32xf32> -> vector<16x16x32xf32>
    %46 = arith.maximumf %42, %45 : vector<16x16x32xf32>
    %cst_17 = arith.constant 0xFF800000 : f32
    %47 = vector.broadcast %cst_17 : f32 to vector<16x2x32xf32>
    %48 = vector.extract_strided_slice %34 {offsets = [0, 2, 0], sizes = [16, 14, 32], strides = [1, 1, 1]} : vector<16x16x32xf32> to vector<16x14x32xf32>
    %49 = tpu.concatenate %48, %47 in 1 : vector<16x14x32xf32>, vector<16x2x32xf32> -> vector<16x16x32xf32>
    %50 = arith.maximumf %46, %49 : vector<16x16x32xf32>
    %cst_18 = arith.constant 0xFF800000 : f32
    %51 = vector.broadcast %cst_18 : f32 to vector<2x16x32xf32>
    %52 = vector.extract_strided_slice %50 {offsets = [0, 0, 0], sizes = [14, 16, 32], strides = [1, 1, 1]} : vector<16x16x32xf32> to vector<14x16x32xf32>
    %53 = tpu.concatenate %51, %52 in 0 : vector<2x16x32xf32>, vector<14x16x32xf32> -> vector<16x16x32xf32>
    %54 = arith.maximumf %50, %53 : vector<16x16x32xf32>
    %cst_19 = arith.constant 0xFF800000 : f32
    %55 = vector.broadcast %cst_19 : f32 to vector<1x16x32xf32>
    %56 = vector.extract_strided_slice %50 {offsets = [0, 0, 0], sizes = [15, 16, 32], strides = [1, 1, 1]} : vector<16x16x32xf32> to vector<15x16x32xf32>
    %57 = tpu.concatenate %55, %56 in 0 : vector<1x16x32xf32>, vector<15x16x32xf32> -> vector<16x16x32xf32>
    %58 = arith.maximumf %54, %57 : vector<16x16x32xf32>
    %cst_20 = arith.constant 0xFF800000 : f32
    %59 = vector.broadcast %cst_20 : f32 to vector<1x16x32xf32>
    %60 = vector.extract_strided_slice %50 {offsets = [1, 0, 0], sizes = [15, 16, 32], strides = [1, 1, 1]} : vector<16x16x32xf32> to vector<15x16x32xf32>
    %61 = tpu.concatenate %60, %59 in 0 : vector<15x16x32xf32>, vector<1x16x32xf32> -> vector<16x16x32xf32>
    %62 = arith.maximumf %58, %61 : vector<16x16x32xf32>
    %cst_21 = arith.constant 0xFF800000 : f32
    %63 = vector.broadcast %cst_21 : f32 to vector<2x16x32xf32>
    %64 = vector.extract_strided_slice %50 {offsets = [2, 0, 0], sizes = [14, 16, 32], strides = [1, 1, 1]} : vector<16x16x32xf32> to vector<14x16x32xf32>
    %65 = tpu.concatenate %64, %63 in 0 : vector<14x16x32xf32>, vector<2x16x32xf32> -> vector<16x16x32xf32>
    %66 = arith.maximumf %62, %65 : vector<16x16x32xf32>
    %cst_22 = arith.constant 0xFF800000 : f32
    %67 = vector.broadcast %cst_22 : f32 to vector<16x2x32xf32>
    %68 = vector.extract_strided_slice %66 {offsets = [0, 0, 0], sizes = [16, 14, 32], strides = [1, 1, 1]} : vector<16x16x32xf32> to vector<16x14x32xf32>
    %69 = tpu.concatenate %67, %68 in 1 : vector<16x2x32xf32>, vector<16x14x32xf32> -> vector<16x16x32xf32>
    %70 = arith.maximumf %66, %69 : vector<16x16x32xf32>
    %cst_23 = arith.constant 0xFF800000 : f32
    %71 = vector.broadcast %cst_23 : f32 to vector<16x1x32xf32>
    %72 = vector.extract_strided_slice %66 {offsets = [0, 0, 0], sizes = [16, 15, 32], strides = [1, 1, 1]} : vector<16x16x32xf32> to vector<16x15x32xf32>
    %73 = tpu.concatenate %71, %72 in 1 : vector<16x1x32xf32>, vector<16x15x32xf32> -> vector<16x16x32xf32>
    %74 = arith.maximumf %70, %73 : vector<16x16x32xf32>
    %cst_24 = arith.constant 0xFF800000 : f32
    %75 = vector.broadcast %cst_24 : f32 to vector<16x1x32xf32>
    %76 = vector.extract_strided_slice %66 {offsets = [0, 1, 0], sizes = [16, 15, 32], strides = [1, 1, 1]} : vector<16x16x32xf32> to vector<16x15x32xf32>
    %77 = tpu.concatenate %76, %75 in 1 : vector<16x15x32xf32>, vector<16x1x32xf32> -> vector<16x16x32xf32>
    %78 = arith.maximumf %74, %77 : vector<16x16x32xf32>
    %cst_25 = arith.constant 0xFF800000 : f32
    %79 = vector.broadcast %cst_25 : f32 to vector<16x2x32xf32>
    %80 = vector.extract_strided_slice %66 {offsets = [0, 2, 0], sizes = [16, 14, 32], strides = [1, 1, 1]} : vector<16x16x32xf32> to vector<16x14x32xf32>
    %81 = tpu.concatenate %80, %79 in 1 : vector<16x14x32xf32>, vector<16x2x32xf32> -> vector<16x16x32xf32>
    %82 = arith.maximumf %78, %81 : vector<16x16x32xf32>
    %cst_26 = arith.constant 0xFF800000 : f32
    %83 = vector.broadcast %cst_26 : f32 to vector<2x16x32xf32>
    %84 = vector.extract_strided_slice %82 {offsets = [0, 0, 0], sizes = [14, 16, 32], strides = [1, 1, 1]} : vector<16x16x32xf32> to vector<14x16x32xf32>
    %85 = tpu.concatenate %83, %84 in 0 : vector<2x16x32xf32>, vector<14x16x32xf32> -> vector<16x16x32xf32>
    %86 = arith.maximumf %82, %85 : vector<16x16x32xf32>
    %cst_27 = arith.constant 0xFF800000 : f32
    %87 = vector.broadcast %cst_27 : f32 to vector<1x16x32xf32>
    %88 = vector.extract_strided_slice %82 {offsets = [0, 0, 0], sizes = [15, 16, 32], strides = [1, 1, 1]} : vector<16x16x32xf32> to vector<15x16x32xf32>
    %89 = tpu.concatenate %87, %88 in 0 : vector<1x16x32xf32>, vector<15x16x32xf32> -> vector<16x16x32xf32>
    %90 = arith.maximumf %86, %89 : vector<16x16x32xf32>
    %cst_28 = arith.constant 0xFF800000 : f32
    %91 = vector.broadcast %cst_28 : f32 to vector<1x16x32xf32>
    %92 = vector.extract_strided_slice %82 {offsets = [1, 0, 0], sizes = [15, 16, 32], strides = [1, 1, 1]} : vector<16x16x32xf32> to vector<15x16x32xf32>
    %93 = tpu.concatenate %92, %91 in 0 : vector<15x16x32xf32>, vector<1x16x32xf32> -> vector<16x16x32xf32>
    %94 = arith.maximumf %90, %93 : vector<16x16x32xf32>
    %cst_29 = arith.constant 0xFF800000 : f32
    %95 = vector.broadcast %cst_29 : f32 to vector<2x16x32xf32>
    %96 = vector.extract_strided_slice %82 {offsets = [2, 0, 0], sizes = [14, 16, 32], strides = [1, 1, 1]} : vector<16x16x32xf32> to vector<14x16x32xf32>
    %97 = tpu.concatenate %96, %95 in 0 : vector<14x16x32xf32>, vector<2x16x32xf32> -> vector<16x16x32xf32>
    %98 = arith.maximumf %94, %97 : vector<16x16x32xf32>
    %cst_30 = arith.constant 0xFF800000 : f32
    %99 = vector.broadcast %cst_30 : f32 to vector<16x2x32xf32>
    %100 = vector.extract_strided_slice %98 {offsets = [0, 0, 0], sizes = [16, 14, 32], strides = [1, 1, 1]} : vector<16x16x32xf32> to vector<16x14x32xf32>
    %101 = tpu.concatenate %99, %100 in 1 : vector<16x2x32xf32>, vector<16x14x32xf32> -> vector<16x16x32xf32>
    %102 = arith.maximumf %98, %101 : vector<16x16x32xf32>
    %cst_31 = arith.constant 0xFF800000 : f32
    %103 = vector.broadcast %cst_31 : f32 to vector<16x1x32xf32>
    %104 = vector.extract_strided_slice %98 {offsets = [0, 0, 0], sizes = [16, 15, 32], strides = [1, 1, 1]} : vector<16x16x32xf32> to vector<16x15x32xf32>
    %105 = tpu.concatenate %103, %104 in 1 : vector<16x1x32xf32>, vector<16x15x32xf32> -> vector<16x16x32xf32>
    %106 = arith.maximumf %102, %105 : vector<16x16x32xf32>
    %cst_32 = arith.constant 0xFF800000 : f32
    %107 = vector.broadcast %cst_32 : f32 to vector<16x1x32xf32>
    %108 = vector.extract_strided_slice %98 {offsets = [0, 1, 0], sizes = [16, 15, 32], strides = [1, 1, 1]} : vector<16x16x32xf32> to vector<16x15x32xf32>
    %109 = tpu.concatenate %108, %107 in 1 : vector<16x15x32xf32>, vector<16x1x32xf32> -> vector<16x16x32xf32>
    %110 = arith.maximumf %106, %109 : vector<16x16x32xf32>
    %cst_33 = arith.constant 0xFF800000 : f32
    %111 = vector.broadcast %cst_33 : f32 to vector<16x2x32xf32>
    %112 = vector.extract_strided_slice %98 {offsets = [0, 2, 0], sizes = [16, 14, 32], strides = [1, 1, 1]} : vector<16x16x32xf32> to vector<16x14x32xf32>
    %113 = tpu.concatenate %112, %111 in 1 : vector<16x14x32xf32>, vector<16x2x32xf32> -> vector<16x16x32xf32>
    %114 = arith.maximumf %110, %113 : vector<16x16x32xf32>
    %115 = vector.shape_cast %18 : vector<16x16x32xf32> to vector<256x32xf32>
    %c0_34 = arith.constant 0 : index
    %c0_35 = arith.constant 0 : index
    %c0_36 = arith.constant 0 : index
    %116 = vector.load %arg4[%c0_34, %c0_35, %c0_36] : memref<4x32x64xf32, #tpu.memory_space<vmem>>, vector<1x32x64xf32>
    %117 = vector.shape_cast %116 : vector<1x32x64xf32> to vector<32x64xf32>
    %cst_37 = arith.constant dense<0.000000e+00> : vector<256x64xf32>
    %118 = tpu.matmul %115, %117, %cst_37 {dimension_numbers = #tpu.dot_dimension_numbers<[1], [0], [0], [1], [0, 0, 1, 1], [], []>} : vector<256x32xf32>, vector<32x64xf32>, vector<256x64xf32> -> vector<256x64xf32>
    %119 = vector.shape_cast %50 : vector<16x16x32xf32> to vector<256x32xf32>
    %c1 = arith.constant 1 : index
    %c0_38 = arith.constant 0 : index
    %c0_39 = arith.constant 0 : index
    %120 = vector.load %arg4[%c1, %c0_38, %c0_39] : memref<4x32x64xf32, #tpu.memory_space<vmem>>, vector<1x32x64xf32>
    %121 = vector.shape_cast %120 : vector<1x32x64xf32> to vector<32x64xf32>
    %cst_40 = arith.constant dense<0.000000e+00> : vector<256x64xf32>
    %122 = tpu.matmul %119, %121, %cst_40 {dimension_numbers = #tpu.dot_dimension_numbers<[1], [0], [0], [1], [0, 0, 1, 1], [], []>} : vector<256x32xf32>, vector<32x64xf32>, vector<256x64xf32> -> vector<256x64xf32>
    %123 = arith.addf %118, %122 : vector<256x64xf32>
    %124 = vector.shape_cast %82 : vector<16x16x32xf32> to vector<256x32xf32>
    %c2 = arith.constant 2 : index
    %c0_41 = arith.constant 0 : index
    %c0_42 = arith.constant 0 : index
    %125 = vector.load %arg4[%c2, %c0_41, %c0_42] : memref<4x32x64xf32, #tpu.memory_space<vmem>>, vector<1x32x64xf32>
    %126 = vector.shape_cast %125 : vector<1x32x64xf32> to vector<32x64xf32>
    %cst_43 = arith.constant dense<0.000000e+00> : vector<256x64xf32>
    %127 = tpu.matmul %124, %126, %cst_43 {dimension_numbers = #tpu.dot_dimension_numbers<[1], [0], [0], [1], [0, 0, 1, 1], [], []>} : vector<256x32xf32>, vector<32x64xf32>, vector<256x64xf32> -> vector<256x64xf32>
    %128 = arith.addf %123, %127 : vector<256x64xf32>
    %129 = vector.shape_cast %114 : vector<16x16x32xf32> to vector<256x32xf32>
    %c3 = arith.constant 3 : index
    %c0_44 = arith.constant 0 : index
    %c0_45 = arith.constant 0 : index
    %130 = vector.load %arg4[%c3, %c0_44, %c0_45] : memref<4x32x64xf32, #tpu.memory_space<vmem>>, vector<1x32x64xf32>
    %131 = vector.shape_cast %130 : vector<1x32x64xf32> to vector<32x64xf32>
    %cst_46 = arith.constant dense<0.000000e+00> : vector<256x64xf32>
    %132 = tpu.matmul %129, %131, %cst_46 {dimension_numbers = #tpu.dot_dimension_numbers<[1], [0], [0], [1], [0, 0, 1, 1], [], []>} : vector<256x32xf32>, vector<32x64xf32>, vector<256x64xf32> -> vector<256x64xf32>
    %133 = arith.addf %128, %132 : vector<256x64xf32>
    %c0_47 = arith.constant 0 : index
    %c0_48 = arith.constant 0 : index
    %134 = vector.load %arg5[%c0_47, %c0_48] : memref<1x64xf32, #tpu.memory_space<vmem>>, vector<1x64xf32>
    %135 = vector.shape_cast %134 : vector<1x64xf32> to vector<64xf32>
    %136 = vector.shape_cast %135 : vector<64xf32> to vector<1x64xf32>
    %137 = vector.broadcast %136 : vector<1x64xf32> to vector<256x64xf32>
    %138 = arith.addf %133, %137 : vector<256x64xf32>
    %cst_49 = arith.constant 0.000000e+00 : f32
    %139 = vector.broadcast %cst_49 : f32 to vector<256x64xf32>
    %140 = arith.subf %139, %138 : vector<256x64xf32>
    %141 = math.exp %140 : vector<256x64xf32>
    %cst_50 = arith.constant 1.000000e+00 : f32
    %142 = vector.broadcast %cst_50 : f32 to vector<256x64xf32>
    %143 = arith.addf %142, %141 : vector<256x64xf32>
    %cst_51 = arith.constant 1.000000e+00 : f32
    %144 = vector.broadcast %cst_51 : f32 to vector<256x64xf32>
    %145 = arith.divf %144, %143 : vector<256x64xf32>
    %146 = arith.mulf %138, %145 : vector<256x64xf32>
    %147 = vector.shape_cast %146 : vector<256x64xf32> to vector<16x16x64xf32>
    %c0_52 = arith.constant 0 : index
    %c0_53 = arith.constant 0 : index
    %c0_54 = arith.constant 0 : index
    %c0_55 = arith.constant 0 : index
    %148 = vector.load %arg6[%c0_52, %c0_53, %c0_54, %c0_55] : memref<1x16x16x64xf32, #tpu.memory_space<vmem>>, vector<1x16x16x64xf32>
    %149 = vector.shape_cast %148 : vector<1x16x16x64xf32> to vector<16x16x64xf32>
    %150 = vector.shape_cast %147 : vector<16x16x64xf32> to vector<1x16x16x64xf32>
    tpu.vector_store %arg6[%c0_52, %c0_53, %c0_54, %c0_55], %150 {strides = array<i32>} : memref<1x16x16x64xf32, #tpu.memory_space<vmem>>, vector<1x16x16x64xf32>,
    return
  }
  func.func @transform_0(%arg0: i32) -> (i32, i32, i32, i32) {
    %c0_i32 = arith.constant 0 : i32
    %c0_i32_0 = arith.constant 0 : i32
    %c0_i32_1 = arith.constant 0 : i32
    %c0_i32_2 = arith.constant 0 : i32
    return %arg0, %c0_i32, %c0_i32_0, %c0_i32_1 : i32, i32, i32, i32
  }
  func.func @transform_1(%arg0: i32) -> (i32, i32) {
    %c0_i32 = arith.constant 0 : i32
    %c0_i32_0 = arith.constant 0 : i32
    %c0_i32_1 = arith.constant 0 : i32
    return %c0_i32, %c0_i32_0 : i32, i32
  }
  func.func @transform_2(%arg0: i32) -> (i32, i32) {
    %c0_i32 = arith.constant 0 : i32
    %c0_i32_0 = arith.constant 0 : i32
    %c0_i32_1 = arith.constant 0 : i32
    return %c0_i32, %c0_i32_0 : i32, i32
  }
  func.func @transform_3(%arg0: i32) -> (i32, i32, i32) {
    %c0_i32 = arith.constant 0 : i32
    %c0_i32_0 = arith.constant 0 : i32
    %c0_i32_1 = arith.constant 0 : i32
    %c0_i32_2 = arith.constant 0 : i32
    return %c0_i32, %c0_i32_0, %c0_i32_1 : i32, i32, i32
  }
  func.func @transform_4(%arg0: i32) -> (i32, i32) {
    %c0_i32 = arith.constant 0 : i32
    %c0_i32_0 = arith.constant 0 : i32
    %c0_i32_1 = arith.constant 0 : i32
    return %c0_i32, %c0_i32_0 : i32, i32
  }
  func.func @transform_5(%arg0: i32) -> (i32, i32, i32, i32) {
    %c0_i32 = arith.constant 0 : i32
    %c0_i32_0 = arith.constant 0 : i32
    %c0_i32_1 = arith.constant 0 : i32
    %c0_i32_2 = arith.constant 0 : i32
    return %arg0, %c0_i32, %c0_i32_0, %c0_i32_1 : i32, i32, i32, i32
  }
}

</mosaic_0001>

<llo_original>
// kernel: tpu_custom_call.1
$region0: #{tpu_custom_call.1}
  #allocation0 [shape = 'u32[]', space=smem, size = 0x4, offset = 0x4, fixed_abs, tag = 'smem constant byte address 0x4 - core index']
  #allocation1 [shape = 'u32[144,128]{1,0:T(1,128)}', space=vmem, size = 0x12000, scoped, tag = 'internal scratch']
  %s0 = inlined_call_operand.hbm [shape: f32[2,16,16,64], index: 0, kind: input, shape index: {}]
  %s1 = inlined_call_operand.vmem [shape: f32[64,32], index: 1, kind: input, shape index: {}]
  %s2 = inlined_call_operand.vmem [shape: f32[1,32], index: 2, kind: input, shape index: {}]
  %s3 = inlined_call_operand.hbm [shape: f32[4,32,64], index: 3, kind: input, shape index: {}]
  %s4 = inlined_call_operand.vmem [shape: f32[1,64], index: 4, kind: input, shape index: {}]
  %s5 = inlined_call_operand.hbm [shape: f32[2,16,16,64], index: 5, kind: output, shape index: {}]
  %s6 = sld [smem:[#allocation0]]
  $region61: #{tpu_custom_call.1} parent=0
    _
  %s8 = ssub.s32 1, %s6
  %s9 = scalar_select 0, %s8, %s6
  $region1: #{tpu_custom_call.1} parent=0
    #allocation2 [shape = 'u8[262144]{0}', space=vmem, size = 0x40000, scoped, tag = 'input window, operand 0']
    #allocation3 [shape = 's32[2]{0}', space=sflag, size = 0x8, scoped, tag = 'scoped memory for tpu_custom_call.1']
    #allocation4 [shape = 's32[2]{0}', space=sflag, size = 0x8, scoped, tag = 'scoped memory for tpu_custom_call.1']
    #allocation5 [shape = 'u8[65536]{0}', space=vmem, size = 0x10000, scoped, tag = 'input window, operand 3, single buffered']
    #allocation6 [shape = 's32[1]{0}', space=sflag, size = 0x4, scoped, tag = 'scoped memory for tpu_custom_call.1']
    #allocation7 [shape = 'u8[262144]{0}', space=vmem, size = 0x40000, scoped, tag = 'output window, operand 0']
    %10 = vsyncpa [#allocation3], 0
    %s11 = scalar_lea.sflag [#allocation3], 1
    %12 = vsyncpa %s11, 0
    %13 = vsyncpa [#allocation6], 0
    %14 = vsyncpa [#allocation4], 0
    %s15 = scalar_lea.sflag [#allocation4], 1
    %16 = vsyncpa %s15, 0
    loop: start=0, step=1, limit=4
    $region2: #{tpu_custom_call.1} parent=1 // loop_pre_header
      _
    $region3: #{tpu_custom_call.1} parent=1 // loop_header
      %s18 = sphi 0, %s22
      %p19 = scmp.ge.s32.totalorder %s18, 4
      %s28 = sphi 0, %s30
      %s31 = sphi 0, %s28
      %s32 = sphi 0, %s31
      %s48 = sphi 0, %s32
      %s52 = sphi 0, %s52
      %s54 = sphi 0, %s52
      %s55 = sphi 0, %s54
      %s69 = sphi 0, %s55
      %s73 = sphi 0, %s73
      %s75 = sphi 0, %s73
      %s76 = sphi 0, %s75
      %s90 = sphi 0, %s76
      %s94 = sphi 0, %s94
      %s96 = sphi 0, %s94
      %s97 = sphi 0, %s96
      %s111 = sphi 0, %s97
      %s115 = sphi 0, %s115
      %s117 = sphi 0, %s115
      %s118 = sphi 0, %s117
      %s132 = sphi 0, %s118
      %s138 = sphi 0, %s140
      %s141 = sphi 0, %s138
      %s142 = sphi 0, %s141
      %s158 = sphi 0, %s142
    $region4: #{tpu_custom_call.1} parent=1 // loop_header_branch
      %21 = sbr.rel (%p19) target = $region8
    $region5: #{tpu_custom_call.1} parent=1 // loop_body
      %s23 = ssub.s32 %s18, 1
      %s24 = ssub.s32 %s18, 2
      %s25 = sadd.s32 %s18, 1
      %s26 = ssub.s32 %s18, %s25
      %p27 = scmp.eq.s32.totalorder %s26, 0
      %s29 = sadd.s32 %s28, 1
      %s30 = scalar_select %p27, %s28, %s29
      %p33 = pneg %p27
      %p34 = scmp.eq.s32.totalorder %s18, 1
      %p35 = por %p33, %p34
      %p36 = scmp.ne.s32.totalorder %s28, %s31
      %p37 = scmp.eq.s32.totalorder %s18, 0
      %p38 = por %p36, %p37
      %p39 = scmp.ne.s32.totalorder %s28, %s31
      %p40 = scmp.eq.s32.totalorder %s23, 1
      %p41 = por %p39, %p40
      %p42 = scmp.ne.s32.totalorder %s31, %s32
      %p43 = scmp.eq.s32.totalorder %s23, 0
      %p44 = por %p42, %p43
      %p45 = scmp.ne.s32.totalorder %s31, %s32
      %p46 = scmp.eq.s32.totalorder %s24, 1
      %p47 = por %p45, %p46
      %p49 = scmp.ne.s32.totalorder %s32, %s48
      %p50 = scmp.eq.s32.totalorder %s24, 0
      %p51 = por %p49, %p50
      %s53 = sadd.s32 %s52, 1
      %p56 = scmp.eq.s32.totalorder %s18, 1
      %p57 = scmp.ne.s32.totalorder %s52, %s54
      %p58 = scmp.eq.s32.totalorder %s18, 0
      %p59 = por %p57, %p58
      %p60 = scmp.ne.s32.totalorder %s52, %s54
      %p61 = scmp.eq.s32.totalorder %s23, 1
      %p62 = por %p60, %p61
      %p63 = scmp.ne.s32.totalorder %s54, %s55
      %p64 = scmp.eq.s32.totalorder %s23, 0
      %p65 = por %p63, %p64
      %p66 = scmp.ne.s32.totalorder %s54, %s55
      %p67 = scmp.eq.s32.totalorder %s24, 1
      %p68 = por %p66, %p67
      %p70 = scmp.ne.s32.totalorder %s55, %s69
      %p71 = scmp.eq.s32.totalorder %s24, 0
      %p72 = por %p70, %p71
      %s74 = sadd.s32 %s73, 1
      %p77 = scmp.eq.s32.totalorder %s18, 1
      %p78 = scmp.ne.s32.totalorder %s73, %s75
      %p79 = scmp.eq.s32.totalorder %s18, 0
      %p80 = por %p78, %p79
      %p81 = scmp.ne.s32.totalorder %s73, %s75
      %p82 = scmp.eq.s32.totalorder %s23, 1
      %p83 = por %p81, %p82
      %p84 = scmp.ne.s32.totalorder %s75, %s76
      %p85 = scmp.eq.s32.totalorder %s23, 0
      %p86 = por %p84, %p85
      %p87 = scmp.ne.s32.totalorder %s75, %s76
      %p88 = scmp.eq.s32.totalorder %s24, 1
      %p89 = por %p87, %p88
      %p91 = scmp.ne.s32.totalorder %s76, %s90
      %p92 = scmp.eq.s32.totalorder %s24, 0
      %p93 = por %p91, %p92
      %s95 = sadd.s32 %s94, 1
      %p98 = scmp.eq.s32.totalorder %s18, 1
      %p99 = scmp.ne.s32.totalorder %s94, %s96
      %p100 = scmp.eq.s32.totalorder %s18, 0
      %p101 = por %p99, %p100
      %p102 = scmp.ne.s32.totalorder %s94, %s96
      %p103 = scmp.eq.s32.totalorder %s23, 1
      %p104 = por %p102, %p103
      %p105 = scmp.ne.s32.totalorder %s96, %s97
      %p106 = scmp.eq.s32.totalorder %s23, 0
      %p107 = por %p105, %p106
      %p108 = scmp.ne.s32.totalorder %s96, %s97
      %p109 = scmp.eq.s32.totalorder %s24, 1
      %p110 = por %p108, %p109
      %p112 = scmp.ne.s32.totalorder %s97, %s111
      %p113 = scmp.eq.s32.totalorder %s24, 0
      %p114 = por %p112, %p113
      %s116 = sadd.s32 %s115, 1
      %p119 = scmp.eq.s32.totalorder %s18, 1
      %p120 = scmp.ne.s32.totalorder %s115, %s117
      %p121 = scmp.eq.s32.totalorder %s18, 0
      %p122 = por %p120, %p121
      %p123 = scmp.ne.s32.totalorder %s115, %s117
      %p124 = scmp.eq.s32.totalorder %s23, 1
      %p125 = por %p123, %p124
      %p126 = scmp.ne.s32.totalorder %s117, %s118
      %p127 = scmp.eq.s32.totalorder %s23, 0
      %p128 = por %p126, %p127
      %p129 = scmp.ne.s32.totalorder %s117, %s118
      %p130 = scmp.eq.s32.totalorder %s24, 1
      %p131 = por %p129, %p130
      %p133 = scmp.ne.s32.totalorder %s118, %s132
      %p134 = scmp.eq.s32.totalorder %s24, 0
      %p135 = por %p133, %p134
      %s136 = ssub.s32 %s18, %s25
      %p137 = scmp.eq.s32.totalorder %s136, 0
      %s139 = sadd.s32 %s138, 1
      %s140 = scalar_select %p137, %s138, %s139
      %p143 = pneg %p137
      %p144 = scmp.eq.s32.totalorder %s18, 1
      %p145 = por %p143, %p144
      %p146 = scmp.ne.s32.totalorder %s138, %s141
      %p147 = scmp.eq.s32.totalorder %s18, 0
      %p148 = por %p146, %p147
      %p149 = scmp.ne.s32.totalorder %s138, %s141
      %p150 = scmp.eq.s32.totalorder %s23, 1
      %p151 = por %p149, %p150
      %p152 = scmp.ne.s32.totalorder %s141, %s142
      %p153 = scmp.eq.s32.totalorder %s23, 0
      %p154 = por %p152, %p153
      %p155 = scmp.ne.s32.totalorder %s141, %s142
      %p156 = scmp.eq.s32.totalorder %s24, 1
      %p157 = por %p155, %p156
      %p159 = scmp.ne.s32.totalorder %s142, %s158
      %p160 = scmp.eq.s32.totalorder %s24, 0
      %p161 = por %p159, %p160
      %p162 = scmp.le.s32.totalorder 1, %s18
      %p163 = scmp.lt.s32.totalorder %s18, 3
      %p164 = pnand %p162, %p163
      %p165 = pneg %p164
      // Predicated region
      $region9: #{tpu_custom_call.1} parent=5 // pred_check
        _
      $region10: #{tpu_custom_call.1} parent=5 // pred_check_branch
        %167 = sbr.rel (%p164) target = $region12
      $region11: #{tpu_custom_call.1} parent=5 // pred_region
        %s168 = ssub.s32 %s18, 1
        // Predicated region
        $region13: #{tpu_custom_call.1} parent=11 // pred_check
          %p169 = pneg %p65
        $region14: #{tpu_custom_call.1} parent=11 // pred_check_branch
          %171 = sbr.rel (%p169) target = $region16
        $region15: #{tpu_custom_call.1} parent=11 // pred_region
          _
        $region16: #{tpu_custom_call.1} parent=11 // pred_fallthru
          _
        // Predicated region
        $region17: #{tpu_custom_call.1} parent=11 // pred_check
          %p172 = pneg %p86
        $region18: #{tpu_custom_call.1} parent=11 // pred_check_branch
          %174 = sbr.rel (%p172) target = $region20
        $region19: #{tpu_custom_call.1} parent=11 // pred_region
          _
        $region20: #{tpu_custom_call.1} parent=11 // pred_fallthru
          _
        // Predicated region
        $region21: #{tpu_custom_call.1} parent=11 // pred_check
          %p175 = pneg %p107
        $region22: #{tpu_custom_call.1} parent=11 // pred_check_branch
          %177 = sbr.rel (%p175) target = $region24
        $region23: #{tpu_custom_call.1} parent=11 // pred_region
          %s179 = ssub.s32 2048, 2048
          %180 = vsyncadd [#allocation6], %s179
          %s181 = sshll.u32 [#allocation5], 4
          %s182 = int_to_ptr.vmem [resolvable:$true] %s181
          %187 = dma.hbm_to_vmem [thread:$0]  %s3, 2048, %s182, [#allocation6], 128, 128, 8
        $region24: #{tpu_custom_call.1} parent=11 // pred_fallthru
          _
        // Predicated region
        $region25: #{tpu_custom_call.1} parent=11 // pred_check
          %p188 = pneg %p128
        $region26: #{tpu_custom_call.1} parent=11 // pred_check_branch
          %190 = sbr.rel (%p188) target = $region28
        $region27: #{tpu_custom_call.1} parent=11 // pred_region
          _
        $region28: #{tpu_custom_call.1} parent=11 // pred_fallthru
          _
      $region12: #{tpu_custom_call.1} parent=5 // pred_fallthru
        _
      %p191 = scmp.lt.s32.totalorder %s18, 2
      // Predicated region
      $region29: #{tpu_custom_call.1} parent=5 // pred_check
        %p192 = pneg %p191
      $region30: #{tpu_custom_call.1} parent=5 // pred_check_branch
        %194 = sbr.rel (%p192) target = $region32
      $region31: #{tpu_custom_call.1} parent=5 // pred_region
        // Predicated region
        $region33: #{tpu_custom_call.1} parent=31 // pred_check
          %p195 = pneg %p38
        $region34: #{tpu_custom_call.1} parent=31 // pred_check_branch
          %197 = sbr.rel (%p195) target = $region36
        $region35: #{tpu_custom_call.1} parent=31 // pred_region
          %s198 = sand.u32 %s28, 1
          %s199 = scalar_lea.sflag [#allocation3], %s198
          %s200 = sand.u32 %s28, 1
          %s201 = smul.addr %s200, 256
          %s202 = scalar_lea.vmem [#allocation2], %s201
          %s204 = ssub.s32 4096, 4096
          %205 = vsyncadd %s199, %s204
          %s206 = smul.addr %s18, 32
          %s207 = smul.addr %s206, 128
          %s208 = scalar_lea.hbm %s0, %s207
          %s209 = sshll.u32 %s202, 4
          %s210 = int_to_ptr.vmem [resolvable:$true] %s209
          %215 = dma.hbm_to_vmem [thread:$0]  %s208, 4096, %s210, %s199, 128, 128, 8
        $region36: #{tpu_custom_call.1} parent=31 // pred_fallthru
          _
      $region32: #{tpu_custom_call.1} parent=5 // pred_fallthru
        _
      %p216 = scmp.le.s32.totalorder 1, %s18
      %p217 = scmp.lt.s32.totalorder %s18, 3
      %p218 = pnand %p216, %p217
      %p219 = pneg %p218
      // Predicated region
      $region37: #{tpu_custom_call.1} parent=5 // pred_check
        _
      $region38: #{tpu_custom_call.1} parent=5 // pred_check_branch
        %221 = sbr.rel (%p218) target = $region40
      $region39: #{tpu_custom_call.1} parent=5 // pred_region
        %s222 = ssub.s32 %s18, 1
        %s223 = sand.u32 %s31, 1
        %s224 = scalar_lea.sflag [#allocation3], %s223
        %s225 = sand.u32 %s31, 1
        %s226 = smul.addr %s225, 256
        %s227 = scalar_lea.vmem [#allocation2], %s226
        // Predicated region
        $region41: #{tpu_custom_call.1} parent=39 // pred_check
          %p228 = pneg %p44
        $region42: #{tpu_custom_call.1} parent=39 // pred_check_branch
          %230 = sbr.rel (%p228) target = $region44
        $region43: #{tpu_custom_call.1} parent=39 // pred_region
          %231 = dma.done %s224, 4096
        $region44: #{tpu_custom_call.1} parent=39 // pred_fallthru
          _
        // Predicated region
        $region45: #{tpu_custom_call.1} parent=39 // pred_check
          %p232 = pneg %p107
        $region46: #{tpu_custom_call.1} parent=39 // pred_check_branch
          %234 = sbr.rel (%p232) target = $region48
        $region47: #{tpu_custom_call.1} parent=39 // pred_region
          %235 = dma.done [#allocation6], 2048
        $region48: #{tpu_custom_call.1} parent=39 // pred_fallthru
          _
        %s236 = sand.u32 %s31, 1
        %s237 = scalar_lea.sflag [#allocation3], %s236
        %s238 = sand.u32 %s31, 1
        %s239 = smul.addr %s238, 256
        %s240 = scalar_lea.vmem [#allocation2], %s239
        %p241 = pneg %p44
        %p242 = pneg %p41
        %p243 = pneg %p65
        %p244 = pneg %p62
        %p245 = pneg %p86
        %p246 = pneg %p83
        %p247 = pneg %p107
        %p248 = pneg %p104
        %p249 = pneg %p128
        %p250 = pneg %p125
        %p251 = pneg %p154
        %p252 = pneg %p151
        %s253 = sand.u32 %s141, 1
        %s254 = scalar_lea.sflag [#allocation4], %s253
        %s255 = sand.u32 %s141, 1
        %s256 = smul.addr %s255, 256
        %s257 = scalar_lea.vmem [#allocation7], %s256
        %v258 = vld [vmem:[%s227] sm:$0xff]
        %v259 = vld [vmem:[%s227 + $0x8] sm:$0xff]
        %v260 = vld [vmem:[%s227 + $0x10] sm:$0xff]
        %v261 = vld [vmem:[%s227 + $0x18] sm:$0xff]
        %v262 = vld [vmem:[%s227 + $0x20] sm:$0xff]
        %v263 = vld [vmem:[%s227 + $0x28] sm:$0xff]
        %v264 = vld [vmem:[%s227 + $0x30] sm:$0xff]
        %v265 = vld [vmem:[%s227 + $0x38] sm:$0xff]
        %v266 = vld [vmem:[%s227 + $0x40] sm:$0xff]
        %v267 = vld [vmem:[%s227 + $0x48] sm:$0xff]
        %v268 = vld [vmem:[%s227 + $0x50] sm:$0xff]
        %v269 = vld [vmem:[%s227 + $0x58] sm:$0xff]
        %v270 = vld [vmem:[%s227 + $0x60] sm:$0xff]
        %v271 = vld [vmem:[%s227 + $0x68] sm:$0xff]
        %v272 = vld [vmem:[%s227 + $0x70] sm:$0xff]
        %v273 = vld [vmem:[%s227 + $0x78] sm:$0xff]
        %v274 = vld [vmem:[%s227 + $0x80] sm:$0xff]
        %v275 = vld [vmem:[%s227 + $0x88] sm:$0xff]
        %v276 = vld [vmem:[%s227 + $0x90] sm:$0xff]
        %v277 = vld [vmem:[%s227 + $0x98] sm:$0xff]
        %v278 = vld [vmem:[%s227 + $0xa0] sm:$0xff]
        %v279 = vld [vmem:[%s227 + $0xa8] sm:$0xff]
        %v280 = vld [vmem:[%s227 + $0xb0] sm:$0xff]
        %v281 = vld [vmem:[%s227 + $0xb8] sm:$0xff]
        %v282 = vld [vmem:[%s227 + $0xc0] sm:$0xff]
        %v283 = vld [vmem:[%s227 + $0xc8] sm:$0xff]
        %v284 = vld [vmem:[%s227 + $0xd0] sm:$0xff]
        %v285 = vld [vmem:[%s227 + $0xd8] sm:$0xff]
        %v286 = vld [vmem:[%s227 + $0xe0] sm:$0xff]
        %v287 = vld [vmem:[%s227 + $0xe8] sm:$0xff]
        %v288 = vld [vmem:[%s227 + $0xf0] sm:$0xff]
        %v289 = vld [vmem:[%s227 + $0xf8] sm:$0xff]
        %v290 = vld [vmem:[%s1] sm:$0xff]
        %v291 = vld [vmem:[%s1 + $0x8] sm:$0xff]
        %v292 = vld [vmem:[%s1 + $0x10] sm:$0xff]
        %v293 = vld [vmem:[%s1 + $0x18] sm:$0xff]
        %v294 = vld [vmem:[%s1 + $0x20] sm:$0xff]
        %v295 = vld [vmem:[%s1 + $0x28] sm:$0xff]
        %v296 = vld [vmem:[%s1 + $0x30] sm:$0xff]
        %v297 = vld [vmem:[%s1 + $0x38] sm:$0xff]
        %v298 = vld [vmem:[%s2] sm:$0x1]
        %v300 = vlaneseq
        %v301 = vshrl.u32 %v300, 7
        %v302 = vsub.s32 0, %v301
        %v303 = vrot.slane %v298, %v302
        %vm305 = vcmask 523264
        %v307 = vsel %vm305, %v258, 0
        %v310 = vsel %vm305, %v259, 0
        %v313 = vsel %vm305, %v260, 0
        %v316 = vsel %vm305, %v261, 0
        %v319 = vsel %vm305, %v262, 0
        %v322 = vsel %vm305, %v263, 0
        %v325 = vsel %vm305, %v264, 0
        %v328 = vsel %vm305, %v265, 0
        %v331 = vsel %vm305, %v266, 0
        %v334 = vsel %vm305, %v267, 0
        %v337 = vsel %vm305, %v268, 0
        %v340 = vsel %vm305, %v269, 0
        %v343 = vsel %vm305, %v270, 0
        %v346 = vsel %vm305, %v271, 0
        %v349 = vsel %vm305, %v272, 0
        %v352 = vsel %vm305, %v273, 0
        %v355 = vsel %vm305, %v274, 0
        %v358 = vsel %vm305, %v275, 0
        %v361 = vsel %vm305, %v276, 0
        %v364 = vsel %vm305, %v277, 0
        %v367 = vsel %vm305, %v278, 0
        %v370 = vsel %vm305, %v279, 0
        %v373 = vsel %vm305, %v280, 0
        %v376 = vsel %vm305, %v281, 0
        %v379 = vsel %vm305, %v282, 0
        %v382 = vsel %vm305, %v283, 0
        %v385 = vsel %vm305, %v284, 0
        %v388 = vsel %vm305, %v285, 0
        %v391 = vsel %vm305, %v286, 0
        %v394 = vsel %vm305, %v287, 0
        %v397 = vsel %vm305, %v288, 0
        %v400 = vsel %vm305, %v289, 0
        %402 = vmatprep.subr.mxu0 0.0
        %403 = vmatpush1.msra.mxu0 %v290
        %404 = vmatprep.subr.mxu0 0.0
        %405 = vmatpush1.msra.mxu0 %v291
        %406 = vmatprep.subr.mxu0 0.0
        %407 = vmatpush1.msra.mxu0 %v292
        %408 = vmatprep.subr.mxu0 0.0
        %409 = vmatpush1.msra.mxu0 %v293
        %410 = vmatprep.subr.mxu0 0.0
        %411 = vmatpush1.msra.mxu0 %v294
        %412 = vmatprep.subr.mxu0 0.0
        %413 = vmatpush1.msra.mxu0 %v295
        %414 = vmatprep.subr.mxu0 0.0
        %415 = vmatpush1.msra.mxu0 %v296
        %416 = vmatprep.subr.mxu0 0.0
        %417 = vmatpush1.msra.mxu0 %v297
        %418 = vmatprep.subr.mxu0 0.0
        %419 = vmatpush1.msra.mxu0 0.0
        %420 = vmatprep.subr.mxu0 0.0
        %421 = vmatpush1.msra.mxu0 0.0
        %422 = vmatprep.subr.mxu0 0.0
        %423 = vmatpush1.msra.mxu0 0.0
        %424 = vmatprep.subr.mxu0 0.0
        %425 = vmatpush1.msra.mxu0 0.0
        %426 = vmatprep.subr.mxu0 0.0
        %427 = vmatpush1.msra.mxu0 0.0
        %428 = vmatprep.subr.mxu0 0.0
        %429 = vmatpush1.msra.mxu0 0.0
        %430 = vmatprep.subr.mxu0 0.0
        %431 = vmatpush1.msra.mxu0 0.0
        %432 = vmatprep.subr.mxu0 0.0
        %433 = vmatpush1.msra.mxu0 0.0
        %434 = vmatprep.subr.mxu0 0.0
        %435 = vmatpush1.msra.mxu0 0.0
        %436 = vmatprep.subr.mxu0 0.0
        %437 = vmatpush1.msra.mxu0 0.0
        %438 = vmatprep.subr.mxu0 0.0
        %439 = vmatpush1.msra.mxu0 0.0
        %440 = vmatprep.subr.mxu0 0.0
        %441 = vmatpush1.msra.mxu0 0.0
        %442 = vmatprep.subr.mxu0 0.0
        %443 = vmatpush1.msra.mxu0 0.0
        %444 = vmatprep.subr.mxu0 0.0
        %445 = vmatpush1.msra.mxu0 0.0
        %446 = vmatprep.subr.mxu0 0.0
        %447 = vmatpush1.msra.mxu0 0.0
        %448 = vmatprep.subr.mxu0 0.0
        %449 = vmatpush1.msra.mxu0 0.0
        %450 = vmatprep.subr.mxu0 0.0
        %451 = vmatpush1.msra.mxu0 0.0
        %452 = vmatprep.subr.mxu0 0.0
        %453 = vmatpush1.msra.mxu0 0.0
        %454 = vmatprep.subr.mxu0 0.0
        %455 = vmatpush1.msra.mxu0 0.0
        %456 = vmatprep.subr.mxu0 0.0
        %457 = vmatpush1.msra.mxu0 0.0
        %458 = vmatprep.subr.mxu0 0.0
        %459 = vmatpush1.msra.mxu0 0.0
        %460 = vmatprep.subr.mxu0 0.0
        %461 = vmatpush1.msra.mxu0 0.0
        %462 = vmatprep.subr.mxu0 0.0
        %463 = vmatpush1.msra.mxu0 0.0
        %464 = vmatprep.subr.mxu0 0.0
        %465 = vmatpush1.msra.mxu0 0.0
        %466 = vmatprep.mubr.f32.mxu0 0.0
        %467 = vmatmul.mubr.f32.gmra.mrb[0].mxu0 %v307
        %v468 = vpop.f32.mrb[0].mxu0
        %v469 = vadd.f32 %v303, %v468
        %v470 = vpop.f32.mrb[0].mxu0
        %471 = vmatprep.mubr.f32.mxu0 0.0
        %472 = vmatmul.mubr.f32.gmra.mrb[0].mxu0 %v310
        %v473 = vpop.f32.mrb[0].mxu0
        %v474 = vadd.f32 %v303, %v473
        %v475 = vpop.f32.mrb[0].mxu0
        %476 = vmatprep.mubr.f32.mxu0 0.0
        %477 = vmatmul.mubr.f32.gmra.mrb[0].mxu0 %v313
        %v478 = vpop.f32.mrb[0].mxu0
        %v479 = vadd.f32 %v303, %v478
        %v480 = vpop.f32.mrb[0].mxu0
        %481 = vmatprep.mubr.f32.mxu0 0.0
        %482 = vmatmul.mubr.f32.gmra.mrb[0].mxu0 %v316
        %v483 = vpop.f32.mrb[0].mxu0
        %v484 = vadd.f32 %v303, %v483
        %v485 = vpop.f32.mrb[0].mxu0
        %486 = vmatprep.mubr.f32.mxu0 0.0
        %487 = vmatmul.mubr.f32.gmra.mrb[0].mxu0 %v319
        %v488 = vpop.f32.mrb[0].mxu0
        %v489 = vadd.f32 %v303, %v488
        %v490 = vpop.f32.mrb[0].mxu0
        %491 = vmatprep.mubr.f32.mxu0 0.0
        %492 = vmatmul.mubr.f32.gmra.mrb[0].mxu0 %v322
        %v493 = vpop.f32.mrb[0].mxu0
        %v494 = vadd.f32 %v303, %v493
        %v495 = vpop.f32.mrb[0].mxu0
        %496 = vmatprep.mubr.f32.mxu0 0.0
        %497 = vmatmul.mubr.f32.gmra.mrb[0].mxu0 %v325
        %v498 = vpop.f32.mrb[0].mxu0
        %v499 = vadd.f32 %v303, %v498
        %v500 = vpop.f32.mrb[0].mxu0
        %501 = vmatprep.mubr.f32.mxu0 0.0
        %502 = vmatmul.mubr.f32.gmra.mrb[0].mxu0 %v328
        %v503 = vpop.f32.mrb[0].mxu0
        %v504 = vadd.f32 %v303, %v503
        %v505 = vpop.f32.mrb[0].mxu0
        %506 = vmatprep.mubr.f32.mxu0 0.0
        %507 = vmatmul.mubr.f32.gmra.mrb[0].mxu0 %v331
        %v508 = vpop.f32.mrb[0].mxu0
        %v509 = vadd.f32 %v303, %v508
        %v510 = vpop.f32.mrb[0].mxu0
        %511 = vmatprep.mubr.f32.mxu0 0.0
        %512 = vmatmul.mubr.f32.gmra.mrb[0].mxu0 %v334
        %v513 = vpop.f32.mrb[0].mxu0
        %v514 = vadd.f32 %v303, %v513
        %v515 = vpop.f32.mrb[0].mxu0
        %516 = vmatprep.mubr.f32.mxu0 0.0
        %517 = vmatmul.mubr.f32.gmra.mrb[0].mxu0 %v337
        %v518 = vpop.f32.mrb[0].mxu0
        %v519 = vadd.f32 %v303, %v518
        %v520 = vpop.f32.mrb[0].mxu0
        %521 = vmatprep.mubr.f32.mxu0 0.0
        %522 = vmatmul.mubr.f32.gmra.mrb[0].mxu0 %v340
        %v523 = vpop.f32.mrb[0].mxu0
        %v524 = vadd.f32 %v303, %v523
        %v525 = vpop.f32.mrb[0].mxu0
        %526 = vmatprep.mubr.f32.mxu0 0.0
        %527 = vmatmul.mubr.f32.gmra.mrb[0].mxu0 %v343
        %v528 = vpop.f32.mrb[0].mxu0
        %v529 = vadd.f32 %v303, %v528
        %v530 = vpop.f32.mrb[0].mxu0
        %531 = vmatprep.mubr.f32.mxu0 0.0
        %532 = vmatmul.mubr.f32.gmra.mrb[0].mxu0 %v346
        %v533 = vpop.f32.mrb[0].mxu0
        %v534 = vadd.f32 %v303, %v533
        %v535 = vpop.f32.mrb[0].mxu0
        %536 = vmatprep.mubr.f32.mxu0 0.0
        %537 = vmatmul.mubr.f32.gmra.mrb[0].mxu0 %v349
        %v538 = vpop.f32.mrb[0].mxu0
        %v539 = vadd.f32 %v303, %v538
        %v540 = vpop.f32.mrb[0].mxu0
        %541 = vmatprep.mubr.f32.mxu0 0.0
        %542 = vmatmul.mubr.f32.gmra.mrb[0].mxu0 %v352
        %v543 = vpop.f32.mrb[0].mxu0
        %v544 = vadd.f32 %v303, %v543
        %v545 = vpop.f32.mrb[0].mxu0
        %546 = vmatprep.mubr.f32.mxu0 0.0
        %547 = vmatmul.mubr.f32.gmra.mrb[0].mxu0 %v355
        %v548 = vpop.f32.mrb[0].mxu0
        %v549 = vadd.f32 %v303, %v548
        %v550 = vpop.f32.mrb[0].mxu0
        %551 = vmatprep.mubr.f32.mxu0 0.0
        %552 = vmatmul.mubr.f32.gmra.mrb[0].mxu0 %v358
        %v553 = vpop.f32.mrb[0].mxu0
        %v554 = vadd.f32 %v303, %v553
        %v555 = vpop.f32.mrb[0].mxu0
        %556 = vmatprep.mubr.f32.mxu0 0.0
        %557 = vmatmul.mubr.f32.gmra.mrb[0].mxu0 %v361
        %v558 = vpop.f32.mrb[0].mxu0
        %v559 = vadd.f32 %v303, %v558
        %v560 = vpop.f32.mrb[0].mxu0
        %561 = vmatprep.mubr.f32.mxu0 0.0
        %562 = vmatmul.mubr.f32.gmra.mrb[0].mxu0 %v364
        %v563 = vpop.f32.mrb[0].mxu0
        %v564 = vadd.f32 %v303, %v563
        %v565 = vpop.f32.mrb[0].mxu0
        %566 = vmatprep.mubr.f32.mxu0 0.0
        %567 = vmatmul.mubr.f32.gmra.mrb[0].mxu0 %v367
        %v568 = vpop.f32.mrb[0].mxu0
        %v569 = vadd.f32 %v303, %v568
        %v570 = vpop.f32.mrb[0].mxu0
        %571 = vmatprep.mubr.f32.mxu0 0.0
        %572 = vmatmul.mubr.f32.gmra.mrb[0].mxu0 %v370
        %v573 = vpop.f32.mrb[0].mxu0
        %v574 = vadd.f32 %v303, %v573
        %v575 = vpop.f32.mrb[0].mxu0
        %576 = vmatprep.mubr.f32.mxu0 0.0
        %577 = vmatmul.mubr.f32.gmra.mrb[0].mxu0 %v373
        %v578 = vpop.f32.mrb[0].mxu0
        %v579 = vadd.f32 %v303, %v578
        %v580 = vpop.f32.mrb[0].mxu0
        %581 = vmatprep.mubr.f32.mxu0 0.0
        %582 = vmatmul.mubr.f32.gmra.mrb[0].mxu0 %v376
        %v583 = vpop.f32.mrb[0].mxu0
        %v584 = vadd.f32 %v303, %v583
        %v585 = vpop.f32.mrb[0].mxu0
        %586 = vmatprep.mubr.f32.mxu0 0.0
        %587 = vmatmul.mubr.f32.gmra.mrb[0].mxu0 %v379
        %v588 = vpop.f32.mrb[0].mxu0
        %v589 = vadd.f32 %v303, %v588
        %v590 = vpop.f32.mrb[0].mxu0
        %591 = vmatprep.mubr.f32.mxu0 0.0
        %592 = vmatmul.mubr.f32.gmra.mrb[0].mxu0 %v382
        %v593 = vpop.f32.mrb[0].mxu0
        %v594 = vadd.f32 %v303, %v593
        %v595 = vpop.f32.mrb[0].mxu0
        %596 = vmatprep.mubr.f32.mxu0 0.0
        %597 = vmatmul.mubr.f32.gmra.mrb[0].mxu0 %v385
        %v598 = vpop.f32.mrb[0].mxu0
        %v599 = vadd.f32 %v303, %v598
        %v600 = vpop.f32.mrb[0].mxu0
        %601 = vmatprep.mubr.f32.mxu0 0.0
        %602 = vmatmul.mubr.f32.gmra.mrb[0].mxu0 %v388
        %v603 = vpop.f32.mrb[0].mxu0
        %v604 = vadd.f32 %v303, %v603
        %v605 = vpop.f32.mrb[0].mxu0
        %606 = vmatprep.mubr.f32.mxu0 0.0
        %607 = vmatmul.mubr.f32.gmra.mrb[0].mxu0 %v391
        %v608 = vpop.f32.mrb[0].mxu0
        %v609 = vadd.f32 %v303, %v608
        %v610 = vpop.f32.mrb[0].mxu0
        %611 = vmatprep.mubr.f32.mxu0 0.0
        %612 = vmatmul.mubr.f32.gmra.mrb[0].mxu0 %v394
        %v613 = vpop.f32.mrb[0].mxu0
        %v614 = vadd.f32 %v303, %v613
        %v615 = vpop.f32.mrb[0].mxu0
        %616 = vmatprep.mubr.f32.mxu0 0.0
        %617 = vmatmul.mubr.f32.gmra.mrb[0].mxu0 %v397
        %v618 = vpop.f32.mrb[0].mxu0
        %v619 = vadd.f32 %v303, %v618
        %v620 = vpop.f32.mrb[0].mxu0
        %621 = vmatprep.mubr.f32.mxu0 0.0
        %622 = vmatmul.mubr.f32.gmra.mrb[0].mxu0 %v400
        %v623 = vpop.f32.mrb[0].mxu0
        %v624 = vadd.f32 %v303, %v623
        %v625 = vpop.f32.mrb[0].mxu0
        %626 = vdwg.mxu0
        %v627 = vsub.f32 0.0, %v469
        %v628 = vsub.f32 0.0, %v474
        %v629 = vsub.f32 0.0, %v479
        %v630 = vsub.f32 0.0, %v484
        %v631 = vsub.f32 0.0, %v489
        %v632 = vsub.f32 0.0, %v494
        %v633 = vsub.f32 0.0, %v499
        %v634 = vsub.f32 0.0, %v504
        %v635 = vsub.f32 0.0, %v509
        %v636 = vsub.f32 0.0, %v514
        %v637 = vsub.f32 0.0, %v519
        %v638 = vsub.f32 0.0, %v524
        %v639 = vsub.f32 0.0, %v529
        %v640 = vsub.f32 0.0, %v534
        %v641 = vsub.f32 0.0, %v539
        %v642 = vsub.f32 0.0, %v544
        %v643 = vsub.f32 0.0, %v549
        %v644 = vsub.f32 0.0, %v554
        %v645 = vsub.f32 0.0, %v559
        %v646 = vsub.f32 0.0, %v564
        %v647 = vsub.f32 0.0, %v569
        %v648 = vsub.f32 0.0, %v574
        %v649 = vsub.f32 0.0, %v579
        %v650 = vsub.f32 0.0, %v584
        %v651 = vsub.f32 0.0, %v589
        %v652 = vsub.f32 0.0, %v594
        %v653 = vsub.f32 0.0, %v599
        %v654 = vsub.f32 0.0, %v604
        %v655 = vsub.f32 0.0, %v609
        %v656 = vsub.f32 0.0, %v614
        %v657 = vsub.f32 0.0, %v619
        %v658 = vsub.f32 0.0, %v624
        %v659 = vmul.f32 %v627, 1.442695
        %v660 = vpow.pop %v659
        %v661 = vmul.f32 %v628, 1.442695
        %v662 = vpow.pop %v661
        %v663 = vmul.f32 %v629, 1.442695
        %v664 = vpow.pop %v663
        %v665 = vmul.f32 %v630, 1.442695
        %v666 = vpow.pop %v665
        %v667 = vmul.f32 %v631, 1.442695
        %v668 = vpow.pop %v667
        %v669 = vmul.f32 %v632, 1.442695
        %v670 = vpow.pop %v669
        %v671 = vmul.f32 %v633, 1.442695
        %v672 = vpow.pop %v671
        %v673 = vmul.f32 %v634, 1.442695
        %v674 = vpow.pop %v673
        %v675 = vmul.f32 %v635, 1.442695
        %v676 = vpow.pop %v675
        %v677 = vmul.f32 %v636, 1.442695
        %v678 = vpow.pop %v677
        %v679 = vmul.f32 %v637, 1.442695
        %v680 = vpow.pop %v679
        %v681 = vmul.f32 %v638, 1.442695
        %v682 = vpow.pop %v681
        %v683 = vmul.f32 %v639, 1.442695
        %v684 = vpow.pop %v683
        %v685 = vmul.f32 %v640, 1.442695
        %v686 = vpow.pop %v685
        %v687 = vmul.f32 %v641, 1.442695
        %v688 = vpow.pop %v687
        %v689 = vmul.f32 %v642, 1.442695
        %v690 = vpow.pop %v689
        %v691 = vmul.f32 %v643, 1.442695
        %v692 = vpow.pop %v691
        %v693 = vmul.f32 %v644, 1.442695
        %v694 = vpow.pop %v693
        %v695 = vmul.f32 %v645, 1.442695
        %v696 = vpow.pop %v695
        %v697 = vmul.f32 %v646, 1.442695
        %v698 = vpow.pop %v697
        %v699 = vmul.f32 %v647, 1.442695
        %v700 = vpow.pop %v699
        %v701 = vmul.f32 %v648, 1.442695
        %v702 = vpow.pop %v701
        %v703 = vmul.f32 %v649, 1.442695
        %v704 = vpow.pop %v703
        %v705 = vmul.f32 %v650, 1.442695
        %v706 = vpow.pop %v705
        %v707 = vmul.f32 %v651, 1.442695
        %v708 = vpow.pop %v707
        %v709 = vmul.f32 %v652, 1.442695
        %v710 = vpow.pop %v709
        %v711 = vmul.f32 %v653, 1.442695
        %v712 = vpow.pop %v711
        %v713 = vmul.f32 %v654, 1.442695
        %v714 = vpow.pop %v713
        %v715 = vmul.f32 %v655, 1.442695
        %v716 = vpow.pop %v715
        %v717 = vmul.f32 %v656, 1.442695
        %v718 = vpow.pop %v717
        %v719 = vmul.f32 %v657, 1.442695
        %v720 = vpow.pop %v719
        %v721 = vmul.f32 %v658, 1.442695
        %v722 = vpow.pop %v721
        %v723 = vadd.f32 %v660, 1.0
        %v724 = vadd.f32 %v662, 1.0
        %v725 = vadd.f32 %v664, 1.0
        %v726 = vadd.f32 %v666, 1.0
        %v727 = vadd.f32 %v668, 1.0
        %v728 = vadd.f32 %v670, 1.0
        %v729 = vadd.f32 %v672, 1.0
        %v730 = vadd.f32 %v674, 1.0
        %v731 = vadd.f32 %v676, 1.0
        %v732 = vadd.f32 %v678, 1.0
        %v733 = vadd.f32 %v680, 1.0
        %v734 = vadd.f32 %v682, 1.0
        %v735 = vadd.f32 %v684, 1.0
        %v736 = vadd.f32 %v686, 1.0
        %v737 = vadd.f32 %v688, 1.0
        %v738 = vadd.f32 %v690, 1.0
        %v739 = vadd.f32 %v692, 1.0
        %v740 = vadd.f32 %v694, 1.0
        %v741 = vadd.f32 %v696, 1.0
        %v742 = vadd.f32 %v698, 1.0
        %v743 = vadd.f32 %v700, 1.0
        %v744 = vadd.f32 %v702, 1.0
        %v745 = vadd.f32 %v704, 1.0
        %v746 = vadd.f32 %v706, 1.0
        %v747 = vadd.f32 %v708, 1.0
        %v748 = vadd.f32 %v710, 1.0
        %v749 = vadd.f32 %v712, 1.0
        %v750 = vadd.f32 %v714, 1.0
        %v751 = vadd.f32 %v716, 1.0
        %v752 = vadd.f32 %v718, 1.0
        %v753 = vadd.f32 %v720, 1.0
        %v754 = vadd.f32 %v722, 1.0
        %v755 = vrcp.pop %v723
        %v756 = vmul.f32 1.0, %v755
        %v757 = vrcp.pop %v724
        %v758 = vmul.f32 1.0, %v757
        %v759 = vrcp.pop %v725
        %v760 = vmul.f32 1.0, %v759
        %v761 = vrcp.pop %v726
        %v762 = vmul.f32 1.0, %v761
        %v763 = vrcp.pop %v727
        %v764 = vmul.f32 1.0, %v763
        %v765 = vrcp.pop %v728
        %v766 = vmul.f32 1.0, %v765
        %v767 = vrcp.pop %v729
        %v768 = vmul.f32 1.0, %v767
        %v769 = vrcp.pop %v730
        %v770 = vmul.f32 1.0, %v769
        %v771 = vrcp.pop %v731
        %v772 = vmul.f32 1.0, %v771
        %v773 = vrcp.pop %v732
        %v774 = vmul.f32 1.0, %v773
        %v775 = vrcp.pop %v733
        %v776 = vmul.f32 1.0, %v775
        %v777 = vrcp.pop %v734
        %v778 = vmul.f32 1.0, %v777
        %v779 = vrcp.pop %v735
        %v780 = vmul.f32 1.0, %v779
        %v781 = vrcp.pop %v736
        %v782 = vmul.f32 1.0, %v781
        %v783 = vrcp.pop %v737
        %v784 = vmul.f32 1.0, %v783
        %v785 = vrcp.pop %v738
        %v786 = vmul.f32 1.0, %v785
        %v787 = vrcp.pop %v739
        %v788 = vmul.f32 1.0, %v787
        %v789 = vrcp.pop %v740
        %v790 = vmul.f32 1.0, %v789
        %v791 = vrcp.pop %v741
        %v792 = vmul.f32 1.0, %v791
        %v793 = vrcp.pop %v742
        %v794 = vmul.f32 1.0, %v793
        %v795 = vrcp.pop %v743
        %v796 = vmul.f32 1.0, %v795
        %v797 = vrcp.pop %v744
        %v798 = vmul.f32 1.0, %v797
        %v799 = vrcp.pop %v745
        %v800 = vmul.f32 1.0, %v799
        %v801 = vrcp.pop %v746
        %v802 = vmul.f32 1.0, %v801
        %v803 = vrcp.pop %v747
        %v804 = vmul.f32 1.0, %v803
        %v805 = vrcp.pop %v748
        %v806 = vmul.f32 1.0, %v805
        %v807 = vrcp.pop %v749
        %v808 = vmul.f32 1.0, %v807
        %v809 = vrcp.pop %v750
        %v810 = vmul.f32 1.0, %v809
        %v811 = vrcp.pop %v751
        %v812 = vmul.f32 1.0, %v811
        %v813 = vrcp.pop %v752
        %v814 = vmul.f32 1.0, %v813
        %v815 = vrcp.pop %v753
        %v816 = vmul.f32 1.0, %v815
        %v817 = vrcp.pop %v754
        %v818 = vmul.f32 1.0, %v817
        %v819 = vmul.f32 %v469, %v756
        %v820 = vmul.f32 %v474, %v758
        %v821 = vmul.f32 %v479, %v760
        %v822 = vmul.f32 %v484, %v762
        %v823 = vmul.f32 %v489, %v764
        %v824 = vmul.f32 %v494, %v766
        %v825 = vmul.f32 %v499, %v768
        %v826 = vmul.f32 %v504, %v770
        %v827 = vmul.f32 %v509, %v772
        %v828 = vmul.f32 %v514, %v774
        %v829 = vmul.f32 %v519, %v776
        %v830 = vmul.f32 %v524, %v778
        %v831 = vmul.f32 %v529, %v780
        %v832 = vmul.f32 %v534, %v782
        %v833 = vmul.f32 %v539, %v784
        %v834 = vmul.f32 %v544, %v786
        %v835 = vmul.f32 %v549, %v788
        %v836 = vmul.f32 %v554, %v790
        %v837 = vmul.f32 %v559, %v792
        %v838 = vmul.f32 %v564, %v794
        %v839 = vmul.f32 %v569, %v796
        %v840 = vmul.f32 %v574, %v798
        %v841 = vmul.f32 %v579, %v800
        %v842 = vmul.f32 %v584, %v802
        %v843 = vmul.f32 %v589, %v804
        %v844 = vmul.f32 %v594, %v806
        %v845 = vmul.f32 %v599, %v808
        %v846 = vmul.f32 %v604, %v810
        %v847 = vmul.f32 %v609, %v812
        %v848 = vmul.f32 %v614, %v814
        %v849 = vmul.f32 %v619, %v816
        %v850 = vmul.f32 %v624, %v818
        %v851 = vmax.f32 %v823, %v819
        %v852 = vmax.f32 %v824, %v820
        %v853 = vmax.f32 %v825, %v821
        %v854 = vmax.f32 %v826, %v822
        %v855 = vmax.f32 %v827, %v823
        %v856 = vmax.f32 %v828, %v824
        %v857 = vmax.f32 %v829, %v825
        %v858 = vmax.f32 %v830, %v826
        %v859 = vmax.f32 %v831, %v827
        %v860 = vmax.f32 %v832, %v828
        %v861 = vmax.f32 %v833, %v829
        %v862 = vmax.f32 %v834, %v830
        %v863 = vmax.f32 %v835, %v831
        %v864 = vmax.f32 %v836, %v832
        %v865 = vmax.f32 %v837, %v833
        %v866 = vmax.f32 %v838, %v834
        %v867 = vmax.f32 %v839, %v835
        %v868 = vmax.f32 %v840, %v836
        %v869 = vmax.f32 %v841, %v837
        %v870 = vmax.f32 %v842, %v838
        %v871 = vmax.f32 %v843, %v839
        %v872 = vmax.f32 %v844, %v840
        %v873 = vmax.f32 %v845, %v841
        %v874 = vmax.f32 %v846, %v842
        %v875 = vmax.f32 %v847, %v843
        %v876 = vmax.f32 %v848, %v844
        %v877 = vmax.f32 %v849, %v845
        %v878 = vmax.f32 %v850, %v846
        %v879 = vmax.f32 %v821, %v819
        %v880 = vmax.f32 %v822, %v820
        %v881 = vmax.f32 %v851, %v821
        %v882 = vmax.f32 %v852, %v822
        %v883 = vmax.f32 %v853, %v823
        %v884 = vmax.f32 %v854, %v824
        %v885 = vmax.f32 %v855, %v825
        %v886 = vmax.f32 %v856, %v826
        %v887 = vmax.f32 %v857, %v827
        %v888 = vmax.f32 %v858, %v828
        %v889 = vmax.f32 %v859, %v829
        %v890 = vmax.f32 %v860, %v830
        %v891 = vmax.f32 %v861, %v831
        %v892 = vmax.f32 %v862, %v832
        %v893 = vmax.f32 %v863, %v833
        %v894 = vmax.f32 %v864, %v834
        %v895 = vmax.f32 %v865, %v835
        %v896 = vmax.f32 %v866, %v836
        %v897 = vmax.f32 %v867, %v837
        %v898 = vmax.f32 %v868, %v838
        %v899 = vmax.f32 %v869, %v839
        %v900 = vmax.f32 %v870, %v840
        %v901 = vmax.f32 %v871, %v841
        %v902 = vmax.f32 %v872, %v842
        %v903 = vmax.f32 %v873, %v843
        %v904 = vmax.f32 %v874, %v844
        %v905 = vmax.f32 %v875, %v845
        %v906 = vmax.f32 %v876, %v846
        %v907 = vmax.f32 %v877, %v847
        %v908 = vmax.f32 %v878, %v848
        %v909 = vmax.f32 %v879, %v823
        %v910 = vmax.f32 %v880, %v824
        %v911 = vmax.f32 %v881, %v825
        %v912 = vmax.f32 %v882, %v826
        %v913 = vmax.f32 %v883, %v827
        %v914 = vmax.f32 %v884, %v828
        %v915 = vmax.f32 %v885, %v829
        %v916 = vmax.f32 %v886, %v830
        %v917 = vmax.f32 %v887, %v831
        %v918 = vmax.f32 %v888, %v832
        %v919 = vmax.f32 %v889, %v833
        %v920 = vmax.f32 %v890, %v834
        %v921 = vmax.f32 %v891, %v835
        %v922 = vmax.f32 %v892, %v836
        %v923 = vmax.f32 %v893, %v837
        %v924 = vmax.f32 %v894, %v838
        %v925 = vmax.f32 %v895, %v839
        %v926 = vmax.f32 %v896, %v840
        %v927 = vmax.f32 %v897, %v841
        %v928 = vmax.f32 %v898, %v842
        %v929 = vmax.f32 %v899, %v843
        %v930 = vmax.f32 %v900, %v844
        %v931 = vmax.f32 %v901, %v845
        %v932 = vmax.f32 %v902, %v846
        %v933 = vmax.f32 %v903, %v847
        %v934 = vmax.f32 %v904, %v848
        %v935 = vmax.f32 %v905, %v849
        %v936 = vmax.f32 %v906, %v850
        %v937 = vmax.f32 %v909, %v825
        %v938 = vmax.f32 %v910, %v826
        %v939 = vmax.f32 %v911, %v827
        %v940 = vmax.f32 %v912, %v828
        %v941 = vmax.f32 %v913, %v829
        %v942 = vmax.f32 %v914, %v830
        %v943 = vmax.f32 %v915, %v831
        %v944 = vmax.f32 %v916, %v832
        %v945 = vmax.f32 %v917, %v833
        %v946 = vmax.f32 %v918, %v834
        %v947 = vmax.f32 %v919, %v835
        %v948 = vmax.f32 %v920, %v836
        %v949 = vmax.f32 %v921, %v837
        %v950 = vmax.f32 %v922, %v838
        %v951 = vmax.f32 %v923, %v839
        %v952 = vmax.f32 %v924, %v840
        %v953 = vmax.f32 %v925, %v841
        %v954 = vmax.f32 %v926, %v842
        %v955 = vmax.f32 %v927, %v843
        %v956 = vmax.f32 %v928, %v844
        %v957 = vmax.f32 %v929, %v845
        %v958 = vmax.f32 %v930, %v846
        %v959 = vmax.f32 %v931, %v847
        %v960 = vmax.f32 %v932, %v848
        %v961 = vmax.f32 %v933, %v849
        %v962 = vmax.f32 %v934, %v850
        %vm995 = vcmask 1041408
        %v996 = vrot.slane %v909, 6
        %v997 = vrot.slane %v910, 6
        %v998 = vsel %vm995, %v996, %v997
        %v999 = vrot.slane %v937, 6
        %v1000 = vrot.slane %v938, 6
        %v1001 = vsel %vm995, %v999, %v1000
        %v1002 = vrot.slane %v939, 6
        %v1003 = vrot.slane %v940, 6
        %v1004 = vsel %vm995, %v1002, %v1003
        %v1005 = vrot.slane %v941, 6
        %v1006 = vrot.slane %v942, 6
        %v1007 = vsel %vm995, %v1005, %v1006
        %v1008 = vrot.slane %v943, 6
        %v1009 = vrot.slane %v944, 6
        %v1010 = vsel %vm995, %v1008, %v1009
        %v1011 = vrot.slane %v945, 6
        %v1012 = vrot.slane %v946, 6
        %v1013 = vsel %vm995, %v1011, %v1012
        %v1014 = vrot.slane %v947, 6
        %v1015 = vrot.slane %v948, 6
        %v1016 = vsel %vm995, %v1014, %v1015
        %v1017 = vrot.slane %v949, 6
        %v1018 = vrot.slane %v950, 6
        %v1019 = vsel %vm995, %v1017, %v1018
        %v1020 = vrot.slane %v951, 6
        %v1021 = vrot.slane %v952, 6
        %v1022 = vsel %vm995, %v1020, %v1021
        %v1023 = vrot.slane %v953, 6
        %v1024 = vrot.slane %v954, 6
        %v1025 = vsel %vm995, %v1023, %v1024
        %v1026 = vrot.slane %v955, 6
        %v1027 = vrot.slane %v956, 6
        %v1028 = vsel %vm995, %v1026, %v1027
        %v1029 = vrot.slane %v957, 6
        %v1030 = vrot.slane %v958, 6
        %v1031 = vsel %vm995, %v1029, %v1030
        %v1032 = vrot.slane %v959, 6
        %v1033 = vrot.slane %v960, 6
        %v1034 = vsel %vm995, %v1032, %v1033
        %v1035 = vrot.slane %v961, 6
        %v1036 = vrot.slane %v962, 6
        %v1037 = vsel %vm995, %v1035, %v1036
        %v1038 = vrot.slane %v935, 6
        %v1039 = vrot.slane %v936, 6
        %v1040 = vsel %vm995, %v1038, %v1039
        %v1041 = vrot.slane %v907, 6
        %v1042 = vrot.slane %v908, 6
        %v1043 = vsel %vm995, %v1041, %v1042
        %v1076 = vsel %vm995, -inf, %v996
        %v1077 = vsel %vm995, -inf, %v999
        %v1078 = vsel %vm995, -inf, %v1002
        %v1079 = vsel %vm995, -inf, %v1005
        %v1080 = vsel %vm995, -inf, %v1008
        %v1081 = vsel %vm995, -inf, %v1011
        %v1082 = vsel %vm995, -inf, %v1014
        %v1083 = vsel %vm995, -inf, %v1017
        %v1084 = vsel %vm995, -inf, %v1020
        %v1085 = vsel %vm995, -inf, %v1023
        %v1086 = vsel %vm995, -inf, %v1026
        %v1087 = vsel %vm995, -inf, %v1029
        %v1088 = vsel %vm995, -inf, %v1032
        %v1089 = vsel %vm995, -inf, %v1035
        %v1090 = vsel %vm995, -inf, %v1038
        %v1091 = vsel %vm995, -inf, %v1041
        %v1092 = vmax.f32 %v909, %v1076
        %v1093 = vmax.f32 %v910, %v998
        %v1094 = vmax.f32 %v937, %v1077
        %v1095 = vmax.f32 %v938, %v1001
        %v1096 = vmax.f32 %v939, %v1078
        %v1097 = vmax.f32 %v940, %v1004
        %v1098 = vmax.f32 %v941, %v1079
        %v1099 = vmax.f32 %v942, %v1007
        %v1100 = vmax.f32 %v943, %v1080
        %v1101 = vmax.f32 %v944, %v1010
        %v1102 = vmax.f32 %v945, %v1081
        %v1103 = vmax.f32 %v946, %v1013
        %v1104 = vmax.f32 %v947, %v1082
        %v1105 = vmax.f32 %v948, %v1016
        %v1106 = vmax.f32 %v949, %v1083
        %v1107 = vmax.f32 %v950, %v1019
        %v1108 = vmax.f32 %v951, %v1084
        %v1109 = vmax.f32 %v952, %v1022
        %v1110 = vmax.f32 %v953, %v1085
        %v1111 = vmax.f32 %v954, %v1025
        %v1112 = vmax.f32 %v955, %v1086
        %v1113 = vmax.f32 %v956, %v1028
        %v1114 = vmax.f32 %v957, %v1087
        %v1115 = vmax.f32 %v958, %v1031
        %v1116 = vmax.f32 %v959, %v1088
        %v1117 = vmax.f32 %v960, %v1034
        %v1118 = vmax.f32 %v961, %v1089
        %v1119 = vmax.f32 %v962, %v1037
        %v1120 = vmax.f32 %v935, %v1090
        %v1121 = vmax.f32 %v936, %v1040
        %v1122 = vmax.f32 %v907, %v1091
        %v1123 = vmax.f32 %v908, %v1043
        %vm1124 = vcmask 1040384
        %v1125 = vrot.slane %v909, 7
        %v1126 = vrot.slane %v910, 7
        %v1127 = vsel %vm1124, %v1125, %v1126
        %v1128 = vrot.slane %v937, 7
        %v1129 = vrot.slane %v938, 7
        %v1130 = vsel %vm1124, %v1128, %v1129
        %v1131 = vrot.slane %v939, 7
        %v1132 = vrot.slane %v940, 7
        %v1133 = vsel %vm1124, %v1131, %v1132
        %v1134 = vrot.slane %v941, 7
        %v1135 = vrot.slane %v942, 7
        %v1136 = vsel %vm1124, %v1134, %v1135
        %v1137 = vrot.slane %v943, 7
        %v1138 = vrot.slane %v944, 7
        %v1139 = vsel %vm1124, %v1137, %v1138
        %v1140 = vrot.slane %v945, 7
        %v1141 = vrot.slane %v946, 7
        %v1142 = vsel %vm1124, %v1140, %v1141
        %v1143 = vrot.slane %v947, 7
        %v1144 = vrot.slane %v948, 7
        %v1145 = vsel %vm1124, %v1143, %v1144
        %v1146 = vrot.slane %v949, 7
        %v1147 = vrot.slane %v950, 7
        %v1148 = vsel %vm1124, %v1146, %v1147
        %v1149 = vrot.slane %v951, 7
        %v1150 = vrot.slane %v952, 7
        %v1151 = vsel %vm1124, %v1149, %v1150
        %v1152 = vrot.slane %v953, 7
        %v1153 = vrot.slane %v954, 7
        %v1154 = vsel %vm1124, %v1152, %v1153
        %v1155 = vrot.slane %v955, 7
        %v1156 = vrot.slane %v956, 7
        %v1157 = vsel %vm1124, %v1155, %v1156
        %v1158 = vrot.slane %v957, 7
        %v1159 = vrot.slane %v958, 7
        %v1160 = vsel %vm1124, %v1158, %v1159
        %v1161 = vrot.slane %v959, 7
        %v1162 = vrot.slane %v960, 7
        %v1163 = vsel %vm1124, %v1161, %v1162
        %v1164 = vrot.slane %v961, 7
        %v1165 = vrot.slane %v962, 7
        %v1166 = vsel %vm1124, %v1164, %v1165
        %v1167 = vrot.slane %v935, 7
        %v1168 = vrot.slane %v936, 7
        %v1169 = vsel %vm1124, %v1167, %v1168
        %v1170 = vrot.slane %v907, 7
        %v1171 = vrot.slane %v908, 7
        %v1172 = vsel %vm1124, %v1170, %v1171
        %v1205 = vsel %vm1124, -inf, %v1125
        %v1206 = vsel %vm1124, -inf, %v1128
        %v1207 = vsel %vm1124, -inf, %v1131
        %v1208 = vsel %vm1124, -inf, %v1134
        %v1209 = vsel %vm1124, -inf, %v1137
        %v1210 = vsel %vm1124, -inf, %v1140
        %v1211 = vsel %vm1124, -inf, %v1143
        %v1212 = vsel %vm1124, -inf, %v1146
        %v1213 = vsel %vm1124, -inf, %v1149
        %v1214 = vsel %vm1124, -inf, %v1152
        %v1215 = vsel %vm1124, -inf, %v1155
        %v1216 = vsel %vm1124, -inf, %v1158
        %v1217 = vsel %vm1124, -inf, %v1161
        %v1218 = vsel %vm1124, -inf, %v1164
        %v1219 = vsel %vm1124, -inf, %v1167
        %v1220 = vsel %vm1124, -inf, %v1170
        %v1221 = vmax.f32 %v1092, %v1205
        %v1222 = vmax.f32 %v1093, %v1127
        %v1223 = vmax.f32 %v1094, %v1206
        %v1224 = vmax.f32 %v1095, %v1130
        %v1225 = vmax.f32 %v1096, %v1207
        %v1226 = vmax.f32 %v1097, %v1133
        %v1227 = vmax.f32 %v1098, %v1208
        %v1228 = vmax.f32 %v1099, %v1136
        %v1229 = vmax.f32 %v1100, %v1209
        %v1230 = vmax.f32 %v1101, %v1139
        %v1231 = vmax.f32 %v1102, %v1210
        %v1232 = vmax.f32 %v1103, %v1142
        %v1233 = vmax.f32 %v1104, %v1211
        %v1234 = vmax.f32 %v1105, %v1145
        %v1235 = vmax.f32 %v1106, %v1212
        %v1236 = vmax.f32 %v1107, %v1148
        %v1237 = vmax.f32 %v1108, %v1213
        %v1238 = vmax.f32 %v1109, %v1151
        %v1239 = vmax.f32 %v1110, %v1214
        %v1240 = vmax.f32 %v1111, %v1154
        %v1241 = vmax.f32 %v1112, %v1215
        %v1242 = vmax.f32 %v1113, %v1157
        %v1243 = vmax.f32 %v1114, %v1216
        %v1244 = vmax.f32 %v1115, %v1160
        %v1245 = vmax.f32 %v1116, %v1217
        %v1246 = vmax.f32 %v1117, %v1163
        %v1247 = vmax.f32 %v1118, %v1218
        %v1248 = vmax.f32 %v1119, %v1166
        %v1249 = vmax.f32 %v1120, %v1219
        %v1250 = vmax.f32 %v1121, %v1169
        %v1251 = vmax.f32 %v1122, %v1220
        %v1252 = vmax.f32 %v1123, %v1172
        %vm1253 = vcmask 1046528
        %v1254 = vrot.slane %v909, 1
        %v1255 = vrot.slane %v910, 1
        %v1256 = vsel %vm1253, %v1254, %v1255
        %v1257 = vrot.slane %v937, 1
        %v1258 = vrot.slane %v938, 1
        %v1259 = vsel %vm1253, %v1257, %v1258
        %v1260 = vrot.slane %v939, 1
        %v1261 = vrot.slane %v940, 1
        %v1262 = vsel %vm1253, %v1260, %v1261
        %v1263 = vrot.slane %v941, 1
        %v1264 = vrot.slane %v942, 1
        %v1265 = vsel %vm1253, %v1263, %v1264
        %v1266 = vrot.slane %v943, 1
        %v1267 = vrot.slane %v944, 1
        %v1268 = vsel %vm1253, %v1266, %v1267
        %v1269 = vrot.slane %v945, 1
        %v1270 = vrot.slane %v946, 1
        %v1271 = vsel %vm1253, %v1269, %v1270
        %v1272 = vrot.slane %v947, 1
        %v1273 = vrot.slane %v948, 1
        %v1274 = vsel %vm1253, %v1272, %v1273
        %v1275 = vrot.slane %v949, 1
        %v1276 = vrot.slane %v950, 1
        %v1277 = vsel %vm1253, %v1275, %v1276
        %v1278 = vrot.slane %v951, 1
        %v1279 = vrot.slane %v952, 1
        %v1280 = vsel %vm1253, %v1278, %v1279
        %v1281 = vrot.slane %v953, 1
        %v1282 = vrot.slane %v954, 1
        %v1283 = vsel %vm1253, %v1281, %v1282
        %v1284 = vrot.slane %v955, 1
        %v1285 = vrot.slane %v956, 1
        %v1286 = vsel %vm1253, %v1284, %v1285
        %v1287 = vrot.slane %v957, 1
        %v1288 = vrot.slane %v958, 1
        %v1289 = vsel %vm1253, %v1287, %v1288
        %v1290 = vrot.slane %v959, 1
        %v1291 = vrot.slane %v960, 1
        %v1292 = vsel %vm1253, %v1290, %v1291
        %v1293 = vrot.slane %v961, 1
        %v1294 = vrot.slane %v962, 1
        %v1295 = vsel %vm1253, %v1293, %v1294
        %v1296 = vrot.slane %v935, 1
        %v1297 = vrot.slane %v936, 1
        %v1298 = vsel %vm1253, %v1296, %v1297
        %v1299 = vrot.slane %v907, 1
        %v1300 = vrot.slane %v908, 1
        %v1301 = vsel %vm1253, %v1299, %v1300
        %v1334 = vsel %vm1253, %v1255, -inf
        %v1335 = vsel %vm1253, %v1258, -inf
        %v1336 = vsel %vm1253, %v1261, -inf
        %v1337 = vsel %vm1253, %v1264, -inf
        %v1338 = vsel %vm1253, %v1267, -inf
        %v1339 = vsel %vm1253, %v1270, -inf
        %v1340 = vsel %vm1253, %v1273, -inf
        %v1341 = vsel %vm1253, %v1276, -inf
        %v1342 = vsel %vm1253, %v1279, -inf
        %v1343 = vsel %vm1253, %v1282, -inf
        %v1344 = vsel %vm1253, %v1285, -inf
        %v1345 = vsel %vm1253, %v1288, -inf
        %v1346 = vsel %vm1253, %v1291, -inf
        %v1347 = vsel %vm1253, %v1294, -inf
        %v1348 = vsel %vm1253, %v1297, -inf
        %v1349 = vsel %vm1253, %v1300, -inf
        %v1350 = vmax.f32 %v1221, %v1256
        %v1351 = vmax.f32 %v1222, %v1334
        %v1352 = vmax.f32 %v1223, %v1259
        %v1353 = vmax.f32 %v1224, %v1335
        %v1354 = vmax.f32 %v1225, %v1262
        %v1355 = vmax.f32 %v1226, %v1336
        %v1356 = vmax.f32 %v1227, %v1265
        %v1357 = vmax.f32 %v1228, %v1337
        %v1358 = vmax.f32 %v1229, %v1268
        %v1359 = vmax.f32 %v1230, %v1338
        %v1360 = vmax.f32 %v1231, %v1271
        %v1361 = vmax.f32 %v1232, %v1339
        %v1362 = vmax.f32 %v1233, %v1274
        %v1363 = vmax.f32 %v1234, %v1340
        %v1364 = vmax.f32 %v1235, %v1277
        %v1365 = vmax.f32 %v1236, %v1341
        %v1366 = vmax.f32 %v1237, %v1280
        %v1367 = vmax.f32 %v1238, %v1342
        %v1368 = vmax.f32 %v1239, %v1283
        %v1369 = vmax.f32 %v1240, %v1343
        %v1370 = vmax.f32 %v1241, %v1286
        %v1371 = vmax.f32 %v1242, %v1344
        %v1372 = vmax.f32 %v1243, %v1289
        %v1373 = vmax.f32 %v1244, %v1345
        %v1374 = vmax.f32 %v1245, %v1292
        %v1375 = vmax.f32 %v1246, %v1346
        %v1376 = vmax.f32 %v1247, %v1295
        %v1377 = vmax.f32 %v1248, %v1347
        %v1378 = vmax.f32 %v1249, %v1298
        %v1379 = vmax.f32 %v1250, %v1348
        %v1380 = vmax.f32 %v1251, %v1301
        %v1381 = vmax.f32 %v1252, %v1349
        %vm1382 = vcmask 1045504
        %v1383 = vrot.slane %v909, 2
        %v1384 = vrot.slane %v910, 2
        %v1385 = vsel %vm1382, %v1383, %v1384
        %v1386 = vrot.slane %v937, 2
        %v1387 = vrot.slane %v938, 2
        %v1388 = vsel %vm1382, %v1386, %v1387
        %v1389 = vrot.slane %v939, 2
        %v1390 = vrot.slane %v940, 2
        %v1391 = vsel %vm1382, %v1389, %v1390
        %v1392 = vrot.slane %v941, 2
        %v1393 = vrot.slane %v942, 2
        %v1394 = vsel %vm1382, %v1392, %v1393
        %v1395 = vrot.slane %v943, 2
        %v1396 = vrot.slane %v944, 2
        %v1397 = vsel %vm1382, %v1395, %v1396
        %v1398 = vrot.slane %v945, 2
        %v1399 = vrot.slane %v946, 2
        %v1400 = vsel %vm1382, %v1398, %v1399
        %v1401 = vrot.slane %v947, 2
        %v1402 = vrot.slane %v948, 2
        %v1403 = vsel %vm1382, %v1401, %v1402
        %v1404 = vrot.slane %v949, 2
        %v1405 = vrot.slane %v950, 2
        %v1406 = vsel %vm1382, %v1404, %v1405
        %v1407 = vrot.slane %v951, 2
        %v1408 = vrot.slane %v952, 2
        %v1409 = vsel %vm1382, %v1407, %v1408
        %v1410 = vrot.slane %v953, 2
        %v1411 = vrot.slane %v954, 2
        %v1412 = vsel %vm1382, %v1410, %v1411
        %v1413 = vrot.slane %v955, 2
        %v1414 = vrot.slane %v956, 2
        %v1415 = vsel %vm1382, %v1413, %v1414
        %v1416 = vrot.slane %v957, 2
        %v1417 = vrot.slane %v958, 2
        %v1418 = vsel %vm1382, %v1416, %v1417
        %v1419 = vrot.slane %v959, 2
        %v1420 = vrot.slane %v960, 2
        %v1421 = vsel %vm1382, %v1419, %v1420
        %v1422 = vrot.slane %v961, 2
        %v1423 = vrot.slane %v962, 2
        %v1424 = vsel %vm1382, %v1422, %v1423
        %v1425 = vrot.slane %v935, 2
        %v1426 = vrot.slane %v936, 2
        %v1427 = vsel %vm1382, %v1425, %v1426
        %v1428 = vrot.slane %v907, 2
        %v1429 = vrot.slane %v908, 2
        %v1430 = vsel %vm1382, %v1428, %v1429
        %v1463 = vsel %vm1382, %v1384, -inf
        %v1464 = vsel %vm1382, %v1387, -inf
        %v1465 = vsel %vm1382, %v1390, -inf
        %v1466 = vsel %vm1382, %v1393, -inf
        %v1467 = vsel %vm1382, %v1396, -inf
        %v1468 = vsel %vm1382, %v1399, -inf
        %v1469 = vsel %vm1382, %v1402, -inf
        %v1470 = vsel %vm1382, %v1405, -inf
        %v1471 = vsel %vm1382, %v1408, -inf
        %v1472 = vsel %vm1382, %v1411, -inf
        %v1473 = vsel %vm1382, %v1414, -inf
        %v1474 = vsel %vm1382, %v1417, -inf
        %v1475 = vsel %vm1382, %v1420, -inf
        %v1476 = vsel %vm1382, %v1423, -inf
        %v1477 = vsel %vm1382, %v1426, -inf
        %v1478 = vsel %vm1382, %v1429, -inf
        %v1479 = vmax.f32 %v1350, %v1385
        %v1480 = vmax.f32 %v1351, %v1463
        %v1481 = vmax.f32 %v1352, %v1388
        %v1482 = vmax.f32 %v1353, %v1464
        %v1483 = vmax.f32 %v1354, %v1391
        %v1484 = vmax.f32 %v1355, %v1465
        %v1485 = vmax.f32 %v1356, %v1394
        %v1486 = vmax.f32 %v1357, %v1466
        %v1487 = vmax.f32 %v1358, %v1397
        %v1488 = vmax.f32 %v1359, %v1467
        %v1489 = vmax.f32 %v1360, %v1400
        %v1490 = vmax.f32 %v1361, %v1468
        %v1491 = vmax.f32 %v1362, %v1403
        %v1492 = vmax.f32 %v1363, %v1469
        %v1493 = vmax.f32 %v1364, %v1406
        %v1494 = vmax.f32 %v1365, %v1470
        %v1495 = vmax.f32 %v1366, %v1409
        %v1496 = vmax.f32 %v1367, %v1471
        %v1497 = vmax.f32 %v1368, %v1412
        %v1498 = vmax.f32 %v1369, %v1472
        %v1499 = vmax.f32 %v1370, %v1415
        %v1500 = vmax.f32 %v1371, %v1473
        %v1501 = vmax.f32 %v1372, %v1418
        %v1502 = vmax.f32 %v1373, %v1474
        %v1503 = vmax.f32 %v1374, %v1421
        %v1504 = vmax.f32 %v1375, %v1475
        %v1505 = vmax.f32 %v1376, %v1424
        %v1506 = vmax.f32 %v1377, %v1476
        %v1507 = vmax.f32 %v1378, %v1427
        %v1508 = vmax.f32 %v1379, %v1477
        %v1509 = vmax.f32 %v1380, %v1430
        %v1510 = vmax.f32 %v1381, %v1478
        %v1511 = vmax.f32 %v1483, %v1479
        %v1512 = vmax.f32 %v1484, %v1480
        %v1513 = vmax.f32 %v1485, %v1481
        %v1514 = vmax.f32 %v1486, %v1482
        %v1515 = vmax.f32 %v1487, %v1483
        %v1516 = vmax.f32 %v1488, %v1484
        %v1517 = vmax.f32 %v1489, %v1485
        %v1518 = vmax.f32 %v1490, %v1486
        %v1519 = vmax.f32 %v1491, %v1487
        %v1520 = vmax.f32 %v1492, %v1488
        %v1521 = vmax.f32 %v1493, %v1489
        %v1522 = vmax.f32 %v1494, %v1490
        %v1523 = vmax.f32 %v1495, %v1491
        %v1524 = vmax.f32 %v1496, %v1492
        %v1525 = vmax.f32 %v1497, %v1493
        %v1526 = vmax.f32 %v1498, %v1494
        %v1527 = vmax.f32 %v1499, %v1495
        %v1528 = vmax.f32 %v1500, %v1496
        %v1529 = vmax.f32 %v1501, %v1497
        %v1530 = vmax.f32 %v1502, %v1498
        %v1531 = vmax.f32 %v1503, %v1499
        %v1532 = vmax.f32 %v1504, %v1500
        %v1533 = vmax.f32 %v1505, %v1501
        %v1534 = vmax.f32 %v1506, %v1502
        %v1535 = vmax.f32 %v1507, %v1503
        %v1536 = vmax.f32 %v1508, %v1504
        %v1537 = vmax.f32 %v1509, %v1505
        %v1538 = vmax.f32 %v1510, %v1506
        %v1539 = vmax.f32 %v1481, %v1479
        %v1540 = vmax.f32 %v1482, %v1480
        %v1541 = vmax.f32 %v1511, %v1481
        %v1542 = vmax.f32 %v1512, %v1482
        %v1543 = vmax.f32 %v1513, %v1483
        %v1544 = vmax.f32 %v1514, %v1484
        %v1545 = vmax.f32 %v1515, %v1485
        %v1546 = vmax.f32 %v1516, %v1486
        %v1547 = vmax.f32 %v1517, %v1487
        %v1548 = vmax.f32 %v1518, %v1488
        %v1549 = vmax.f32 %v1519, %v1489
        %v1550 = vmax.f32 %v1520, %v1490
        %v1551 = vmax.f32 %v1521, %v1491
        %v1552 = vmax.f32 %v1522, %v1492
        %v1553 = vmax.f32 %v1523, %v1493
        %v1554 = vmax.f32 %v1524, %v1494
        %v1555 = vmax.f32 %v1525, %v1495
        %v1556 = vmax.f32 %v1526, %v1496
        %v1557 = vmax.f32 %v1527, %v1497
        %v1558 = vmax.f32 %v1528, %v1498
        %v1559 = vmax.f32 %v1529, %v1499
        %v1560 = vmax.f32 %v1530, %v1500
        %v1561 = vmax.f32 %v1531, %v1501
        %v1562 = vmax.f32 %v1532, %v1502
        %v1563 = vmax.f32 %v1533, %v1503
        %v1564 = vmax.f32 %v1534, %v1504
        %v1565 = vmax.f32 %v1535, %v1505
        %v1566 = vmax.f32 %v1536, %v1506
        %v1567 = vmax.f32 %v1537, %v1507
        %v1568 = vmax.f32 %v1538, %v1508
        %v1569 = vmax.f32 %v1539, %v1483
        %v1570 = vmax.f32 %v1540, %v1484
        %v1571 = vmax.f32 %v1541, %v1485
        %v1572 = vmax.f32 %v1542, %v1486
        %v1573 = vmax.f32 %v1543, %v1487
        %v1574 = vmax.f32 %v1544, %v1488
        %v1575 = vmax.f32 %v1545, %v1489
        %v1576 = vmax.f32 %v1546, %v1490
        %v1577 = vmax.f32 %v1547, %v1491
        %v1578 = vmax.f32 %v1548, %v1492
        %v1579 = vmax.f32 %v1549, %v1493
        %v1580 = vmax.f32 %v1550, %v1494
        %v1581 = vmax.f32 %v1551, %v1495
        %v1582 = vmax.f32 %v1552, %v1496
        %v1583 = vmax.f32 %v1553, %v1497
        %v1584 = vmax.f32 %v1554, %v1498
        %v1585 = vmax.f32 %v1555, %v1499
        %v1586 = vmax.f32 %v1556, %v1500
        %v1587 = vmax.f32 %v1557, %v1501
        %v1588 = vmax.f32 %v1558, %v1502
        %v1589 = vmax.f32 %v1559, %v1503
        %v1590 = vmax.f32 %v1560, %v1504
        %v1591 = vmax.f32 %v1561, %v1505
        %v1592 = vmax.f32 %v1562, %v1506
        %v1593 = vmax.f32 %v1563, %v1507
        %v1594 = vmax.f32 %v1564, %v1508
        %v1595 = vmax.f32 %v1565, %v1509
        %v1596 = vmax.f32 %v1566, %v1510
        %v1597 = vmax.f32 %v1569, %v1485
        %v1598 = vmax.f32 %v1570, %v1486
        %v1599 = vmax.f32 %v1571, %v1487
        %v1600 = vmax.f32 %v1572, %v1488
        %v1601 = vmax.f32 %v1573, %v1489
        %v1602 = vmax.f32 %v1574, %v1490
        %v1603 = vmax.f32 %v1575, %v1491
        %v1604 = vmax.f32 %v1576, %v1492
        %v1605 = vmax.f32 %v1577, %v1493
        %v1606 = vmax.f32 %v1578, %v1494
        %v1607 = vmax.f32 %v1579, %v1495
        %v1608 = vmax.f32 %v1580, %v1496
        %v1609 = vmax.f32 %v1581, %v1497
        %v1610 = vmax.f32 %v1582, %v1498
        %v1611 = vmax.f32 %v1583, %v1499
        %v1612 = vmax.f32 %v1584, %v1500
        %v1613 = vmax.f32 %v1585, %v1501
        %v1614 = vmax.f32 %v1586, %v1502
        %v1615 = vmax.f32 %v1587, %v1503
        %v1616 = vmax.f32 %v1588, %v1504
        %v1617 = vmax.f32 %v1589, %v1505
        %v1618 = vmax.f32 %v1590, %v1506
        %v1619 = vmax.f32 %v1591, %v1507
        %v1620 = vmax.f32 %v1592, %v1508
        %v1621 = vmax.f32 %v1593, %v1509
        %v1622 = vmax.f32 %v1594, %v1510
        %v1655 = vrot.slane %v1569, 6
        %v1656 = vrot.slane %v1570, 6
        %v1657 = vsel %vm995, %v1655, %v1656
        %v1658 = vrot.slane %v1597, 6
        %v1659 = vrot.slane %v1598, 6
        %v1660 = vsel %vm995, %v1658, %v1659
        %v1661 = vrot.slane %v1599, 6
        %v1662 = vrot.slane %v1600, 6
        %v1663 = vsel %vm995, %v1661, %v1662
        %v1664 = vrot.slane %v1601, 6
        %v1665 = vrot.slane %v1602, 6
        %v1666 = vsel %vm995, %v1664, %v1665
        %v1667 = vrot.slane %v1603, 6
        %v1668 = vrot.slane %v1604, 6
        %v1669 = vsel %vm995, %v1667, %v1668
        %v1670 = vrot.slane %v1605, 6
        %v1671 = vrot.slane %v1606, 6
        %v1672 = vsel %vm995, %v1670, %v1671
        %v1673 = vrot.slane %v1607, 6
        %v1674 = vrot.slane %v1608, 6
        %v1675 = vsel %vm995, %v1673, %v1674
        %v1676 = vrot.slane %v1609, 6
        %v1677 = vrot.slane %v1610, 6
        %v1678 = vsel %vm995, %v1676, %v1677
        %v1679 = vrot.slane %v1611, 6
        %v1680 = vrot.slane %v1612, 6
        %v1681 = vsel %vm995, %v1679, %v1680
        %v1682 = vrot.slane %v1613, 6
        %v1683 = vrot.slane %v1614, 6
        %v1684 = vsel %vm995, %v1682, %v1683
        %v1685 = vrot.slane %v1615, 6
        %v1686 = vrot.slane %v1616, 6
        %v1687 = vsel %vm995, %v1685, %v1686
        %v1688 = vrot.slane %v1617, 6
        %v1689 = vrot.slane %v1618, 6
        %v1690 = vsel %vm995, %v1688, %v1689
        %v1691 = vrot.slane %v1619, 6
        %v1692 = vrot.slane %v1620, 6
        %v1693 = vsel %vm995, %v1691, %v1692
        %v1694 = vrot.slane %v1621, 6
        %v1695 = vrot.slane %v1622, 6
        %v1696 = vsel %vm995, %v1694, %v1695
        %v1697 = vrot.slane %v1595, 6
        %v1698 = vrot.slane %v1596, 6
        %v1699 = vsel %vm995, %v1697, %v1698
        %v1700 = vrot.slane %v1567, 6
        %v1701 = vrot.slane %v1568, 6
        %v1702 = vsel %vm995, %v1700, %v1701
        %v1735 = vsel %vm995, -inf, %v1655
        %v1736 = vsel %vm995, -inf, %v1658
        %v1737 = vsel %vm995, -inf, %v1661
        %v1738 = vsel %vm995, -inf, %v1664
        %v1739 = vsel %vm995, -inf, %v1667
        %v1740 = vsel %vm995, -inf, %v1670
        %v1741 = vsel %vm995, -inf, %v1673
        %v1742 = vsel %vm995, -inf, %v1676
        %v1743 = vsel %vm995, -inf, %v1679
        %v1744 = vsel %vm995, -inf, %v1682
        %v1745 = vsel %vm995, -inf, %v1685
        %v1746 = vsel %vm995, -inf, %v1688
        %v1747 = vsel %vm995, -inf, %v1691
        %v1748 = vsel %vm995, -inf, %v1694
        %v1749 = vsel %vm995, -inf, %v1697
        %v1750 = vsel %vm995, -inf, %v1700
        %v1751 = vmax.f32 %v1569, %v1735
        %v1752 = vmax.f32 %v1570, %v1657
        %v1753 = vmax.f32 %v1597, %v1736
        %v1754 = vmax.f32 %v1598, %v1660
        %v1755 = vmax.f32 %v1599, %v1737
        %v1756 = vmax.f32 %v1600, %v1663
        %v1757 = vmax.f32 %v1601, %v1738
        %v1758 = vmax.f32 %v1602, %v1666
        %v1759 = vmax.f32 %v1603, %v1739
        %v1760 = vmax.f32 %v1604, %v1669
        %v1761 = vmax.f32 %v1605, %v1740
        %v1762 = vmax.f32 %v1606, %v1672
        %v1763 = vmax.f32 %v1607, %v1741
        %v1764 = vmax.f32 %v1608, %v1675
        %v1765 = vmax.f32 %v1609, %v1742
        %v1766 = vmax.f32 %v1610, %v1678
        %v1767 = vmax.f32 %v1611, %v1743
        %v1768 = vmax.f32 %v1612, %v1681
        %v1769 = vmax.f32 %v1613, %v1744
        %v1770 = vmax.f32 %v1614, %v1684
        %v1771 = vmax.f32 %v1615, %v1745
        %v1772 = vmax.f32 %v1616, %v1687
        %v1773 = vmax.f32 %v1617, %v1746
        %v1774 = vmax.f32 %v1618, %v1690
        %v1775 = vmax.f32 %v1619, %v1747
        %v1776 = vmax.f32 %v1620, %v1693
        %v1777 = vmax.f32 %v1621, %v1748
        %v1778 = vmax.f32 %v1622, %v1696
        %v1779 = vmax.f32 %v1595, %v1749
        %v1780 = vmax.f32 %v1596, %v1699
        %v1781 = vmax.f32 %v1567, %v1750
        %v1782 = vmax.f32 %v1568, %v1702
        %v1783 = vrot.slane %v1569, 7
        %v1784 = vrot.slane %v1570, 7
        %v1785 = vsel %vm1124, %v1783, %v1784
        %v1786 = vrot.slane %v1597, 7
        %v1787 = vrot.slane %v1598, 7
        %v1788 = vsel %vm1124, %v1786, %v1787
        %v1789 = vrot.slane %v1599, 7
        %v1790 = vrot.slane %v1600, 7
        %v1791 = vsel %vm1124, %v1789, %v1790
        %v1792 = vrot.slane %v1601, 7
        %v1793 = vrot.slane %v1602, 7
        %v1794 = vsel %vm1124, %v1792, %v1793
        %v1795 = vrot.slane %v1603, 7
        %v1796 = vrot.slane %v1604, 7
        %v1797 = vsel %vm1124, %v1795, %v1796
        %v1798 = vrot.slane %v1605, 7
        %v1799 = vrot.slane %v1606, 7
        %v1800 = vsel %vm1124, %v1798, %v1799
        %v1801 = vrot.slane %v1607, 7
        %v1802 = vrot.slane %v1608, 7
        %v1803 = vsel %vm1124, %v1801, %v1802
        %v1804 = vrot.slane %v1609, 7
        %v1805 = vrot.slane %v1610, 7
        %v1806 = vsel %vm1124, %v1804, %v1805
        %v1807 = vrot.slane %v1611, 7
        %v1808 = vrot.slane %v1612, 7
        %v1809 = vsel %vm1124, %v1807, %v1808
        %v1810 = vrot.slane %v1613, 7
        %v1811 = vrot.slane %v1614, 7
        %v1812 = vsel %vm1124, %v1810, %v1811
        %v1813 = vrot.slane %v1615, 7
        %v1814 = vrot.slane %v1616, 7
        %v1815 = vsel %vm1124, %v1813, %v1814
        %v1816 = vrot.slane %v1617, 7
        %v1817 = vrot.slane %v1618, 7
        %v1818 = vsel %vm1124, %v1816, %v1817
        %v1819 = vrot.slane %v1619, 7
        %v1820 = vrot.slane %v1620, 7
        %v1821 = vsel %vm1124, %v1819, %v1820
        %v1822 = vrot.slane %v1621, 7
        %v1823 = vrot.slane %v1622, 7
        %v1824 = vsel %vm1124, %v1822, %v1823
        %v1825 = vrot.slane %v1595, 7
        %v1826 = vrot.slane %v1596, 7
        %v1827 = vsel %vm1124, %v1825, %v1826
        %v1828 = vrot.slane %v1567, 7
        %v1829 = vrot.slane %v1568, 7
        %v1830 = vsel %vm1124, %v1828, %v1829
        %v1863 = vsel %vm1124, -inf, %v1783
        %v1864 = vsel %vm1124, -inf, %v1786
        %v1865 = vsel %vm1124, -inf, %v1789
        %v1866 = vsel %vm1124, -inf, %v1792
        %v1867 = vsel %vm1124, -inf, %v1795
        %v1868 = vsel %vm1124, -inf, %v1798
        %v1869 = vsel %vm1124, -inf, %v1801
        %v1870 = vsel %vm1124, -inf, %v1804
        %v1871 = vsel %vm1124, -inf, %v1807
        %v1872 = vsel %vm1124, -inf, %v1810
        %v1873 = vsel %vm1124, -inf, %v1813
        %v1874 = vsel %vm1124, -inf, %v1816
        %v1875 = vsel %vm1124, -inf, %v1819
        %v1876 = vsel %vm1124, -inf, %v1822
        %v1877 = vsel %vm1124, -inf, %v1825
        %v1878 = vsel %vm1124, -inf, %v1828
        %v1879 = vmax.f32 %v1751, %v1863
        %v1880 = vmax.f32 %v1752, %v1785
        %v1881 = vmax.f32 %v1753, %v1864
        %v1882 = vmax.f32 %v1754, %v1788
        %v1883 = vmax.f32 %v1755, %v1865
        %v1884 = vmax.f32 %v1756, %v1791
        %v1885 = vmax.f32 %v1757, %v1866
        %v1886 = vmax.f32 %v1758, %v1794
        %v1887 = vmax.f32 %v1759, %v1867
        %v1888 = vmax.f32 %v1760, %v1797
        %v1889 = vmax.f32 %v1761, %v1868
        %v1890 = vmax.f32 %v1762, %v1800
        %v1891 = vmax.f32 %v1763, %v1869
        %v1892 = vmax.f32 %v1764, %v1803
        %v1893 = vmax.f32 %v1765, %v1870
        %v1894 = vmax.f32 %v1766, %v1806
        %v1895 = vmax.f32 %v1767, %v1871
        %v1896 = vmax.f32 %v1768, %v1809
        %v1897 = vmax.f32 %v1769, %v1872
        %v1898 = vmax.f32 %v1770, %v1812
        %v1899 = vmax.f32 %v1771, %v1873
        %v1900 = vmax.f32 %v1772, %v1815
        %v1901 = vmax.f32 %v1773, %v1874
        %v1902 = vmax.f32 %v1774, %v1818
        %v1903 = vmax.f32 %v1775, %v1875
        %v1904 = vmax.f32 %v1776, %v1821
        %v1905 = vmax.f32 %v1777, %v1876
        %v1906 = vmax.f32 %v1778, %v1824
        %v1907 = vmax.f32 %v1779, %v1877
        %v1908 = vmax.f32 %v1780, %v1827
        %v1909 = vmax.f32 %v1781, %v1878
        %v1910 = vmax.f32 %v1782, %v1830
        %v1911 = vrot.slane %v1569, 1
        %v1912 = vrot.slane %v1570, 1
        %v1913 = vsel %vm1253, %v1911, %v1912
        %v1914 = vrot.slane %v1597, 1
        %v1915 = vrot.slane %v1598, 1
        %v1916 = vsel %vm1253, %v1914, %v1915
        %v1917 = vrot.slane %v1599, 1
        %v1918 = vrot.slane %v1600, 1
        %v1919 = vsel %vm1253, %v1917, %v1918
        %v1920 = vrot.slane %v1601, 1
        %v1921 = vrot.slane %v1602, 1
        %v1922 = vsel %vm1253, %v1920, %v1921
        %v1923 = vrot.slane %v1603, 1
        %v1924 = vrot.slane %v1604, 1
        %v1925 = vsel %vm1253, %v1923, %v1924
        %v1926 = vrot.slane %v1605, 1
        %v1927 = vrot.slane %v1606, 1
        %v1928 = vsel %vm1253, %v1926, %v1927
        %v1929 = vrot.slane %v1607, 1
        %v1930 = vrot.slane %v1608, 1
        %v1931 = vsel %vm1253, %v1929, %v1930
        %v1932 = vrot.slane %v1609, 1
        %v1933 = vrot.slane %v1610, 1
        %v1934 = vsel %vm1253, %v1932, %v1933
        %v1935 = vrot.slane %v1611, 1
        %v1936 = vrot.slane %v1612, 1
        %v1937 = vsel %vm1253, %v1935, %v1936
        %v1938 = vrot.slane %v1613, 1
        %v1939 = vrot.slane %v1614, 1
        %v1940 = vsel %vm1253, %v1938, %v1939
        %v1941 = vrot.slane %v1615, 1
        %v1942 = vrot.slane %v1616, 1
        %v1943 = vsel %vm1253, %v1941, %v1942
        %v1944 = vrot.slane %v1617, 1
        %v1945 = vrot.slane %v1618, 1
        %v1946 = vsel %vm1253, %v1944, %v1945
        %v1947 = vrot.slane %v1619, 1
        %v1948 = vrot.slane %v1620, 1
        %v1949 = vsel %vm1253, %v1947, %v1948
        %v1950 = vrot.slane %v1621, 1
        %v1951 = vrot.slane %v1622, 1
        %v1952 = vsel %vm1253, %v1950, %v1951
        %v1953 = vrot.slane %v1595, 1
        %v1954 = vrot.slane %v1596, 1
        %v1955 = vsel %vm1253, %v1953, %v1954
        %v1956 = vrot.slane %v1567, 1
        %v1957 = vrot.slane %v1568, 1
        %v1958 = vsel %vm1253, %v1956, %v1957
        %v1991 = vsel %vm1253, %v1912, -inf
        %v1992 = vsel %vm1253, %v1915, -inf
        %v1993 = vsel %vm1253, %v1918, -inf
        %v1994 = vsel %vm1253, %v1921, -inf
        %v1995 = vsel %vm1253, %v1924, -inf
        %v1996 = vsel %vm1253, %v1927, -inf
        %v1997 = vsel %vm1253, %v1930, -inf
        %v1998 = vsel %vm1253, %v1933, -inf
        %v1999 = vsel %vm1253, %v1936, -inf
        %v2000 = vsel %vm1253, %v1939, -inf
        %v2001 = vsel %vm1253, %v1942, -inf
        %v2002 = vsel %vm1253, %v1945, -inf
        %v2003 = vsel %vm1253, %v1948, -inf
        %v2004 = vsel %vm1253, %v1951, -inf
        %v2005 = vsel %vm1253, %v1954, -inf
        %v2006 = vsel %vm1253, %v1957, -inf
        %v2007 = vmax.f32 %v1879, %v1913
        %v2008 = vmax.f32 %v1880, %v1991
        %v2009 = vmax.f32 %v1881, %v1916
        %v2010 = vmax.f32 %v1882, %v1992
        %v2011 = vmax.f32 %v1883, %v1919
        %v2012 = vmax.f32 %v1884, %v1993
        %v2013 = vmax.f32 %v1885, %v1922
        %v2014 = vmax.f32 %v1886, %v1994
        %v2015 = vmax.f32 %v1887, %v1925
        %v2016 = vmax.f32 %v1888, %v1995
        %v2017 = vmax.f32 %v1889, %v1928
        %v2018 = vmax.f32 %v1890, %v1996
        %v2019 = vmax.f32 %v1891, %v1931
        %v2020 = vmax.f32 %v1892, %v1997
        %v2021 = vmax.f32 %v1893, %v1934
        %v2022 = vmax.f32 %v1894, %v1998
        %v2023 = vmax.f32 %v1895, %v1937
        %v2024 = vmax.f32 %v1896, %v1999
        %v2025 = vmax.f32 %v1897, %v1940
        %v2026 = vmax.f32 %v1898, %v2000
        %v2027 = vmax.f32 %v1899, %v1943
        %v2028 = vmax.f32 %v1900, %v2001
        %v2029 = vmax.f32 %v1901, %v1946
        %v2030 = vmax.f32 %v1902, %v2002
        %v2031 = vmax.f32 %v1903, %v1949
        %v2032 = vmax.f32 %v1904, %v2003
        %v2033 = vmax.f32 %v1905, %v1952
        %v2034 = vmax.f32 %v1906, %v2004
        %v2035 = vmax.f32 %v1907, %v1955
        %v2036 = vmax.f32 %v1908, %v2005
        %v2037 = vmax.f32 %v1909, %v1958
        %v2038 = vmax.f32 %v1910, %v2006
        %v2039 = vrot.slane %v1569, 2
        %v2040 = vrot.slane %v1570, 2
        %v2041 = vsel %vm1382, %v2039, %v2040
        %v2042 = vrot.slane %v1597, 2
        %v2043 = vrot.slane %v1598, 2
        %v2044 = vsel %vm1382, %v2042, %v2043
        %v2045 = vrot.slane %v1599, 2
        %v2046 = vrot.slane %v1600, 2
        %v2047 = vsel %vm1382, %v2045, %v2046
        %v2048 = vrot.slane %v1601, 2
        %v2049 = vrot.slane %v1602, 2
        %v2050 = vsel %vm1382, %v2048, %v2049
        %v2051 = vrot.slane %v1603, 2
        %v2052 = vrot.slane %v1604, 2
        %v2053 = vsel %vm1382, %v2051, %v2052
        %v2054 = vrot.slane %v1605, 2
        %v2055 = vrot.slane %v1606, 2
        %v2056 = vsel %vm1382, %v2054, %v2055
        %v2057 = vrot.slane %v1607, 2
        %v2058 = vrot.slane %v1608, 2
        %v2059 = vsel %vm1382, %v2057, %v2058
        %v2060 = vrot.slane %v1609, 2
        %v2061 = vrot.slane %v1610, 2
        %v2062 = vsel %vm1382, %v2060, %v2061
        %v2063 = vrot.slane %v1611, 2
        %v2064 = vrot.slane %v1612, 2
        %v2065 = vsel %vm1382, %v2063, %v2064
        %v2066 = vrot.slane %v1613, 2
        %v2067 = vrot.slane %v1614, 2
        %v2068 = vsel %vm1382, %v2066, %v2067
        %v2069 = vrot.slane %v1615, 2
        %v2070 = vrot.slane %v1616, 2
        %v2071 = vsel %vm1382, %v2069, %v2070
        %v2072 = vrot.slane %v1617, 2
        %v2073 = vrot.slane %v1618, 2
        %v2074 = vsel %vm1382, %v2072, %v2073
        %v2075 = vrot.slane %v1619, 2
        %v2076 = vrot.slane %v1620, 2
        %v2077 = vsel %vm1382, %v2075, %v2076
        %v2078 = vrot.slane %v1621, 2
        %v2079 = vrot.slane %v1622, 2
        %v2080 = vsel %vm1382, %v2078, %v2079
        %v2081 = vrot.slane %v1595, 2
        %v2082 = vrot.slane %v1596, 2
        %v2083 = vsel %vm1382, %v2081, %v2082
        %v2084 = vrot.slane %v1567, 2
        %v2085 = vrot.slane %v1568, 2
        %v2086 = vsel %vm1382, %v2084, %v2085
        %v2119 = vsel %vm1382, %v2040, -inf
        %v2120 = vsel %vm1382, %v2043, -inf
        %v2121 = vsel %vm1382, %v2046, -inf
        %v2122 = vsel %vm1382, %v2049, -inf
        %v2123 = vsel %vm1382, %v2052, -inf
        %v2124 = vsel %vm1382, %v2055, -inf
        %v2125 = vsel %vm1382, %v2058, -inf
        %v2126 = vsel %vm1382, %v2061, -inf
        %v2127 = vsel %vm1382, %v2064, -inf
        %v2128 = vsel %vm1382, %v2067, -inf
        %v2129 = vsel %vm1382, %v2070, -inf
        %v2130 = vsel %vm1382, %v2073, -inf
        %v2131 = vsel %vm1382, %v2076, -inf
        %v2132 = vsel %vm1382, %v2079, -inf
        %v2133 = vsel %vm1382, %v2082, -inf
        %v2134 = vsel %vm1382, %v2085, -inf
        %v2135 = vmax.f32 %v2007, %v2041
        %v2136 = vmax.f32 %v2008, %v2119
        %v2137 = vmax.f32 %v2009, %v2044
        %v2138 = vmax.f32 %v2010, %v2120
        %v2139 = vmax.f32 %v2011, %v2047
        %v2140 = vmax.f32 %v2012, %v2121
        %v2141 = vmax.f32 %v2013, %v2050
        %v2142 = vmax.f32 %v2014, %v2122
        %v2143 = vmax.f32 %v2015, %v2053
        %v2144 = vmax.f32 %v2016, %v2123
        %v2145 = vmax.f32 %v2017, %v2056
        %v2146 = vmax.f32 %v2018, %v2124
        %v2147 = vmax.f32 %v2019, %v2059
        %v2148 = vmax.f32 %v2020, %v2125
        %v2149 = vmax.f32 %v2021, %v2062
        %v2150 = vmax.f32 %v2022, %v2126
        %v2151 = vmax.f32 %v2023, %v2065
        %v2152 = vmax.f32 %v2024, %v2127
        %v2153 = vmax.f32 %v2025, %v2068
        %v2154 = vmax.f32 %v2026, %v2128
        %v2155 = vmax.f32 %v2027, %v2071
        %v2156 = vmax.f32 %v2028, %v2129
        %v2157 = vmax.f32 %v2029, %v2074
        %v2158 = vmax.f32 %v2030, %v2130
        %v2159 = vmax.f32 %v2031, %v2077
        %v2160 = vmax.f32 %v2032, %v2131
        %v2161 = vmax.f32 %v2033, %v2080
        %v2162 = vmax.f32 %v2034, %v2132
        %v2163 = vmax.f32 %v2035, %v2083
        %v2164 = vmax.f32 %v2036, %v2133
        %v2165 = vmax.f32 %v2037, %v2086
        %v2166 = vmax.f32 %v2038, %v2134
        %v2167 = vmax.f32 %v2139, %v2135
        %v2168 = vmax.f32 %v2140, %v2136
        %v2169 = vmax.f32 %v2141, %v2137
        %v2170 = vmax.f32 %v2142, %v2138
        %v2171 = vmax.f32 %v2143, %v2139
        %v2172 = vmax.f32 %v2144, %v2140
        %v2173 = vmax.f32 %v2145, %v2141
        %v2174 = vmax.f32 %v2146, %v2142
        %v2175 = vmax.f32 %v2147, %v2143
        %v2176 = vmax.f32 %v2148, %v2144
        %v2177 = vmax.f32 %v2149, %v2145
        %v2178 = vmax.f32 %v2150, %v2146
        %v2179 = vmax.f32 %v2151, %v2147
        %v2180 = vmax.f32 %v2152, %v2148
        %v2181 = vmax.f32 %v2153, %v2149
        %v2182 = vmax.f32 %v2154, %v2150
        %v2183 = vmax.f32 %v2155, %v2151
        %v2184 = vmax.f32 %v2156, %v2152
        %v2185 = vmax.f32 %v2157, %v2153
        %v2186 = vmax.f32 %v2158, %v2154
        %v2187 = vmax.f32 %v2159, %v2155
        %v2188 = vmax.f32 %v2160, %v2156
        %v2189 = vmax.f32 %v2161, %v2157
        %v2190 = vmax.f32 %v2162, %v2158
        %v2191 = vmax.f32 %v2163, %v2159
        %v2192 = vmax.f32 %v2164, %v2160
        %v2193 = vmax.f32 %v2165, %v2161
        %v2194 = vmax.f32 %v2166, %v2162
        %v2195 = vmax.f32 %v2137, %v2135
        %v2196 = vmax.f32 %v2138, %v2136
        %v2197 = vmax.f32 %v2167, %v2137
        %v2198 = vmax.f32 %v2168, %v2138
        %v2199 = vmax.f32 %v2169, %v2139
        %v2200 = vmax.f32 %v2170, %v2140
        %v2201 = vmax.f32 %v2171, %v2141
        %v2202 = vmax.f32 %v2172, %v2142
        %v2203 = vmax.f32 %v2173, %v2143
        %v2204 = vmax.f32 %v2174, %v2144
        %v2205 = vmax.f32 %v2175, %v2145
        %v2206 = vmax.f32 %v2176, %v2146
        %v2207 = vmax.f32 %v2177, %v2147
        %v2208 = vmax.f32 %v2178, %v2148
        %v2209 = vmax.f32 %v2179, %v2149
        %v2210 = vmax.f32 %v2180, %v2150
        %v2211 = vmax.f32 %v2181, %v2151
        %v2212 = vmax.f32 %v2182, %v2152
        %v2213 = vmax.f32 %v2183, %v2153
        %v2214 = vmax.f32 %v2184, %v2154
        %v2215 = vmax.f32 %v2185, %v2155
        %v2216 = vmax.f32 %v2186, %v2156
        %v2217 = vmax.f32 %v2187, %v2157
        %v2218 = vmax.f32 %v2188, %v2158
        %v2219 = vmax.f32 %v2189, %v2159
        %v2220 = vmax.f32 %v2190, %v2160
        %v2221 = vmax.f32 %v2191, %v2161
        %v2222 = vmax.f32 %v2192, %v2162
        %v2223 = vmax.f32 %v2193, %v2163
        %v2224 = vmax.f32 %v2194, %v2164
        %v2225 = vmax.f32 %v2195, %v2139
        %v2226 = vmax.f32 %v2196, %v2140
        %v2227 = vmax.f32 %v2197, %v2141
        %v2228 = vmax.f32 %v2198, %v2142
        %v2229 = vmax.f32 %v2199, %v2143
        %v2230 = vmax.f32 %v2200, %v2144
        %v2231 = vmax.f32 %v2201, %v2145
        %v2232 = vmax.f32 %v2202, %v2146
        %v2233 = vmax.f32 %v2203, %v2147
        %v2234 = vmax.f32 %v2204, %v2148
        %v2235 = vmax.f32 %v2205, %v2149
        %v2236 = vmax.f32 %v2206, %v2150
        %v2237 = vmax.f32 %v2207, %v2151
        %v2238 = vmax.f32 %v2208, %v2152
        %v2239 = vmax.f32 %v2209, %v2153
        %v2240 = vmax.f32 %v2210, %v2154
        %v2241 = vmax.f32 %v2211, %v2155
        %v2242 = vmax.f32 %v2212, %v2156
        %v2243 = vmax.f32 %v2213, %v2157
        %v2244 = vmax.f32 %v2214, %v2158
        %v2245 = vmax.f32 %v2215, %v2159
        %v2246 = vmax.f32 %v2216, %v2160
        %v2247 = vmax.f32 %v2217, %v2161
        %v2248 = vmax.f32 %v2218, %v2162
        %v2249 = vmax.f32 %v2219, %v2163
        %v2250 = vmax.f32 %v2220, %v2164
        %v2251 = vmax.f32 %v2221, %v2165
        %v2252 = vmax.f32 %v2222, %v2166
        %v2253 = vmax.f32 %v2225, %v2141
        %v2254 = vmax.f32 %v2226, %v2142
        %v2255 = vmax.f32 %v2227, %v2143
        %v2256 = vmax.f32 %v2228, %v2144
        %v2257 = vmax.f32 %v2229, %v2145
        %v2258 = vmax.f32 %v2230, %v2146
        %v2259 = vmax.f32 %v2231, %v2147
        %v2260 = vmax.f32 %v2232, %v2148
        %v2261 = vmax.f32 %v2233, %v2149
        %v2262 = vmax.f32 %v2234, %v2150
        %v2263 = vmax.f32 %v2235, %v2151
        %v2264 = vmax.f32 %v2236, %v2152
        %v2265 = vmax.f32 %v2237, %v2153
        %v2266 = vmax.f32 %v2238, %v2154
        %v2267 = vmax.f32 %v2239, %v2155
        %v2268 = vmax.f32 %v2240, %v2156
        %v2269 = vmax.f32 %v2241, %v2157
        %v2270 = vmax.f32 %v2242, %v2158
        %v2271 = vmax.f32 %v2243, %v2159
        %v2272 = vmax.f32 %v2244, %v2160
        %v2273 = vmax.f32 %v2245, %v2161
        %v2274 = vmax.f32 %v2246, %v2162
        %v2275 = vmax.f32 %v2247, %v2163
        %v2276 = vmax.f32 %v2248, %v2164
        %v2277 = vmax.f32 %v2249, %v2165
        %v2278 = vmax.f32 %v2250, %v2166
        %v2311 = vrot.slane %v2225, 6
        %v2312 = vrot.slane %v2226, 6
        %v2313 = vsel %vm995, %v2311, %v2312
        %v2314 = vrot.slane %v2253, 6
        %v2315 = vrot.slane %v2254, 6
        %v2316 = vsel %vm995, %v2314, %v2315
        %v2317 = vrot.slane %v2255, 6
        %v2318 = vrot.slane %v2256, 6
        %v2319 = vsel %vm995, %v2317, %v2318
        %v2320 = vrot.slane %v2257, 6
        %v2321 = vrot.slane %v2258, 6
        %v2322 = vsel %vm995, %v2320, %v2321
        %v2323 = vrot.slane %v2259, 6
        %v2324 = vrot.slane %v2260, 6
        %v2325 = vsel %vm995, %v2323, %v2324
        %v2326 = vrot.slane %v2261, 6
        %v2327 = vrot.slane %v2262, 6
        %v2328 = vsel %vm995, %v2326, %v2327
        %v2329 = vrot.slane %v2263, 6
        %v2330 = vrot.slane %v2264, 6
        %v2331 = vsel %vm995, %v2329, %v2330
        %v2332 = vrot.slane %v2265, 6
        %v2333 = vrot.slane %v2266, 6
        %v2334 = vsel %vm995, %v2332, %v2333
        %v2335 = vrot.slane %v2267, 6
        %v2336 = vrot.slane %v2268, 6
        %v2337 = vsel %vm995, %v2335, %v2336
        %v2338 = vrot.slane %v2269, 6
        %v2339 = vrot.slane %v2270, 6
        %v2340 = vsel %vm995, %v2338, %v2339
        %v2341 = vrot.slane %v2271, 6
        %v2342 = vrot.slane %v2272, 6
        %v2343 = vsel %vm995, %v2341, %v2342
        %v2344 = vrot.slane %v2273, 6
        %v2345 = vrot.slane %v2274, 6
        %v2346 = vsel %vm995, %v2344, %v2345
        %v2347 = vrot.slane %v2275, 6
        %v2348 = vrot.slane %v2276, 6
        %v2349 = vsel %vm995, %v2347, %v2348
        %v2350 = vrot.slane %v2277, 6
        %v2351 = vrot.slane %v2278, 6
        %v2352 = vsel %vm995, %v2350, %v2351
        %v2353 = vrot.slane %v2251, 6
        %v2354 = vrot.slane %v2252, 6
        %v2355 = vsel %vm995, %v2353, %v2354
        %v2356 = vrot.slane %v2223, 6
        %v2357 = vrot.slane %v2224, 6
        %v2358 = vsel %vm995, %v2356, %v2357
        %v2391 = vsel %vm995, -inf, %v2311
        %v2392 = vsel %vm995, -inf, %v2314
        %v2393 = vsel %vm995, -inf, %v2317
        %v2394 = vsel %vm995, -inf, %v2320
        %v2395 = vsel %vm995, -inf, %v2323
        %v2396 = vsel %vm995, -inf, %v2326
        %v2397 = vsel %vm995, -inf, %v2329
        %v2398 = vsel %vm995, -inf, %v2332
        %v2399 = vsel %vm995, -inf, %v2335
        %v2400 = vsel %vm995, -inf, %v2338
        %v2401 = vsel %vm995, -inf, %v2341
        %v2402 = vsel %vm995, -inf, %v2344
        %v2403 = vsel %vm995, -inf, %v2347
        %v2404 = vsel %vm995, -inf, %v2350
        %v2405 = vsel %vm995, -inf, %v2353
        %v2406 = vsel %vm995, -inf, %v2356
        %v2407 = vmax.f32 %v2225, %v2391
        %v2408 = vmax.f32 %v2226, %v2313
        %v2409 = vmax.f32 %v2253, %v2392
        %v2410 = vmax.f32 %v2254, %v2316
        %v2411 = vmax.f32 %v2255, %v2393
        %v2412 = vmax.f32 %v2256, %v2319
        %v2413 = vmax.f32 %v2257, %v2394
        %v2414 = vmax.f32 %v2258, %v2322
        %v2415 = vmax.f32 %v2259, %v2395
        %v2416 = vmax.f32 %v2260, %v2325
        %v2417 = vmax.f32 %v2261, %v2396
        %v2418 = vmax.f32 %v2262, %v2328
        %v2419 = vmax.f32 %v2263, %v2397
        %v2420 = vmax.f32 %v2264, %v2331
        %v2421 = vmax.f32 %v2265, %v2398
        %v2422 = vmax.f32 %v2266, %v2334
        %v2423 = vmax.f32 %v2267, %v2399
        %v2424 = vmax.f32 %v2268, %v2337
        %v2425 = vmax.f32 %v2269, %v2400
        %v2426 = vmax.f32 %v2270, %v2340
        %v2427 = vmax.f32 %v2271, %v2401
        %v2428 = vmax.f32 %v2272, %v2343
        %v2429 = vmax.f32 %v2273, %v2402
        %v2430 = vmax.f32 %v2274, %v2346
        %v2431 = vmax.f32 %v2275, %v2403
        %v2432 = vmax.f32 %v2276, %v2349
        %v2433 = vmax.f32 %v2277, %v2404
        %v2434 = vmax.f32 %v2278, %v2352
        %v2435 = vmax.f32 %v2251, %v2405
        %v2436 = vmax.f32 %v2252, %v2355
        %v2437 = vmax.f32 %v2223, %v2406
        %v2438 = vmax.f32 %v2224, %v2358
        %v2439 = vrot.slane %v2225, 7
        %v2440 = vrot.slane %v2226, 7
        %v2441 = vsel %vm1124, %v2439, %v2440
        %v2442 = vrot.slane %v2253, 7
        %v2443 = vrot.slane %v2254, 7
        %v2444 = vsel %vm1124, %v2442, %v2443
        %v2445 = vrot.slane %v2255, 7
        %v2446 = vrot.slane %v2256, 7
        %v2447 = vsel %vm1124, %v2445, %v2446
        %v2448 = vrot.slane %v2257, 7
        %v2449 = vrot.slane %v2258, 7
        %v2450 = vsel %vm1124, %v2448, %v2449
        %v2451 = vrot.slane %v2259, 7
        %v2452 = vrot.slane %v2260, 7
        %v2453 = vsel %vm1124, %v2451, %v2452
        %v2454 = vrot.slane %v2261, 7
        %v2455 = vrot.slane %v2262, 7
        %v2456 = vsel %vm1124, %v2454, %v2455
        %v2457 = vrot.slane %v2263, 7
        %v2458 = vrot.slane %v2264, 7
        %v2459 = vsel %vm1124, %v2457, %v2458
        %v2460 = vrot.slane %v2265, 7
        %v2461 = vrot.slane %v2266, 7
        %v2462 = vsel %vm1124, %v2460, %v2461
        %v2463 = vrot.slane %v2267, 7
        %v2464 = vrot.slane %v2268, 7
        %v2465 = vsel %vm1124, %v2463, %v2464
        %v2466 = vrot.slane %v2269, 7
        %v2467 = vrot.slane %v2270, 7
        %v2468 = vsel %vm1124, %v2466, %v2467
        %v2469 = vrot.slane %v2271, 7
        %v2470 = vrot.slane %v2272, 7
        %v2471 = vsel %vm1124, %v2469, %v2470
        %v2472 = vrot.slane %v2273, 7
        %v2473 = vrot.slane %v2274, 7
        %v2474 = vsel %vm1124, %v2472, %v2473
        %v2475 = vrot.slane %v2275, 7
        %v2476 = vrot.slane %v2276, 7
        %v2477 = vsel %vm1124, %v2475, %v2476
        %v2478 = vrot.slane %v2277, 7
        %v2479 = vrot.slane %v2278, 7
        %v2480 = vsel %vm1124, %v2478, %v2479
        %v2481 = vrot.slane %v2251, 7
        %v2482 = vrot.slane %v2252, 7
        %v2483 = vsel %vm1124, %v2481, %v2482
        %v2484 = vrot.slane %v2223, 7
        %v2485 = vrot.slane %v2224, 7
        %v2486 = vsel %vm1124, %v2484, %v2485
        %v2519 = vsel %vm1124, -inf, %v2439
        %v2520 = vsel %vm1124, -inf, %v2442
        %v2521 = vsel %vm1124, -inf, %v2445
        %v2522 = vsel %vm1124, -inf, %v2448
        %v2523 = vsel %vm1124, -inf, %v2451
        %v2524 = vsel %vm1124, -inf, %v2454
        %v2525 = vsel %vm1124, -inf, %v2457
        %v2526 = vsel %vm1124, -inf, %v2460
        %v2527 = vsel %vm1124, -inf, %v2463
        %v2528 = vsel %vm1124, -inf, %v2466
        %v2529 = vsel %vm1124, -inf, %v2469
        %v2530 = vsel %vm1124, -inf, %v2472
        %v2531 = vsel %vm1124, -inf, %v2475
        %v2532 = vsel %vm1124, -inf, %v2478
        %v2533 = vsel %vm1124, -inf, %v2481
        %v2534 = vsel %vm1124, -inf, %v2484
        %v2535 = vmax.f32 %v2407, %v2519
        %v2536 = vmax.f32 %v2408, %v2441
        %v2537 = vmax.f32 %v2409, %v2520
        %v2538 = vmax.f32 %v2410, %v2444
        %v2539 = vmax.f32 %v2411, %v2521
        %v2540 = vmax.f32 %v2412, %v2447
        %v2541 = vmax.f32 %v2413, %v2522
        %v2542 = vmax.f32 %v2414, %v2450
        %v2543 = vmax.f32 %v2415, %v2523
        %v2544 = vmax.f32 %v2416, %v2453
        %v2545 = vmax.f32 %v2417, %v2524
        %v2546 = vmax.f32 %v2418, %v2456
        %v2547 = vmax.f32 %v2419, %v2525
        %v2548 = vmax.f32 %v2420, %v2459
        %v2549 = vmax.f32 %v2421, %v2526
        %v2550 = vmax.f32 %v2422, %v2462
        %v2551 = vmax.f32 %v2423, %v2527
        %v2552 = vmax.f32 %v2424, %v2465
        %v2553 = vmax.f32 %v2425, %v2528
        %v2554 = vmax.f32 %v2426, %v2468
        %v2555 = vmax.f32 %v2427, %v2529
        %v2556 = vmax.f32 %v2428, %v2471
        %v2557 = vmax.f32 %v2429, %v2530
        %v2558 = vmax.f32 %v2430, %v2474
        %v2559 = vmax.f32 %v2431, %v2531
        %v2560 = vmax.f32 %v2432, %v2477
        %v2561 = vmax.f32 %v2433, %v2532
        %v2562 = vmax.f32 %v2434, %v2480
        %v2563 = vmax.f32 %v2435, %v2533
        %v2564 = vmax.f32 %v2436, %v2483
        %v2565 = vmax.f32 %v2437, %v2534
        %v2566 = vmax.f32 %v2438, %v2486
        %v2567 = vrot.slane %v2225, 1
        %v2568 = vrot.slane %v2226, 1
        %v2569 = vsel %vm1253, %v2567, %v2568
        %v2570 = vrot.slane %v2253, 1
        %v2571 = vrot.slane %v2254, 1
        %v2572 = vsel %vm1253, %v2570, %v2571
        %v2573 = vrot.slane %v2255, 1
        %v2574 = vrot.slane %v2256, 1
        %v2575 = vsel %vm1253, %v2573, %v2574
        %v2576 = vrot.slane %v2257, 1
        %v2577 = vrot.slane %v2258, 1
        %v2578 = vsel %vm1253, %v2576, %v2577
        %v2579 = vrot.slane %v2259, 1
        %v2580 = vrot.slane %v2260, 1
        %v2581 = vsel %vm1253, %v2579, %v2580
        %v2582 = vrot.slane %v2261, 1
        %v2583 = vrot.slane %v2262, 1
        %v2584 = vsel %vm1253, %v2582, %v2583
        %v2585 = vrot.slane %v2263, 1
        %v2586 = vrot.slane %v2264, 1
        %v2587 = vsel %vm1253, %v2585, %v2586
        %v2588 = vrot.slane %v2265, 1
        %v2589 = vrot.slane %v2266, 1
        %v2590 = vsel %vm1253, %v2588, %v2589
        %v2591 = vrot.slane %v2267, 1
        %v2592 = vrot.slane %v2268, 1
        %v2593 = vsel %vm1253, %v2591, %v2592
        %v2594 = vrot.slane %v2269, 1
        %v2595 = vrot.slane %v2270, 1
        %v2596 = vsel %vm1253, %v2594, %v2595
        %v2597 = vrot.slane %v2271, 1
        %v2598 = vrot.slane %v2272, 1
        %v2599 = vsel %vm1253, %v2597, %v2598
        %v2600 = vrot.slane %v2273, 1
        %v2601 = vrot.slane %v2274, 1
        %v2602 = vsel %vm1253, %v2600, %v2601
        %v2603 = vrot.slane %v2275, 1
        %v2604 = vrot.slane %v2276, 1
        %v2605 = vsel %vm1253, %v2603, %v2604
        %v2606 = vrot.slane %v2277, 1
        %v2607 = vrot.slane %v2278, 1
        %v2608 = vsel %vm1253, %v2606, %v2607
        %v2609 = vrot.slane %v2251, 1
        %v2610 = vrot.slane %v2252, 1
        %v2611 = vsel %vm1253, %v2609, %v2610
        %v2612 = vrot.slane %v2223, 1
        %v2613 = vrot.slane %v2224, 1
        %v2614 = vsel %vm1253, %v2612, %v2613
        %v2647 = vsel %vm1253, %v2568, -inf
        %v2648 = vsel %vm1253, %v2571, -inf
        %v2649 = vsel %vm1253, %v2574, -inf
        %v2650 = vsel %vm1253, %v2577, -inf
        %v2651 = vsel %vm1253, %v2580, -inf
        %v2652 = vsel %vm1253, %v2583, -inf
        %v2653 = vsel %vm1253, %v2586, -inf
        %v2654 = vsel %vm1253, %v2589, -inf
        %v2655 = vsel %vm1253, %v2592, -inf
        %v2656 = vsel %vm1253, %v2595, -inf
        %v2657 = vsel %vm1253, %v2598, -inf
        %v2658 = vsel %vm1253, %v2601, -inf
        %v2659 = vsel %vm1253, %v2604, -inf
        %v2660 = vsel %vm1253, %v2607, -inf
        %v2661 = vsel %vm1253, %v2610, -inf
        %v2662 = vsel %vm1253, %v2613, -inf
        %v2663 = vmax.f32 %v2535, %v2569
        %v2664 = vmax.f32 %v2536, %v2647
        %v2665 = vmax.f32 %v2537, %v2572
        %v2666 = vmax.f32 %v2538, %v2648
        %v2667 = vmax.f32 %v2539, %v2575
        %v2668 = vmax.f32 %v2540, %v2649
        %v2669 = vmax.f32 %v2541, %v2578
        %v2670 = vmax.f32 %v2542, %v2650
        %v2671 = vmax.f32 %v2543, %v2581
        %v2672 = vmax.f32 %v2544, %v2651
        %v2673 = vmax.f32 %v2545, %v2584
        %v2674 = vmax.f32 %v2546, %v2652
        %v2675 = vmax.f32 %v2547, %v2587
        %v2676 = vmax.f32 %v2548, %v2653
        %v2677 = vmax.f32 %v2549, %v2590
        %v2678 = vmax.f32 %v2550, %v2654
        %v2679 = vmax.f32 %v2551, %v2593
        %v2680 = vmax.f32 %v2552, %v2655
        %v2681 = vmax.f32 %v2553, %v2596
        %v2682 = vmax.f32 %v2554, %v2656
        %v2683 = vmax.f32 %v2555, %v2599
        %v2684 = vmax.f32 %v2556, %v2657
        %v2685 = vmax.f32 %v2557, %v2602
        %v2686 = vmax.f32 %v2558, %v2658
        %v2687 = vmax.f32 %v2559, %v2605
        %v2688 = vmax.f32 %v2560, %v2659
        %v2689 = vmax.f32 %v2561, %v2608
        %v2690 = vmax.f32 %v2562, %v2660
        %v2691 = vmax.f32 %v2563, %v2611
        %v2692 = vmax.f32 %v2564, %v2661
        %v2693 = vmax.f32 %v2565, %v2614
        %v2694 = vmax.f32 %v2566, %v2662
        %v2695 = vrot.slane %v2225, 2
        %v2696 = vrot.slane %v2226, 2
        %v2697 = vsel %vm1382, %v2695, %v2696
        %v2698 = vrot.slane %v2253, 2
        %v2699 = vrot.slane %v2254, 2
        %v2700 = vsel %vm1382, %v2698, %v2699
        %v2701 = vrot.slane %v2255, 2
        %v2702 = vrot.slane %v2256, 2
        %v2703 = vsel %vm1382, %v2701, %v2702
        %v2704 = vrot.slane %v2257, 2
        %v2705 = vrot.slane %v2258, 2
        %v2706 = vsel %vm1382, %v2704, %v2705
        %v2707 = vrot.slane %v2259, 2
        %v2708 = vrot.slane %v2260, 2
        %v2709 = vsel %vm1382, %v2707, %v2708
        %v2710 = vrot.slane %v2261, 2
        %v2711 = vrot.slane %v2262, 2
        %v2712 = vsel %vm1382, %v2710, %v2711
        %v2713 = vrot.slane %v2263, 2
        %v2714 = vrot.slane %v2264, 2
        %v2715 = vsel %vm1382, %v2713, %v2714
        %v2716 = vrot.slane %v2265, 2
        %v2717 = vrot.slane %v2266, 2
        %v2718 = vsel %vm1382, %v2716, %v2717
        %v2719 = vrot.slane %v2267, 2
        %v2720 = vrot.slane %v2268, 2
        %v2721 = vsel %vm1382, %v2719, %v2720
        %v2722 = vrot.slane %v2269, 2
        %v2723 = vrot.slane %v2270, 2
        %v2724 = vsel %vm1382, %v2722, %v2723
        %v2725 = vrot.slane %v2271, 2
        %v2726 = vrot.slane %v2272, 2
        %v2727 = vsel %vm1382, %v2725, %v2726
        %v2728 = vrot.slane %v2273, 2
        %v2729 = vrot.slane %v2274, 2
        %v2730 = vsel %vm1382, %v2728, %v2729
        %v2731 = vrot.slane %v2275, 2
        %v2732 = vrot.slane %v2276, 2
        %v2733 = vsel %vm1382, %v2731, %v2732
        %v2734 = vrot.slane %v2277, 2
        %v2735 = vrot.slane %v2278, 2
        %v2736 = vsel %vm1382, %v2734, %v2735
        %v2737 = vrot.slane %v2251, 2
        %v2738 = vrot.slane %v2252, 2
        %v2739 = vsel %vm1382, %v2737, %v2738
        %v2740 = vrot.slane %v2223, 2
        %v2741 = vrot.slane %v2224, 2
        %v2742 = vsel %vm1382, %v2740, %v2741
        %v2775 = vsel %vm1382, %v2696, -inf
        %v2776 = vsel %vm1382, %v2699, -inf
        %v2777 = vsel %vm1382, %v2702, -inf
        %v2778 = vsel %vm1382, %v2705, -inf
        %v2779 = vsel %vm1382, %v2708, -inf
        %v2780 = vsel %vm1382, %v2711, -inf
        %v2781 = vsel %vm1382, %v2714, -inf
        %v2782 = vsel %vm1382, %v2717, -inf
        %v2783 = vsel %vm1382, %v2720, -inf
        %v2784 = vsel %vm1382, %v2723, -inf
        %v2785 = vsel %vm1382, %v2726, -inf
        %v2786 = vsel %vm1382, %v2729, -inf
        %v2787 = vsel %vm1382, %v2732, -inf
        %v2788 = vsel %vm1382, %v2735, -inf
        %v2789 = vsel %vm1382, %v2738, -inf
        %v2790 = vsel %vm1382, %v2741, -inf
        %v2791 = vmax.f32 %v2663, %v2697
        %v2792 = vmax.f32 %v2664, %v2775
        %v2793 = vmax.f32 %v2665, %v2700
        %v2794 = vmax.f32 %v2666, %v2776
        %v2795 = vmax.f32 %v2667, %v2703
        %v2796 = vmax.f32 %v2668, %v2777
        %v2797 = vmax.f32 %v2669, %v2706
        %v2798 = vmax.f32 %v2670, %v2778
        %v2799 = vmax.f32 %v2671, %v2709
        %v2800 = vmax.f32 %v2672, %v2779
        %v2801 = vmax.f32 %v2673, %v2712
        %v2802 = vmax.f32 %v2674, %v2780
        %v2803 = vmax.f32 %v2675, %v2715
        %v2804 = vmax.f32 %v2676, %v2781
        %v2805 = vmax.f32 %v2677, %v2718
        %v2806 = vmax.f32 %v2678, %v2782
        %v2807 = vmax.f32 %v2679, %v2721
        %v2808 = vmax.f32 %v2680, %v2783
        %v2809 = vmax.f32 %v2681, %v2724
        %v2810 = vmax.f32 %v2682, %v2784
        %v2811 = vmax.f32 %v2683, %v2727
        %v2812 = vmax.f32 %v2684, %v2785
        %v2813 = vmax.f32 %v2685, %v2730
        %v2814 = vmax.f32 %v2686, %v2786
        %v2815 = vmax.f32 %v2687, %v2733
        %v2816 = vmax.f32 %v2688, %v2787
        %v2817 = vmax.f32 %v2689, %v2736
        %v2818 = vmax.f32 %v2690, %v2788
        %v2819 = vmax.f32 %v2691, %v2739
        %v2820 = vmax.f32 %v2692, %v2789
        %v2821 = vmax.f32 %v2693, %v2742
        %v2822 = vmax.f32 %v2694, %v2790
        %v2823 = vld [vmem:[#allocation5] sm:$0xff]
        %v2824 = vld [vmem:[#allocation5 + $0x8] sm:$0xff]
        %v2825 = vld [vmem:[#allocation5 + $0x10] sm:$0xff]
        %v2826 = vld [vmem:[#allocation5 + $0x18] sm:$0xff]
        %s2827 = scalar_lea.vmem [#allocation5], 32
        %v2828 = vld [vmem:[%s2827] sm:$0xff]
        %v2829 = vld [vmem:[%s2827 + $0x8] sm:$0xff]
        %v2830 = vld [vmem:[%s2827 + $0x10] sm:$0xff]
        %v2831 = vld [vmem:[%s2827 + $0x18] sm:$0xff]
        %vm2832 = vcmask 261120
        %v2834 = vsel %vm2832, %v1479, 0
        %v2837 = vsel %vm2832, %v1480, 0
        %v2840 = vsel %vm2832, %v1481, 0
        %v2843 = vsel %vm2832, %v1482, 0
        %v2846 = vsel %vm2832, %v1483, 0
        %v2849 = vsel %vm2832, %v1484, 0
        %v2852 = vsel %vm2832, %v1485, 0
        %v2855 = vsel %vm2832, %v1486, 0
        %v2858 = vsel %vm2832, %v1487, 0
        %v2861 = vsel %vm2832, %v1488, 0
        %v2864 = vsel %vm2832, %v1489, 0
        %v2867 = vsel %vm2832, %v1490, 0
        %v2870 = vsel %vm2832, %v1491, 0
        %v2873 = vsel %vm2832, %v1492, 0
        %v2876 = vsel %vm2832, %v1493, 0
        %v2879 = vsel %vm2832, %v1494, 0
        %v2882 = vsel %vm2832, %v1495, 0
        %v2885 = vsel %vm2832, %v1496, 0
        %v2888 = vsel %vm2832, %v1497, 0
        %v2891 = vsel %vm2832, %v1498, 0
        %v2894 = vsel %vm2832, %v1499, 0
        %v2897 = vsel %vm2832, %v1500, 0
        %v2900 = vsel %vm2832, %v1501, 0
        %v2903 = vsel %vm2832, %v1502, 0
        %v2906 = vsel %vm2832, %v1503, 0
        %v2909 = vsel %vm2832, %v1504, 0
        %v2912 = vsel %vm2832, %v1505, 0
        %v2915 = vsel %vm2832, %v1506, 0
        %v2918 = vsel %vm2832, %v1507, 0
        %v2921 = vsel %vm2832, %v1508, 0
        %v2924 = vsel %vm2832, %v1509, 0
        %v2927 = vsel %vm2832, %v1510, 0
        %2929 = vmatprep.subr.mxu0 0.0
        %2930 = vmatpush1.msra.mxu0 %v2828
        %2931 = vmatprep.subr.mxu0 0.0
        %2932 = vmatpush1.msra.mxu0 %v2829
        %2933 = vmatprep.subr.mxu0 0.0
        %2934 = vmatpush1.msra.mxu0 %v2830
        %2935 = vmatprep.subr.mxu0 0.0
        %2936 = vmatpush1.msra.mxu0 %v2831
        %2937 = vmatprep.subr.mxu0 0.0
        %2938 = vmatpush1.msra.mxu0 0.0
        %2939 = vmatprep.subr.mxu0 0.0
        %2940 = vmatpush1.msra.mxu0 0.0
        %2941 = vmatprep.subr.mxu0 0.0
        %2942 = vmatpush1.msra.mxu0 0.0
        %2943 = vmatprep.subr.mxu0 0.0
        %2944 = vmatpush1.msra.mxu0 0.0
        %2945 = vmatprep.subr.mxu0 0.0
        %2946 = vmatpush1.msra.mxu0 0.0
        %2947 = vmatprep.subr.mxu0 0.0
        %2948 = vmatpush1.msra.mxu0 0.0
        %2949 = vmatprep.subr.mxu0 0.0
        %2950 = vmatpush1.msra.mxu0 0.0
        %2951 = vmatprep.subr.mxu0 0.0
        %2952 = vmatpush1.msra.mxu0 0.0
        %2953 = vmatprep.subr.mxu0 0.0
        %2954 = vmatpush1.msra.mxu0 0.0
        %2955 = vmatprep.subr.mxu0 0.0
        %2956 = vmatpush1.msra.mxu0 0.0
        %2957 = vmatprep.subr.mxu0 0.0
        %2958 = vmatpush1.msra.mxu0 0.0
        %2959 = vmatprep.subr.mxu0 0.0
        %2960 = vmatpush1.msra.mxu0 0.0
        %2961 = vmatprep.subr.mxu0 0.0
        %2962 = vmatpush1.msra.mxu0 0.0
        %2963 = vmatprep.subr.mxu0 0.0
        %2964 = vmatpush1.msra.mxu0 0.0
        %2965 = vmatprep.subr.mxu0 0.0
        %2966 = vmatpush1.msra.mxu0 0.0
        %2967 = vmatprep.subr.mxu0 0.0
        %2968 = vmatpush1.msra.mxu0 0.0
        %2969 = vmatprep.subr.mxu0 0.0
        %2970 = vmatpush1.msra.mxu0 0.0
        %2971 = vmatprep.subr.mxu0 0.0
        %2972 = vmatpush1.msra.mxu0 0.0
        %2973 = vmatprep.subr.mxu0 0.0
        %2974 = vmatpush1.msra.mxu0 0.0
        %2975 = vmatprep.subr.mxu0 0.0
        %2976 = vmatpush1.msra.mxu0 0.0
        %2977 = vmatprep.subr.mxu0 0.0
        %2978 = vmatpush1.msra.mxu0 0.0
        %2979 = vmatprep.subr.mxu0 0.0
        %2980 = vmatpush1.msra.mxu0 0.0
        %2981 = vmatprep.subr.mxu0 0.0
        %2982 = vmatpush1.msra.mxu0 0.0
        %2983 = vmatprep.subr.mxu0 0.0
        %2984 = vmatpush1.msra.mxu0 0.0
        %2985 = vmatprep.subr.mxu0 0.0
        %2986 = vmatpush1.msra.mxu0 0.0
        %2987 = vmatprep.subr.mxu0 0.0
        %2988 = vmatpush1.msra.mxu0 0.0
        %2989 = vmatprep.subr.mxu0 0.0
        %2990 = vmatpush1.msra.mxu0 0.0
        %2991 = vmatprep.subr.mxu0 0.0
        %2992 = vmatpush1.msra.mxu0 0.0
        %2993 = vmatprep.mubr.f32.mxu0 0.0
        %2994 = vmatmul.mubr.f32.gmra.mrb[0].mxu0 %v2834
        %v2995 = vpop.f32.mrb[0].mxu0
        %v2996 = vadd.f32 0.0, %v2995
        %v2997 = vpop.f32.mrb[0].mxu0
        %2998 = vmatprep.mubr.f32.mxu0 0.0
        %2999 = vmatmul.mubr.f32.gmra.mrb[0].mxu0 %v2837
        %v3000 = vpop.f32.mrb[0].mxu0
        %v3001 = vadd.f32 0.0, %v3000
        %v3002 = vpop.f32.mrb[0].mxu0
        %3003 = vmatprep.mubr.f32.mxu0 0.0
        %3004 = vmatmul.mubr.f32.gmra.mrb[0].mxu0 %v2840
        %v3005 = vpop.f32.mrb[0].mxu0
        %v3006 = vadd.f32 0.0, %v3005
        %v3007 = vpop.f32.mrb[0].mxu0
        %3008 = vmatprep.mubr.f32.mxu0 0.0
        %3009 = vmatmul.mubr.f32.gmra.mrb[0].mxu0 %v2843
        %v3010 = vpop.f32.mrb[0].mxu0
        %v3011 = vadd.f32 0.0, %v3010
        %v3012 = vpop.f32.mrb[0].mxu0
        %3013 = vmatprep.mubr.f32.mxu0 0.0
        %3014 = vmatmul.mubr.f32.gmra.mrb[0].mxu0 %v2846
        %v3015 = vpop.f32.mrb[0].mxu0
        %v3016 = vadd.f32 0.0, %v3015
        %v3017 = vpop.f32.mrb[0].mxu0
        %3018 = vmatprep.mubr.f32.mxu0 0.0
        %3019 = vmatmul.mubr.f32.gmra.mrb[0].mxu0 %v2849
        %v3020 = vpop.f32.mrb[0].mxu0
        %v3021 = vadd.f32 0.0, %v3020
        %v3022 = vpop.f32.mrb[0].mxu0
        %3023 = vmatprep.mubr.f32.mxu0 0.0
        %3024 = vmatmul.mubr.f32.gmra.mrb[0].mxu0 %v2852
        %v3025 = vpop.f32.mrb[0].mxu0
        %v3026 = vadd.f32 0.0, %v3025
        %v3027 = vpop.f32.mrb[0].mxu0
        %3028 = vmatprep.mubr.f32.mxu0 0.0
        %3029 = vmatmul.mubr.f32.gmra.mrb[0].mxu0 %v2855
        %v3030 = vpop.f32.mrb[0].mxu0
        %v3031 = vadd.f32 0.0, %v3030
        %v3032 = vpop.f32.mrb[0].mxu0
        %3033 = vmatprep.mubr.f32.mxu0 0.0
        %3034 = vmatmul.mubr.f32.gmra.mrb[0].mxu0 %v2858
        %v3035 = vpop.f32.mrb[0].mxu0
        %v3036 = vadd.f32 0.0, %v3035
        %v3037 = vpop.f32.mrb[0].mxu0
        %3038 = vmatprep.mubr.f32.mxu0 0.0
        %3039 = vmatmul.mubr.f32.gmra.mrb[0].mxu0 %v2861
        %v3040 = vpop.f32.mrb[0].mxu0
        %v3041 = vadd.f32 0.0, %v3040
        %v3042 = vpop.f32.mrb[0].mxu0
        %3043 = vmatprep.mubr.f32.mxu0 0.0
        %3044 = vmatmul.mubr.f32.gmra.mrb[0].mxu0 %v2864
        %v3045 = vpop.f32.mrb[0].mxu0
        %v3046 = vadd.f32 0.0, %v3045
        %v3047 = vpop.f32.mrb[0].mxu0
        %3048 = vmatprep.mubr.f32.mxu0 0.0
        %3049 = vmatmul.mubr.f32.gmra.mrb[0].mxu0 %v2867
        %v3050 = vpop.f32.mrb[0].mxu0
        %v3051 = vadd.f32 0.0, %v3050
        %v3052 = vpop.f32.mrb[0].mxu0
        %3053 = vmatprep.mubr.f32.mxu0 0.0
        %3054 = vmatmul.mubr.f32.gmra.mrb[0].mxu0 %v2870
        %v3055 = vpop.f32.mrb[0].mxu0
        %v3056 = vadd.f32 0.0, %v3055
        %v3057 = vpop.f32.mrb[0].mxu0
        %3058 = vmatprep.mubr.f32.mxu0 0.0
        %3059 = vmatmul.mubr.f32.gmra.mrb[0].mxu0 %v2873
        %v3060 = vpop.f32.mrb[0].mxu0
        %v3061 = vadd.f32 0.0, %v3060
        %v3062 = vpop.f32.mrb[0].mxu0
        %3063 = vmatprep.mubr.f32.mxu0 0.0
        %3064 = vmatmul.mubr.f32.gmra.mrb[0].mxu0 %v2876
        %v3065 = vpop.f32.mrb[0].mxu0
        %v3066 = vadd.f32 0.0, %v3065
        %v3067 = vpop.f32.mrb[0].mxu0
        %3068 = vmatprep.mubr.f32.mxu0 0.0
        %3069 = vmatmul.mubr.f32.gmra.mrb[0].mxu0 %v2879
        %v3070 = vpop.f32.mrb[0].mxu0
        %v3071 = vadd.f32 0.0, %v3070
        %v3072 = vpop.f32.mrb[0].mxu0
        %3073 = vmatprep.mubr.f32.mxu0 0.0
        %3074 = vmatmul.mubr.f32.gmra.mrb[0].mxu0 %v2882
        %v3075 = vpop.f32.mrb[0].mxu0
        %v3076 = vadd.f32 0.0, %v3075
        %v3077 = vpop.f32.mrb[0].mxu0
        %3078 = vmatprep.mubr.f32.mxu0 0.0
        %3079 = vmatmul.mubr.f32.gmra.mrb[0].mxu0 %v2885
        %v3080 = vpop.f32.mrb[0].mxu0
        %v3081 = vadd.f32 0.0, %v3080
        %v3082 = vpop.f32.mrb[0].mxu0
        %3083 = vmatprep.mubr.f32.mxu0 0.0
        %3084 = vmatmul.mubr.f32.gmra.mrb[0].mxu0 %v2888
        %v3085 = vpop.f32.mrb[0].mxu0
        %v3086 = vadd.f32 0.0, %v3085
        %v3087 = vpop.f32.mrb[0].mxu0
        %3088 = vmatprep.mubr.f32.mxu0 0.0
        %3089 = vmatmul.mubr.f32.gmra.mrb[0].mxu0 %v2891
        %v3090 = vpop.f32.mrb[0].mxu0
        %v3091 = vadd.f32 0.0, %v3090
        %v3092 = vpop.f32.mrb[0].mxu0
        %3093 = vmatprep.mubr.f32.mxu0 0.0
        %3094 = vmatmul.mubr.f32.gmra.mrb[0].mxu0 %v2894
        %v3095 = vpop.f32.mrb[0].mxu0
        %v3096 = vadd.f32 0.0, %v3095
        %v3097 = vpop.f32.mrb[0].mxu0
        %3098 = vmatprep.mubr.f32.mxu0 0.0
        %3099 = vmatmul.mubr.f32.gmra.mrb[0].mxu0 %v2897
        %v3100 = vpop.f32.mrb[0].mxu0
        %v3101 = vadd.f32 0.0, %v3100
        %v3102 = vpop.f32.mrb[0].mxu0
        %3103 = vmatprep.mubr.f32.mxu0 0.0
        %3104 = vmatmul.mubr.f32.gmra.mrb[0].mxu0 %v2900
        %v3105 = vpop.f32.mrb[0].mxu0
        %v3106 = vadd.f32 0.0, %v3105
        %v3107 = vpop.f32.mrb[0].mxu0
        %3108 = vmatprep.mubr.f32.mxu0 0.0
        %3109 = vmatmul.mubr.f32.gmra.mrb[0].mxu0 %v2903
        %v3110 = vpop.f32.mrb[0].mxu0
        %v3111 = vadd.f32 0.0, %v3110
        %v3112 = vpop.f32.mrb[0].mxu0
        %3113 = vmatprep.mubr.f32.mxu0 0.0
        %3114 = vmatmul.mubr.f32.gmra.mrb[0].mxu0 %v2906
        %v3115 = vpop.f32.mrb[0].mxu0
        %v3116 = vadd.f32 0.0, %v3115
        %v3117 = vpop.f32.mrb[0].mxu0
        %3118 = vmatprep.mubr.f32.mxu0 0.0
        %3119 = vmatmul.mubr.f32.gmra.mrb[0].mxu0 %v2909
        %v3120 = vpop.f32.mrb[0].mxu0
        %v3121 = vadd.f32 0.0, %v3120
        %v3122 = vpop.f32.mrb[0].mxu0
        %3123 = vmatprep.mubr.f32.mxu0 0.0
        %3124 = vmatmul.mubr.f32.gmra.mrb[0].mxu0 %v2912
        %v3125 = vpop.f32.mrb[0].mxu0
        %v3126 = vadd.f32 0.0, %v3125
        %v3127 = vpop.f32.mrb[0].mxu0
        %3128 = vmatprep.mubr.f32.mxu0 0.0
        %3129 = vmatmul.mubr.f32.gmra.mrb[0].mxu0 %v2915
        %v3130 = vpop.f32.mrb[0].mxu0
        %v3131 = vadd.f32 0.0, %v3130
        %v3132 = vpop.f32.mrb[0].mxu0
        %3133 = vmatprep.mubr.f32.mxu0 0.0
        %3134 = vmatmul.mubr.f32.gmra.mrb[0].mxu0 %v2918
        %v3135 = vpop.f32.mrb[0].mxu0
        %v3136 = vadd.f32 0.0, %v3135
        %v3137 = vpop.f32.mrb[0].mxu0
        %3138 = vmatprep.mubr.f32.mxu0 0.0
        %3139 = vmatmul.mubr.f32.gmra.mrb[0].mxu0 %v2921
        %v3140 = vpop.f32.mrb[0].mxu0
        %v3141 = vadd.f32 0.0, %v3140
        %v3142 = vpop.f32.mrb[0].mxu0
        %3143 = vmatprep.mubr.f32.mxu0 0.0
        %3144 = vmatmul.mubr.f32.gmra.mrb[0].mxu0 %v2924
        %v3145 = vpop.f32.mrb[0].mxu0
        %v3146 = vadd.f32 0.0, %v3145
        %v3147 = vpop.f32.mrb[0].mxu0
        %3148 = vmatprep.mubr.f32.mxu0 0.0
        %3149 = vmatmul.mubr.f32.gmra.mrb[0].mxu0 %v2927
        %v3150 = vpop.f32.mrb[0].mxu0
        %v3151 = vadd.f32 0.0, %v3150
        %v3152 = vpop.f32.mrb[0].mxu0
        %3153 = vdwg.mxu0
        %v3155 = vsel %vm2832, %v819, 0
        %v3158 = vsel %vm2832, %v820, 0
        %v3161 = vsel %vm2832, %v821, 0
        %v3164 = vsel %vm2832, %v822, 0
        %v3167 = vsel %vm2832, %v823, 0
        %v3170 = vsel %vm2832, %v824, 0
        %v3173 = vsel %vm2832, %v825, 0
        %v3176 = vsel %vm2832, %v826, 0
        %v3179 = vsel %vm2832, %v827, 0
        %v3182 = vsel %vm2832, %v828, 0
        %v3185 = vsel %vm2832, %v829, 0
        %v3188 = vsel %vm2832, %v830, 0
        %v3191 = vsel %vm2832, %v831, 0
        %v3194 = vsel %vm2832, %v832, 0
        %v3197 = vsel %vm2832, %v833, 0
        %v3200 = vsel %vm2832, %v834, 0
        %v3203 = vsel %vm2832, %v835, 0
        %v3206 = vsel %vm2832, %v836, 0
        %v3209 = vsel %vm2832, %v837, 0
        %v3212 = vsel %vm2832, %v838, 0
        %v3215 = vsel %vm2832, %v839, 0
        %v3218 = vsel %vm2832, %v840, 0
        %v3221 = vsel %vm2832, %v841, 0
        %v3224 = vsel %vm2832, %v842, 0
        %v3227 = vsel %vm2832, %v843, 0
        %v3230 = vsel %vm2832, %v844, 0
        %v3233 = vsel %vm2832, %v845, 0
        %v3236 = vsel %vm2832, %v846, 0
        %v3239 = vsel %vm2832, %v847, 0
        %v3242 = vsel %vm2832, %v848, 0
        %v3245 = vsel %vm2832, %v849, 0
        %v3248 = vsel %vm2832, %v850, 0
        %3250 = vmatprep.subr.mxu0 0.0
        %3251 = vmatpush1.msra.mxu0 %v2823
        %3252 = vmatprep.subr.mxu0 0.0
        %3253 = vmatpush1.msra.mxu0 %v2824
        %3254 = vmatprep.subr.mxu0 0.0
        %3255 = vmatpush1.msra.mxu0 %v2825
        %3256 = vmatprep.subr.mxu0 0.0
        %3257 = vmatpush1.msra.mxu0 %v2826
        %3258 = vmatprep.subr.mxu0 0.0
        %3259 = vmatpush1.msra.mxu0 0.0
        %3260 = vmatprep.subr.mxu0 0.0
        %3261 = vmatpush1.msra.mxu0 0.0
        %3262 = vmatprep.subr.mxu0 0.0
        %3263 = vmatpush1.msra.mxu0 0.0
        %3264 = vmatprep.subr.mxu0 0.0
        %3265 = vmatpush1.msra.mxu0 0.0
        %3266 = vmatprep.subr.mxu0 0.0
        %3267 = vmatpush1.msra.mxu0 0.0
        %3268 = vmatprep.subr.mxu0 0.0
        %3269 = vmatpush1.msra.mxu0 0.0
        %3270 = vmatprep.subr.mxu0 0.0
        %3271 = vmatpush1.msra.mxu0 0.0
        %3272 = vmatprep.subr.mxu0 0.0
        %3273 = vmatpush1.msra.mxu0 0.0
        %3274 = vmatprep.subr.mxu0 0.0
        %3275 = vmatpush1.msra.mxu0 0.0
        %3276 = vmatprep.subr.mxu0 0.0
        %3277 = vmatpush1.msra.mxu0 0.0
        %3278 = vmatprep.subr.mxu0 0.0
        %3279 = vmatpush1.msra.mxu0 0.0
        %3280 = vmatprep.subr.mxu0 0.0
        %3281 = vmatpush1.msra.mxu0 0.0
        %3282 = vmatprep.subr.mxu0 0.0
        %3283 = vmatpush1.msra.mxu0 0.0
        %3284 = vmatprep.subr.mxu0 0.0
        %3285 = vmatpush1.msra.mxu0 0.0
        %3286 = vmatprep.subr.mxu0 0.0
        %3287 = vmatpush1.msra.mxu0 0.0
        %3288 = vmatprep.subr.mxu0 0.0
        %3289 = vmatpush1.msra.mxu0 0.0
        %3290 = vmatprep.subr.mxu0 0.0
        %3291 = vmatpush1.msra.mxu0 0.0
        %3292 = vmatprep.subr.mxu0 0.0
        %3293 = vmatpush1.msra.mxu0 0.0
        %3294 = vmatprep.subr.mxu0 0.0
        %3295 = vmatpush1.msra.mxu0 0.0
        %3296 = vmatprep.subr.mxu0 0.0
        %3297 = vmatpush1.msra.mxu0 0.0
        %3298 = vmatprep.subr.mxu0 0.0
        %3299 = vmatpush1.msra.mxu0 0.0
        %3300 = vmatprep.subr.mxu0 0.0
        %3301 = vmatpush1.msra.mxu0 0.0
        %3302 = vmatprep.subr.mxu0 0.0
        %3303 = vmatpush1.msra.mxu0 0.0
        %3304 = vmatprep.subr.mxu0 0.0
        %3305 = vmatpush1.msra.mxu0 0.0
        %3306 = vmatprep.subr.mxu0 0.0
        %3307 = vmatpush1.msra.mxu0 0.0
        %3308 = vmatprep.subr.mxu0 0.0
        %3309 = vmatpush1.msra.mxu0 0.0
        %3310 = vmatprep.subr.mxu0 0.0
        %3311 = vmatpush1.msra.mxu0 0.0
        %3312 = vmatprep.subr.mxu0 0.0
        %3313 = vmatpush1.msra.mxu0 0.0
        %3314 = vmatprep.mubr.f32.mxu0 0.0
        %3315 = vmatmul.mubr.f32.gmra.mrb[0].mxu0 %v3155
        %v3316 = vpop.f32.mrb[0].mxu0
        %v3317 = vadd.f32 %v2996, %v3316
        %v3318 = vpop.f32.mrb[0].mxu0
        %3319 = vmatprep.mubr.f32.mxu0 0.0
        %3320 = vmatmul.mubr.f32.gmra.mrb[0].mxu0 %v3158
        %v3321 = vpop.f32.mrb[0].mxu0
        %v3322 = vadd.f32 %v3001, %v3321
        %v3323 = vpop.f32.mrb[0].mxu0
        %3324 = vmatprep.mubr.f32.mxu0 0.0
        %3325 = vmatmul.mubr.f32.gmra.mrb[0].mxu0 %v3161
        %v3326 = vpop.f32.mrb[0].mxu0
        %v3327 = vadd.f32 %v3006, %v3326
        %v3328 = vpop.f32.mrb[0].mxu0
        %3329 = vmatprep.mubr.f32.mxu0 0.0
        %3330 = vmatmul.mubr.f32.gmra.mrb[0].mxu0 %v3164
        %v3331 = vpop.f32.mrb[0].mxu0
        %v3332 = vadd.f32 %v3011, %v3331
        %v3333 = vpop.f32.mrb[0].mxu0
        %3334 = vmatprep.mubr.f32.mxu0 0.0
        %3335 = vmatmul.mubr.f32.gmra.mrb[0].mxu0 %v3167
        %v3336 = vpop.f32.mrb[0].mxu0
        %v3337 = vadd.f32 %v3016, %v3336
        %v3338 = vpop.f32.mrb[0].mxu0
        %3339 = vmatprep.mubr.f32.mxu0 0.0
        %3340 = vmatmul.mubr.f32.gmra.mrb[0].mxu0 %v3170
        %v3341 = vpop.f32.mrb[0].mxu0
        %v3342 = vadd.f32 %v3021, %v3341
        %v3343 = vpop.f32.mrb[0].mxu0
        %3344 = vmatprep.mubr.f32.mxu0 0.0
        %3345 = vmatmul.mubr.f32.gmra.mrb[0].mxu0 %v3173
        %v3346 = vpop.f32.mrb[0].mxu0
        %v3347 = vadd.f32 %v3026, %v3346
        %v3348 = vpop.f32.mrb[0].mxu0
        %3349 = vmatprep.mubr.f32.mxu0 0.0
        %3350 = vmatmul.mubr.f32.gmra.mrb[0].mxu0 %v3176
        %v3351 = vpop.f32.mrb[0].mxu0
        %v3352 = vadd.f32 %v3031, %v3351
        %v3353 = vpop.f32.mrb[0].mxu0
        %3354 = vmatprep.mubr.f32.mxu0 0.0
        %3355 = vmatmul.mubr.f32.gmra.mrb[0].mxu0 %v3179
        %v3356 = vpop.f32.mrb[0].mxu0
        %v3357 = vadd.f32 %v3036, %v3356
        %v3358 = vpop.f32.mrb[0].mxu0
        %3359 = vmatprep.mubr.f32.mxu0 0.0
        %3360 = vmatmul.mubr.f32.gmra.mrb[0].mxu0 %v3182
        %v3361 = vpop.f32.mrb[0].mxu0
        %v3362 = vadd.f32 %v3041, %v3361
        %v3363 = vpop.f32.mrb[0].mxu0
        %3364 = vmatprep.mubr.f32.mxu0 0.0
        %3365 = vmatmul.mubr.f32.gmra.mrb[0].mxu0 %v3185
        %v3366 = vpop.f32.mrb[0].mxu0
        %v3367 = vadd.f32 %v3046, %v3366
        %v3368 = vpop.f32.mrb[0].mxu0
        %3369 = vmatprep.mubr.f32.mxu0 0.0
        %3370 = vmatmul.mubr.f32.gmra.mrb[0].mxu0 %v3188
        %v3371 = vpop.f32.mrb[0].mxu0
        %v3372 = vadd.f32 %v3051, %v3371
        %v3373 = vpop.f32.mrb[0].mxu0
        %3374 = vmatprep.mubr.f32.mxu0 0.0
        %3375 = vmatmul.mubr.f32.gmra.mrb[0].mxu0 %v3191
        %v3376 = vpop.f32.mrb[0].mxu0
        %v3377 = vadd.f32 %v3056, %v3376
        %v3378 = vpop.f32.mrb[0].mxu0
        %3379 = vmatprep.mubr.f32.mxu0 0.0
        %3380 = vmatmul.mubr.f32.gmra.mrb[0].mxu0 %v3194
        %v3381 = vpop.f32.mrb[0].mxu0
        %v3382 = vadd.f32 %v3061, %v3381
        %v3383 = vpop.f32.mrb[0].mxu0
        %3384 = vmatprep.mubr.f32.mxu0 0.0
        %3385 = vmatmul.mubr.f32.gmra.mrb[0].mxu0 %v3197
        %v3386 = vpop.f32.mrb[0].mxu0
        %v3387 = vadd.f32 %v3066, %v3386
        %v3388 = vpop.f32.mrb[0].mxu0
        %3389 = vmatprep.mubr.f32.mxu0 0.0
        %3390 = vmatmul.mubr.f32.gmra.mrb[0].mxu0 %v3200
        %v3391 = vpop.f32.mrb[0].mxu0
        %v3392 = vadd.f32 %v3071, %v3391
        %v3393 = vpop.f32.mrb[0].mxu0
        %3394 = vmatprep.mubr.f32.mxu0 0.0
        %3395 = vmatmul.mubr.f32.gmra.mrb[0].mxu0 %v3203
        %v3396 = vpop.f32.mrb[0].mxu0
        %v3397 = vadd.f32 %v3076, %v3396
        %v3398 = vpop.f32.mrb[0].mxu0
        %3399 = vmatprep.mubr.f32.mxu0 0.0
        %3400 = vmatmul.mubr.f32.gmra.mrb[0].mxu0 %v3206
        %v3401 = vpop.f32.mrb[0].mxu0
        %v3402 = vadd.f32 %v3081, %v3401
        %v3403 = vpop.f32.mrb[0].mxu0
        %3404 = vmatprep.mubr.f32.mxu0 0.0
        %3405 = vmatmul.mubr.f32.gmra.mrb[0].mxu0 %v3209
        %v3406 = vpop.f32.mrb[0].mxu0
        %v3407 = vadd.f32 %v3086, %v3406
        %v3408 = vpop.f32.mrb[0].mxu0
        %3409 = vmatprep.mubr.f32.mxu0 0.0
        %3410 = vmatmul.mubr.f32.gmra.mrb[0].mxu0 %v3212
        %v3411 = vpop.f32.mrb[0].mxu0
        %v3412 = vadd.f32 %v3091, %v3411
        %v3413 = vpop.f32.mrb[0].mxu0
        %3414 = vmatprep.mubr.f32.mxu0 0.0
        %3415 = vmatmul.mubr.f32.gmra.mrb[0].mxu0 %v3215
        %v3416 = vpop.f32.mrb[0].mxu0
        %v3417 = vadd.f32 %v3096, %v3416
        %v3418 = vpop.f32.mrb[0].mxu0
        %3419 = vmatprep.mubr.f32.mxu0 0.0
        %3420 = vmatmul.mubr.f32.gmra.mrb[0].mxu0 %v3218
        %v3421 = vpop.f32.mrb[0].mxu0
        %v3422 = vadd.f32 %v3101, %v3421
        %v3423 = vpop.f32.mrb[0].mxu0
        %3424 = vmatprep.mubr.f32.mxu0 0.0
        %3425 = vmatmul.mubr.f32.gmra.mrb[0].mxu0 %v3221
        %v3426 = vpop.f32.mrb[0].mxu0
        %v3427 = vadd.f32 %v3106, %v3426
        %v3428 = vpop.f32.mrb[0].mxu0
        %3429 = vmatprep.mubr.f32.mxu0 0.0
        %3430 = vmatmul.mubr.f32.gmra.mrb[0].mxu0 %v3224
        %v3431 = vpop.f32.mrb[0].mxu0
        %v3432 = vadd.f32 %v3111, %v3431
        %v3433 = vpop.f32.mrb[0].mxu0
        %3434 = vmatprep.mubr.f32.mxu0 0.0
        %3435 = vmatmul.mubr.f32.gmra.mrb[0].mxu0 %v3227
        %v3436 = vpop.f32.mrb[0].mxu0
        %v3437 = vadd.f32 %v3116, %v3436
        %v3438 = vpop.f32.mrb[0].mxu0
        %3439 = vmatprep.mubr.f32.mxu0 0.0
        %3440 = vmatmul.mubr.f32.gmra.mrb[0].mxu0 %v3230
        %v3441 = vpop.f32.mrb[0].mxu0
        %v3442 = vadd.f32 %v3121, %v3441
        %v3443 = vpop.f32.mrb[0].mxu0
        %3444 = vmatprep.mubr.f32.mxu0 0.0
        %3445 = vmatmul.mubr.f32.gmra.mrb[0].mxu0 %v3233
        %v3446 = vpop.f32.mrb[0].mxu0
        %v3447 = vadd.f32 %v3126, %v3446
        %v3448 = vpop.f32.mrb[0].mxu0
        %3449 = vmatprep.mubr.f32.mxu0 0.0
        %3450 = vmatmul.mubr.f32.gmra.mrb[0].mxu0 %v3236
        %v3451 = vpop.f32.mrb[0].mxu0
        %v3452 = vadd.f32 %v3131, %v3451
        %v3453 = vpop.f32.mrb[0].mxu0
        %3454 = vmatprep.mubr.f32.mxu0 0.0
        %3455 = vmatmul.mubr.f32.gmra.mrb[0].mxu0 %v3239
        %v3456 = vpop.f32.mrb[0].mxu0
        %v3457 = vadd.f32 %v3136, %v3456
        %v3458 = vpop.f32.mrb[0].mxu0
        %3459 = vmatprep.mubr.f32.mxu0 0.0
        %3460 = vmatmul.mubr.f32.gmra.mrb[0].mxu0 %v3242
        %v3461 = vpop.f32.mrb[0].mxu0
        %v3462 = vadd.f32 %v3141, %v3461
        %v3463 = vpop.f32.mrb[0].mxu0
        %3464 = vmatprep.mubr.f32.mxu0 0.0
        %3465 = vmatmul.mubr.f32.gmra.mrb[0].mxu0 %v3245
        %v3466 = vpop.f32.mrb[0].mxu0
        %v3467 = vadd.f32 %v3146, %v3466
        %v3468 = vpop.f32.mrb[0].mxu0
        %3469 = vmatprep.mubr.f32.mxu0 0.0
        %3470 = vmatmul.mubr.f32.gmra.mrb[0].mxu0 %v3248
        %v3471 = vpop.f32.mrb[0].mxu0
        %v3472 = vadd.f32 %v3151, %v3471
        %v3473 = vpop.f32.mrb[0].mxu0
        %3474 = vdwg.mxu0
        %s3475 = scalar_lea.vmem [#allocation5], 64
        %v3476 = vld [vmem:[%s3475] sm:$0xff]
        %v3477 = vld [vmem:[%s3475 + $0x8] sm:$0xff]
        %v3478 = vld [vmem:[%s3475 + $0x10] sm:$0xff]
        %v3479 = vld [vmem:[%s3475 + $0x18] sm:$0xff]
        %v3481 = vsel %vm2832, %v2135, 0
        %v3484 = vsel %vm2832, %v2136, 0
        %v3487 = vsel %vm2832, %v2137, 0
        %v3490 = vsel %vm2832, %v2138, 0
        %v3493 = vsel %vm2832, %v2139, 0
        %v3496 = vsel %vm2832, %v2140, 0
        %v3499 = vsel %vm2832, %v2141, 0
        %v3502 = vsel %vm2832, %v2142, 0
        %v3505 = vsel %vm2832, %v2143, 0
        %v3508 = vsel %vm2832, %v2144, 0
        %v3511 = vsel %vm2832, %v2145, 0
        %v3514 = vsel %vm2832, %v2146, 0
        %v3517 = vsel %vm2832, %v2147, 0
        %v3520 = vsel %vm2832, %v2148, 0
        %v3523 = vsel %vm2832, %v2149, 0
        %v3526 = vsel %vm2832, %v2150, 0
        %v3529 = vsel %vm2832, %v2151, 0
        %v3532 = vsel %vm2832, %v2152, 0
        %v3535 = vsel %vm2832, %v2153, 0
        %v3538 = vsel %vm2832, %v2154, 0
        %v3541 = vsel %vm2832, %v2155, 0
        %v3544 = vsel %vm2832, %v2156, 0
        %v3547 = vsel %vm2832, %v2157, 0
        %v3550 = vsel %vm2832, %v2158, 0
        %v3553 = vsel %vm2832, %v2159, 0
        %v3556 = vsel %vm2832, %v2160, 0
        %v3559 = vsel %vm2832, %v2161, 0
        %v3562 = vsel %vm2832, %v2162, 0
        %v3565 = vsel %vm2832, %v2163, 0
        %v3568 = vsel %vm2832, %v2164, 0
        %v3571 = vsel %vm2832, %v2165, 0
        %v3574 = vsel %vm2832, %v2166, 0
        %3576 = vmatprep.subr.mxu0 0.0
        %3577 = vmatpush1.msra.mxu0 %v3476
        %3578 = vmatprep.subr.mxu0 0.0
        %3579 = vmatpush1.msra.mxu0 %v3477
        %3580 = vmatprep.subr.mxu0 0.0
        %3581 = vmatpush1.msra.mxu0 %v3478
        %3582 = vmatprep.subr.mxu0 0.0
        %3583 = vmatpush1.msra.mxu0 %v3479
        %3584 = vmatprep.subr.mxu0 0.0
        %3585 = vmatpush1.msra.mxu0 0.0
        %3586 = vmatprep.subr.mxu0 0.0
        %3587 = vmatpush1.msra.mxu0 0.0
        %3588 = vmatprep.subr.mxu0 0.0
        %3589 = vmatpush1.msra.mxu0 0.0
        %3590 = vmatprep.subr.mxu0 0.0
        %3591 = vmatpush1.msra.mxu0 0.0
        %3592 = vmatprep.subr.mxu0 0.0
        %3593 = vmatpush1.msra.mxu0 0.0
        %3594 = vmatprep.subr.mxu0 0.0
        %3595 = vmatpush1.msra.mxu0 0.0
        %3596 = vmatprep.subr.mxu0 0.0
        %3597 = vmatpush1.msra.mxu0 0.0
        %3598 = vmatprep.subr.mxu0 0.0
        %3599 = vmatpush1.msra.mxu0 0.0
        %3600 = vmatprep.subr.mxu0 0.0
        %3601 = vmatpush1.msra.mxu0 0.0
        %3602 = vmatprep.subr.mxu0 0.0
        %3603 = vmatpush1.msra.mxu0 0.0
        %3604 = vmatprep.subr.mxu0 0.0
        %3605 = vmatpush1.msra.mxu0 0.0
        %3606 = vmatprep.subr.mxu0 0.0
        %3607 = vmatpush1.msra.mxu0 0.0
        %3608 = vmatprep.subr.mxu0 0.0
        %3609 = vmatpush1.msra.mxu0 0.0
        %3610 = vmatprep.subr.mxu0 0.0
        %3611 = vmatpush1.msra.mxu0 0.0
        %3612 = vmatprep.subr.mxu0 0.0
        %3613 = vmatpush1.msra.mxu0 0.0
        %3614 = vmatprep.subr.mxu0 0.0
        %3615 = vmatpush1.msra.mxu0 0.0
        %3616 = vmatprep.subr.mxu0 0.0
        %3617 = vmatpush1.msra.mxu0 0.0
        %3618 = vmatprep.subr.mxu0 0.0
        %3619 = vmatpush1.msra.mxu0 0.0
        %3620 = vmatprep.subr.mxu0 0.0
        %3621 = vmatpush1.msra.mxu0 0.0
        %3622 = vmatprep.subr.mxu0 0.0
        %3623 = vmatpush1.msra.mxu0 0.0
        %3624 = vmatprep.subr.mxu0 0.0
        %3625 = vmatpush1.msra.mxu0 0.0
        %3626 = vmatprep.subr.mxu0 0.0
        %3627 = vmatpush1.msra.mxu0 0.0
        %3628 = vmatprep.subr.mxu0 0.0
        %3629 = vmatpush1.msra.mxu0 0.0
        %3630 = vmatprep.subr.mxu0 0.0
        %3631 = vmatpush1.msra.mxu0 0.0
        %3632 = vmatprep.subr.mxu0 0.0
        %3633 = vmatpush1.msra.mxu0 0.0
        %3634 = vmatprep.subr.mxu0 0.0
        %3635 = vmatpush1.msra.mxu0 0.0
        %3636 = vmatprep.subr.mxu0 0.0
        %3637 = vmatpush1.msra.mxu0 0.0
        %3638 = vmatprep.subr.mxu0 0.0
        %3639 = vmatpush1.msra.mxu0 0.0
        %3640 = vmatprep.mubr.f32.mxu0 0.0
        %3641 = vmatmul.mubr.f32.gmra.mrb[0].mxu0 %v3481
        %v3642 = vpop.f32.mrb[0].mxu0
        %v3643 = vadd.f32 0.0, %v3642
        %v3644 = vpop.f32.mrb[0].mxu0
        %3645 = vmatprep.mubr.f32.mxu0 0.0
        %3646 = vmatmul.mubr.f32.gmra.mrb[0].mxu0 %v3484
        %v3647 = vpop.f32.mrb[0].mxu0
        %v3648 = vadd.f32 0.0, %v3647
        %v3649 = vpop.f32.mrb[0].mxu0
        %3650 = vmatprep.mubr.f32.mxu0 0.0
        %3651 = vmatmul.mubr.f32.gmra.mrb[0].mxu0 %v3487
        %v3652 = vpop.f32.mrb[0].mxu0
        %v3653 = vadd.f32 0.0, %v3652
        %v3654 = vpop.f32.mrb[0].mxu0
        %3655 = vmatprep.mubr.f32.mxu0 0.0
        %3656 = vmatmul.mubr.f32.gmra.mrb[0].mxu0 %v3490
        %v3657 = vpop.f32.mrb[0].mxu0
        %v3658 = vadd.f32 0.0, %v3657
        %v3659 = vpop.f32.mrb[0].mxu0
        %3660 = vmatprep.mubr.f32.mxu0 0.0
        %3661 = vmatmul.mubr.f32.gmra.mrb[0].mxu0 %v3493
        %v3662 = vpop.f32.mrb[0].mxu0
        %v3663 = vadd.f32 0.0, %v3662
        %v3664 = vpop.f32.mrb[0].mxu0
        %3665 = vmatprep.mubr.f32.mxu0 0.0
        %3666 = vmatmul.mubr.f32.gmra.mrb[0].mxu0 %v3496
        %v3667 = vpop.f32.mrb[0].mxu0
        %v3668 = vadd.f32 0.0, %v3667
        %v3669 = vpop.f32.mrb[0].mxu0
        %3670 = vmatprep.mubr.f32.mxu0 0.0
        %3671 = vmatmul.mubr.f32.gmra.mrb[0].mxu0 %v3499
        %v3672 = vpop.f32.mrb[0].mxu0
        %v3673 = vadd.f32 0.0, %v3672
        %v3674 = vpop.f32.mrb[0].mxu0
        %3675 = vmatprep.mubr.f32.mxu0 0.0
        %3676 = vmatmul.mubr.f32.gmra.mrb[0].mxu0 %v3502
        %v3677 = vpop.f32.mrb[0].mxu0
        %v3678 = vadd.f32 0.0, %v3677
        %v3679 = vpop.f32.mrb[0].mxu0
        %3680 = vmatprep.mubr.f32.mxu0 0.0
        %3681 = vmatmul.mubr.f32.gmra.mrb[0].mxu0 %v3505
        %v3682 = vpop.f32.mrb[0].mxu0
        %v3683 = vadd.f32 0.0, %v3682
        %v3684 = vpop.f32.mrb[0].mxu0
        %3685 = vmatprep.mubr.f32.mxu0 0.0
        %3686 = vmatmul.mubr.f32.gmra.mrb[0].mxu0 %v3508
        %v3687 = vpop.f32.mrb[0].mxu0
        %v3688 = vadd.f32 0.0, %v3687
        %v3689 = vpop.f32.mrb[0].mxu0
        %3690 = vmatprep.mubr.f32.mxu0 0.0
        %3691 = vmatmul.mubr.f32.gmra.mrb[0].mxu0 %v3511
        %v3692 = vpop.f32.mrb[0].mxu0
        %v3693 = vadd.f32 0.0, %v3692
        %v3694 = vpop.f32.mrb[0].mxu0
        %3695 = vmatprep.mubr.f32.mxu0 0.0
        %3696 = vmatmul.mubr.f32.gmra.mrb[0].mxu0 %v3514
        %v3697 = vpop.f32.mrb[0].mxu0
        %v3698 = vadd.f32 0.0, %v3697
        %v3699 = vpop.f32.mrb[0].mxu0
        %3700 = vmatprep.mubr.f32.mxu0 0.0
        %3701 = vmatmul.mubr.f32.gmra.mrb[0].mxu0 %v3517
        %v3702 = vpop.f32.mrb[0].mxu0
        %v3703 = vadd.f32 0.0, %v3702
        %v3704 = vpop.f32.mrb[0].mxu0
        %3705 = vmatprep.mubr.f32.mxu0 0.0
        %3706 = vmatmul.mubr.f32.gmra.mrb[0].mxu0 %v3520
        %v3707 = vpop.f32.mrb[0].mxu0
        %v3708 = vadd.f32 0.0, %v3707
        %v3709 = vpop.f32.mrb[0].mxu0
        %3710 = vmatprep.mubr.f32.mxu0 0.0
        %3711 = vmatmul.mubr.f32.gmra.mrb[0].mxu0 %v3523
        %v3712 = vpop.f32.mrb[0].mxu0
        %v3713 = vadd.f32 0.0, %v3712
        %v3714 = vpop.f32.mrb[0].mxu0
        %3715 = vmatprep.mubr.f32.mxu0 0.0
        %3716 = vmatmul.mubr.f32.gmra.mrb[0].mxu0 %v3526
        %v3717 = vpop.f32.mrb[0].mxu0
        %v3718 = vadd.f32 0.0, %v3717
        %v3719 = vpop.f32.mrb[0].mxu0
        %3720 = vmatprep.mubr.f32.mxu0 0.0
        %3721 = vmatmul.mubr.f32.gmra.mrb[0].mxu0 %v3529
        %v3722 = vpop.f32.mrb[0].mxu0
        %v3723 = vadd.f32 0.0, %v3722
        %v3724 = vpop.f32.mrb[0].mxu0
        %3725 = vmatprep.mubr.f32.mxu0 0.0
        %3726 = vmatmul.mubr.f32.gmra.mrb[0].mxu0 %v3532
        %v3727 = vpop.f32.mrb[0].mxu0
        %v3728 = vadd.f32 0.0, %v3727
        %v3729 = vpop.f32.mrb[0].mxu0
        %3730 = vmatprep.mubr.f32.mxu0 0.0
        %3731 = vmatmul.mubr.f32.gmra.mrb[0].mxu0 %v3535
        %v3732 = vpop.f32.mrb[0].mxu0
        %v3733 = vadd.f32 0.0, %v3732
        %v3734 = vpop.f32.mrb[0].mxu0
        %3735 = vmatprep.mubr.f32.mxu0 0.0
        %3736 = vmatmul.mubr.f32.gmra.mrb[0].mxu0 %v3538
        %v3737 = vpop.f32.mrb[0].mxu0
        %v3738 = vadd.f32 0.0, %v3737
        %v3739 = vpop.f32.mrb[0].mxu0
        %3740 = vmatprep.mubr.f32.mxu0 0.0
        %3741 = vmatmul.mubr.f32.gmra.mrb[0].mxu0 %v3541
        %v3742 = vpop.f32.mrb[0].mxu0
        %v3743 = vadd.f32 0.0, %v3742
        %v3744 = vpop.f32.mrb[0].mxu0
        %3745 = vmatprep.mubr.f32.mxu0 0.0
        %3746 = vmatmul.mubr.f32.gmra.mrb[0].mxu0 %v3544
        %v3747 = vpop.f32.mrb[0].mxu0
        %v3748 = vadd.f32 0.0, %v3747
        %v3749 = vpop.f32.mrb[0].mxu0
        %3750 = vmatprep.mubr.f32.mxu0 0.0
        %3751 = vmatmul.mubr.f32.gmra.mrb[0].mxu0 %v3547
        %v3752 = vpop.f32.mrb[0].mxu0
        %v3753 = vadd.f32 0.0, %v3752
        %v3754 = vpop.f32.mrb[0].mxu0
        %3755 = vmatprep.mubr.f32.mxu0 0.0
        %3756 = vmatmul.mubr.f32.gmra.mrb[0].mxu0 %v3550
        %v3757 = vpop.f32.mrb[0].mxu0
        %v3758 = vadd.f32 0.0, %v3757
        %v3759 = vpop.f32.mrb[0].mxu0
        %3760 = vmatprep.mubr.f32.mxu0 0.0
        %3761 = vmatmul.mubr.f32.gmra.mrb[0].mxu0 %v3553
        %v3762 = vpop.f32.mrb[0].mxu0
        %v3763 = vadd.f32 0.0, %v3762
        %v3764 = vpop.f32.mrb[0].mxu0
        %3765 = vmatprep.mubr.f32.mxu0 0.0
        %3766 = vmatmul.mubr.f32.gmra.mrb[0].mxu0 %v3556
        %v3767 = vpop.f32.mrb[0].mxu0
        %v3768 = vadd.f32 0.0, %v3767
        %v3769 = vpop.f32.mrb[0].mxu0
        %3770 = vmatprep.mubr.f32.mxu0 0.0
        %3771 = vmatmul.mubr.f32.gmra.mrb[0].mxu0 %v3559
        %v3772 = vpop.f32.mrb[0].mxu0
        %v3773 = vadd.f32 0.0, %v3772
        %v3774 = vpop.f32.mrb[0].mxu0
        %3775 = vmatprep.mubr.f32.mxu0 0.0
        %3776 = vmatmul.mubr.f32.gmra.mrb[0].mxu0 %v3562
        %v3777 = vpop.f32.mrb[0].mxu0
        %v3778 = vadd.f32 0.0, %v3777
        %v3779 = vpop.f32.mrb[0].mxu0
        %3780 = vmatprep.mubr.f32.mxu0 0.0
        %3781 = vmatmul.mubr.f32.gmra.mrb[0].mxu0 %v3565
        %v3782 = vpop.f32.mrb[0].mxu0
        %v3783 = vadd.f32 0.0, %v3782
        %v3784 = vpop.f32.mrb[0].mxu0
        %3785 = vmatprep.mubr.f32.mxu0 0.0
        %3786 = vmatmul.mubr.f32.gmra.mrb[0].mxu0 %v3568
        %v3787 = vpop.f32.mrb[0].mxu0
        %v3788 = vadd.f32 0.0, %v3787
        %v3789 = vpop.f32.mrb[0].mxu0
        %3790 = vmatprep.mubr.f32.mxu0 0.0
        %3791 = vmatmul.mubr.f32.gmra.mrb[0].mxu0 %v3571
        %v3792 = vpop.f32.mrb[0].mxu0
        %v3793 = vadd.f32 0.0, %v3792
        %v3794 = vpop.f32.mrb[0].mxu0
        %3795 = vmatprep.mubr.f32.mxu0 0.0
        %3796 = vmatmul.mubr.f32.gmra.mrb[0].mxu0 %v3574
        %v3797 = vpop.f32.mrb[0].mxu0
        %v3798 = vadd.f32 0.0, %v3797
        %v3799 = vpop.f32.mrb[0].mxu0
        %3800 = vdwg.mxu0
        %v3801 = vadd.f32 %v3317, %v3643
        %v3802 = vadd.f32 %v3322, %v3648
        %v3803 = vadd.f32 %v3327, %v3653
        %v3804 = vadd.f32 %v3332, %v3658
        %v3805 = vadd.f32 %v3337, %v3663
        %v3806 = vadd.f32 %v3342, %v3668
        %v3807 = vadd.f32 %v3347, %v3673
        %v3808 = vadd.f32 %v3352, %v3678
        %v3809 = vadd.f32 %v3357, %v3683
        %v3810 = vadd.f32 %v3362, %v3688
        %v3811 = vadd.f32 %v3367, %v3693
        %v3812 = vadd.f32 %v3372, %v3698
        %v3813 = vadd.f32 %v3377, %v3703
        %v3814 = vadd.f32 %v3382, %v3708
        %v3815 = vadd.f32 %v3387, %v3713
        %v3816 = vadd.f32 %v3392, %v3718
        %v3817 = vadd.f32 %v3397, %v3723
        %v3818 = vadd.f32 %v3402, %v3728
        %v3819 = vadd.f32 %v3407, %v3733
        %v3820 = vadd.f32 %v3412, %v3738
        %v3821 = vadd.f32 %v3417, %v3743
        %v3822 = vadd.f32 %v3422, %v3748
        %v3823 = vadd.f32 %v3427, %v3753
        %v3824 = vadd.f32 %v3432, %v3758
        %v3825 = vadd.f32 %v3437, %v3763
        %v3826 = vadd.f32 %v3442, %v3768
        %v3827 = vadd.f32 %v3447, %v3773
        %v3828 = vadd.f32 %v3452, %v3778
        %v3829 = vadd.f32 %v3457, %v3783
        %v3830 = vadd.f32 %v3462, %v3788
        %v3831 = vadd.f32 %v3467, %v3793
        %v3832 = vadd.f32 %v3472, %v3798
        %s3833 = scalar_lea.vmem [#allocation5], 96
        %v3834 = vld [vmem:[%s3833] sm:$0xff]
        %v3835 = vld [vmem:[%s3833 + $0x8] sm:$0xff]
        %v3836 = vld [vmem:[%s3833 + $0x10] sm:$0xff]
        %v3837 = vld [vmem:[%s3833 + $0x18] sm:$0xff]
        %v3839 = vsel %vm2832, %v2791, 0
        %v3842 = vsel %vm2832, %v2792, 0
        %v3845 = vsel %vm2832, %v2793, 0
        %v3848 = vsel %vm2832, %v2794, 0
        %v3851 = vsel %vm2832, %v2795, 0
        %v3854 = vsel %vm2832, %v2796, 0
        %v3857 = vsel %vm2832, %v2797, 0
        %v3860 = vsel %vm2832, %v2798, 0
        %v3863 = vsel %vm2832, %v2799, 0
        %v3866 = vsel %vm2832, %v2800, 0
        %v3869 = vsel %vm2832, %v2801, 0
        %v3872 = vsel %vm2832, %v2802, 0
        %v3875 = vsel %vm2832, %v2803, 0
        %v3878 = vsel %vm2832, %v2804, 0
        %v3881 = vsel %vm2832, %v2805, 0
        %v3884 = vsel %vm2832, %v2806, 0
        %v3887 = vsel %vm2832, %v2807, 0
        %v3890 = vsel %vm2832, %v2808, 0
        %v3893 = vsel %vm2832, %v2809, 0
        %v3896 = vsel %vm2832, %v2810, 0
        %v3899 = vsel %vm2832, %v2811, 0
        %v3902 = vsel %vm2832, %v2812, 0
        %v3905 = vsel %vm2832, %v2813, 0
        %v3908 = vsel %vm2832, %v2814, 0
        %v3911 = vsel %vm2832, %v2815, 0
        %v3914 = vsel %vm2832, %v2816, 0
        %v3917 = vsel %vm2832, %v2817, 0
        %v3920 = vsel %vm2832, %v2818, 0
        %v3923 = vsel %vm2832, %v2819, 0
        %v3926 = vsel %vm2832, %v2820, 0
        %v3929 = vsel %vm2832, %v2821, 0
        %v3932 = vsel %vm2832, %v2822, 0
        %3934 = vmatprep.subr.mxu0 0.0
        %3935 = vmatpush1.msra.mxu0 %v3834
        %3936 = vmatprep.subr.mxu0 0.0
        %3937 = vmatpush1.msra.mxu0 %v3835
        %3938 = vmatprep.subr.mxu0 0.0
        %3939 = vmatpush1.msra.mxu0 %v3836
        %3940 = vmatprep.subr.mxu0 0.0
        %3941 = vmatpush1.msra.mxu0 %v3837
        %3942 = vmatprep.subr.mxu0 0.0
        %3943 = vmatpush1.msra.mxu0 0.0
        %3944 = vmatprep.subr.mxu0 0.0
        %3945 = vmatpush1.msra.mxu0 0.0
        %3946 = vmatprep.subr.mxu0 0.0
        %3947 = vmatpush1.msra.mxu0 0.0
        %3948 = vmatprep.subr.mxu0 0.0
        %3949 = vmatpush1.msra.mxu0 0.0
        %3950 = vmatprep.subr.mxu0 0.0
        %3951 = vmatpush1.msra.mxu0 0.0
        %3952 = vmatprep.subr.mxu0 0.0
        %3953 = vmatpush1.msra.mxu0 0.0
        %3954 = vmatprep.subr.mxu0 0.0
        %3955 = vmatpush1.msra.mxu0 0.0
        %3956 = vmatprep.subr.mxu0 0.0
        %3957 = vmatpush1.msra.mxu0 0.0
        %3958 = vmatprep.subr.mxu0 0.0
        %3959 = vmatpush1.msra.mxu0 0.0
        %3960 = vmatprep.subr.mxu0 0.0
        %3961 = vmatpush1.msra.mxu0 0.0
        %3962 = vmatprep.subr.mxu0 0.0
        %3963 = vmatpush1.msra.mxu0 0.0
        %3964 = vmatprep.subr.mxu0 0.0
        %3965 = vmatpush1.msra.mxu0 0.0
        %3966 = vmatprep.subr.mxu0 0.0
        %3967 = vmatpush1.msra.mxu0 0.0
        %3968 = vmatprep.subr.mxu0 0.0
        %3969 = vmatpush1.msra.mxu0 0.0
        %3970 = vmatprep.subr.mxu0 0.0
        %3971 = vmatpush1.msra.mxu0 0.0
        %3972 = vmatprep.subr.mxu0 0.0
        %3973 = vmatpush1.msra.mxu0 0.0
        %3974 = vmatprep.subr.mxu0 0.0
        %3975 = vmatpush1.msra.mxu0 0.0
        %3976 = vmatprep.subr.mxu0 0.0
        %3977 = vmatpush1.msra.mxu0 0.0
        %3978 = vmatprep.subr.mxu0 0.0
        %3979 = vmatpush1.msra.mxu0 0.0
        %3980 = vmatprep.subr.mxu0 0.0
        %3981 = vmatpush1.msra.mxu0 0.0
        %3982 = vmatprep.subr.mxu0 0.0
        %3983 = vmatpush1.msra.mxu0 0.0
        %3984 = vmatprep.subr.mxu0 0.0
        %3985 = vmatpush1.msra.mxu0 0.0
        %3986 = vmatprep.subr.mxu0 0.0
        %3987 = vmatpush1.msra.mxu0 0.0
        %3988 = vmatprep.subr.mxu0 0.0
        %3989 = vmatpush1.msra.mxu0 0.0
        %3990 = vmatprep.subr.mxu0 0.0
        %3991 = vmatpush1.msra.mxu0 0.0
        %3992 = vmatprep.subr.mxu0 0.0
        %3993 = vmatpush1.msra.mxu0 0.0
        %3994 = vmatprep.subr.mxu0 0.0
        %3995 = vmatpush1.msra.mxu0 0.0
        %3996 = vmatprep.subr.mxu0 0.0
        %3997 = vmatpush1.msra.mxu0 0.0
        %3998 = vmatprep.mubr.f32.mxu0 0.0
        %3999 = vmatmul.mubr.f32.gmra.mrb[0].mxu0 %v3839
        %v4000 = vpop.f32.mrb[0].mxu0
        %v4001 = vadd.f32 0.0, %v4000
        %v4002 = vpop.f32.mrb[0].mxu0
        %4003 = vmatprep.mubr.f32.mxu0 0.0
        %4004 = vmatmul.mubr.f32.gmra.mrb[0].mxu0 %v3842
        %v4005 = vpop.f32.mrb[0].mxu0
        %v4006 = vadd.f32 0.0, %v4005
        %v4007 = vpop.f32.mrb[0].mxu0
        %4008 = vmatprep.mubr.f32.mxu0 0.0
        %4009 = vmatmul.mubr.f32.gmra.mrb[0].mxu0 %v3845
        %v4010 = vpop.f32.mrb[0].mxu0
        %v4011 = vadd.f32 0.0, %v4010
        %v4012 = vpop.f32.mrb[0].mxu0
        %4013 = vmatprep.mubr.f32.mxu0 0.0
        %4014 = vmatmul.mubr.f32.gmra.mrb[0].mxu0 %v3848
        %v4015 = vpop.f32.mrb[0].mxu0
        %v4016 = vadd.f32 0.0, %v4015
        %v4017 = vpop.f32.mrb[0].mxu0
        %4018 = vmatprep.mubr.f32.mxu0 0.0
        %4019 = vmatmul.mubr.f32.gmra.mrb[0].mxu0 %v3851
        %v4020 = vpop.f32.mrb[0].mxu0
        %v4021 = vadd.f32 0.0, %v4020
        %v4022 = vpop.f32.mrb[0].mxu0
        %4023 = vmatprep.mubr.f32.mxu0 0.0
        %4024 = vmatmul.mubr.f32.gmra.mrb[0].mxu0 %v3854
        %v4025 = vpop.f32.mrb[0].mxu0
        %v4026 = vadd.f32 0.0, %v4025
        %v4027 = vpop.f32.mrb[0].mxu0
        %4028 = vmatprep.mubr.f32.mxu0 0.0
        %4029 = vmatmul.mubr.f32.gmra.mrb[0].mxu0 %v3857
        %v4030 = vpop.f32.mrb[0].mxu0
        %v4031 = vadd.f32 0.0, %v4030
        %v4032 = vpop.f32.mrb[0].mxu0
        %4033 = vmatprep.mubr.f32.mxu0 0.0
        %4034 = vmatmul.mubr.f32.gmra.mrb[0].mxu0 %v3860
        %v4035 = vpop.f32.mrb[0].mxu0
        %v4036 = vadd.f32 0.0, %v4035
        %v4037 = vpop.f32.mrb[0].mxu0
        %4038 = vmatprep.mubr.f32.mxu0 0.0
        %4039 = vmatmul.mubr.f32.gmra.mrb[0].mxu0 %v3863
        %v4040 = vpop.f32.mrb[0].mxu0
        %v4041 = vadd.f32 0.0, %v4040
        %v4042 = vpop.f32.mrb[0].mxu0
        %4043 = vmatprep.mubr.f32.mxu0 0.0
        %4044 = vmatmul.mubr.f32.gmra.mrb[0].mxu0 %v3866
        %v4045 = vpop.f32.mrb[0].mxu0
        %v4046 = vadd.f32 0.0, %v4045
        %v4047 = vpop.f32.mrb[0].mxu0
        %4048 = vmatprep.mubr.f32.mxu0 0.0
        %4049 = vmatmul.mubr.f32.gmra.mrb[0].mxu0 %v3869
        %v4050 = vpop.f32.mrb[0].mxu0
        %v4051 = vadd.f32 0.0, %v4050
        %v4052 = vpop.f32.mrb[0].mxu0
        %4053 = vmatprep.mubr.f32.mxu0 0.0
        %4054 = vmatmul.mubr.f32.gmra.mrb[0].mxu0 %v3872
        %v4055 = vpop.f32.mrb[0].mxu0
        %v4056 = vadd.f32 0.0, %v4055
        %v4057 = vpop.f32.mrb[0].mxu0
        %4058 = vmatprep.mubr.f32.mxu0 0.0
        %4059 = vmatmul.mubr.f32.gmra.mrb[0].mxu0 %v3875
        %v4060 = vpop.f32.mrb[0].mxu0
        %v4061 = vadd.f32 0.0, %v4060
        %v4062 = vpop.f32.mrb[0].mxu0
        %4063 = vmatprep.mubr.f32.mxu0 0.0
        %4064 = vmatmul.mubr.f32.gmra.mrb[0].mxu0 %v3878
        %v4065 = vpop.f32.mrb[0].mxu0
        %v4066 = vadd.f32 0.0, %v4065
        %v4067 = vpop.f32.mrb[0].mxu0
        %4068 = vmatprep.mubr.f32.mxu0 0.0
        %4069 = vmatmul.mubr.f32.gmra.mrb[0].mxu0 %v3881
        %v4070 = vpop.f32.mrb[0].mxu0
        %v4071 = vadd.f32 0.0, %v4070
        %v4072 = vpop.f32.mrb[0].mxu0
        %4073 = vmatprep.mubr.f32.mxu0 0.0
        %4074 = vmatmul.mubr.f32.gmra.mrb[0].mxu0 %v3884
        %v4075 = vpop.f32.mrb[0].mxu0
        %v4076 = vadd.f32 0.0, %v4075
        %v4077 = vpop.f32.mrb[0].mxu0
        %4078 = vmatprep.mubr.f32.mxu0 0.0
        %4079 = vmatmul.mubr.f32.gmra.mrb[0].mxu0 %v3887
        %v4080 = vpop.f32.mrb[0].mxu0
        %v4081 = vadd.f32 0.0, %v4080
        %v4082 = vpop.f32.mrb[0].mxu0
        %4083 = vmatprep.mubr.f32.mxu0 0.0
        %4084 = vmatmul.mubr.f32.gmra.mrb[0].mxu0 %v3890
        %v4085 = vpop.f32.mrb[0].mxu0
        %v4086 = vadd.f32 0.0, %v4085
        %v4087 = vpop.f32.mrb[0].mxu0
        %4088 = vmatprep.mubr.f32.mxu0 0.0
        %4089 = vmatmul.mubr.f32.gmra.mrb[0].mxu0 %v3893
        %v4090 = vpop.f32.mrb[0].mxu0
        %v4091 = vadd.f32 0.0, %v4090
        %v4092 = vpop.f32.mrb[0].mxu0
        %4093 = vmatprep.mubr.f32.mxu0 0.0
        %4094 = vmatmul.mubr.f32.gmra.mrb[0].mxu0 %v3896
        %v4095 = vpop.f32.mrb[0].mxu0
        %v4096 = vadd.f32 0.0, %v4095
        %v4097 = vpop.f32.mrb[0].mxu0
        %4098 = vmatprep.mubr.f32.mxu0 0.0
        %4099 = vmatmul.mubr.f32.gmra.mrb[0].mxu0 %v3899
        %v4100 = vpop.f32.mrb[0].mxu0
        %v4101 = vadd.f32 0.0, %v4100
        %v4102 = vpop.f32.mrb[0].mxu0
        %4103 = vmatprep.mubr.f32.mxu0 0.0
        %4104 = vmatmul.mubr.f32.gmra.mrb[0].mxu0 %v3902
        %v4105 = vpop.f32.mrb[0].mxu0
        %v4106 = vadd.f32 0.0, %v4105
        %v4107 = vpop.f32.mrb[0].mxu0
        %4108 = vmatprep.mubr.f32.mxu0 0.0
        %4109 = vmatmul.mubr.f32.gmra.mrb[0].mxu0 %v3905
        %v4110 = vpop.f32.mrb[0].mxu0
        %v4111 = vadd.f32 0.0, %v4110
        %v4112 = vpop.f32.mrb[0].mxu0
        %4113 = vmatprep.mubr.f32.mxu0 0.0
        %4114 = vmatmul.mubr.f32.gmra.mrb[0].mxu0 %v3908
        %v4115 = vpop.f32.mrb[0].mxu0
        %v4116 = vadd.f32 0.0, %v4115
        %v4117 = vpop.f32.mrb[0].mxu0
        %4118 = vmatprep.mubr.f32.mxu0 0.0
        %4119 = vmatmul.mubr.f32.gmra.mrb[0].mxu0 %v3911
        %v4120 = vpop.f32.mrb[0].mxu0
        %v4121 = vadd.f32 0.0, %v4120
        %v4122 = vpop.f32.mrb[0].mxu0
        %4123 = vmatprep.mubr.f32.mxu0 0.0
        %4124 = vmatmul.mubr.f32.gmra.mrb[0].mxu0 %v3914
        %v4125 = vpop.f32.mrb[0].mxu0
        %v4126 = vadd.f32 0.0, %v4125
        %v4127 = vpop.f32.mrb[0].mxu0
        %4128 = vmatprep.mubr.f32.mxu0 0.0
        %4129 = vmatmul.mubr.f32.gmra.mrb[0].mxu0 %v3917
        %v4130 = vpop.f32.mrb[0].mxu0
        %v4131 = vadd.f32 0.0, %v4130
        %v4132 = vpop.f32.mrb[0].mxu0
        %4133 = vmatprep.mubr.f32.mxu0 0.0
        %4134 = vmatmul.mubr.f32.gmra.mrb[0].mxu0 %v3920
        %v4135 = vpop.f32.mrb[0].mxu0
        %v4136 = vadd.f32 0.0, %v4135
        %v4137 = vpop.f32.mrb[0].mxu0
        %4138 = vmatprep.mubr.f32.mxu0 0.0
        %4139 = vmatmul.mubr.f32.gmra.mrb[0].mxu0 %v3923
        %v4140 = vpop.f32.mrb[0].mxu0
        %v4141 = vadd.f32 0.0, %v4140
        %v4142 = vpop.f32.mrb[0].mxu0
        %4143 = vmatprep.mubr.f32.mxu0 0.0
        %4144 = vmatmul.mubr.f32.gmra.mrb[0].mxu0 %v3926
        %v4145 = vpop.f32.mrb[0].mxu0
        %v4146 = vadd.f32 0.0, %v4145
        %v4147 = vpop.f32.mrb[0].mxu0
        %4148 = vmatprep.mubr.f32.mxu0 0.0
        %4149 = vmatmul.mubr.f32.gmra.mrb[0].mxu0 %v3929
        %v4150 = vpop.f32.mrb[0].mxu0
        %v4151 = vadd.f32 0.0, %v4150
        %v4152 = vpop.f32.mrb[0].mxu0
        %4153 = vmatprep.mubr.f32.mxu0 0.0
        %4154 = vmatmul.mubr.f32.gmra.mrb[0].mxu0 %v3932
        %v4155 = vpop.f32.mrb[0].mxu0
        %v4156 = vadd.f32 0.0, %v4155
        %v4157 = vpop.f32.mrb[0].mxu0
        %4158 = vdwg.mxu0
        %v4159 = vadd.f32 %v3801, %v4001
        %v4160 = vadd.f32 %v3802, %v4006
        %v4161 = vadd.f32 %v3803, %v4011
        %v4162 = vadd.f32 %v3804, %v4016
        %v4163 = vadd.f32 %v3805, %v4021
        %v4164 = vadd.f32 %v3806, %v4026
        %v4165 = vadd.f32 %v3807, %v4031
        %v4166 = vadd.f32 %v3808, %v4036
        %v4167 = vadd.f32 %v3809, %v4041
        %v4168 = vadd.f32 %v3810, %v4046
        %v4169 = vadd.f32 %v3811, %v4051
        %v4170 = vadd.f32 %v3812, %v4056
        %v4171 = vadd.f32 %v3813, %v4061
        %v4172 = vadd.f32 %v3814, %v4066
        %v4173 = vadd.f32 %v3815, %v4071
        %v4174 = vadd.f32 %v3816, %v4076
        %v4175 = vadd.f32 %v3817, %v4081
        %v4176 = vadd.f32 %v3818, %v4086
        %v4177 = vadd.f32 %v3819, %v4091
        %v4178 = vadd.f32 %v3820, %v4096
        %v4179 = vadd.f32 %v3821, %v4101
        %v4180 = vadd.f32 %v3822, %v4106
        %v4181 = vadd.f32 %v3823, %v4111
        %v4182 = vadd.f32 %v3824, %v4116
        %v4183 = vadd.f32 %v3825, %v4121
        %v4184 = vadd.f32 %v3826, %v4126
        %v4185 = vadd.f32 %v3827, %v4131
        %v4186 = vadd.f32 %v3828, %v4136
        %v4187 = vadd.f32 %v3829, %v4141
        %v4188 = vadd.f32 %v3830, %v4146
        %v4189 = vadd.f32 %v3831, %v4151
        %v4190 = vadd.f32 %v3832, %v4156
        %v4191 = vld [vmem:[%s4] sm:$0x1]
        %v4193 = vlaneseq
        %v4194 = vshrl.u32 %v4193, 7
        %v4195 = vsub.s32 0, %v4194
        %v4196 = vrot.slane %v4191, %v4195
        %v4198 = vadd.f32 %v4159, %v4196
        %v4199 = vadd.f32 %v4160, %v4196
        %v4200 = vadd.f32 %v4161, %v4196
        %v4201 = vadd.f32 %v4162, %v4196
        %v4202 = vadd.f32 %v4163, %v4196
        %v4203 = vadd.f32 %v4164, %v4196
        %v4204 = vadd.f32 %v4165, %v4196
        %v4205 = vadd.f32 %v4166, %v4196
        %v4206 = vadd.f32 %v4167, %v4196
        %v4207 = vadd.f32 %v4168, %v4196
        %v4208 = vadd.f32 %v4169, %v4196
        %v4209 = vadd.f32 %v4170, %v4196
        %v4210 = vadd.f32 %v4171, %v4196
        %v4211 = vadd.f32 %v4172, %v4196
        %v4212 = vadd.f32 %v4173, %v4196
        %v4213 = vadd.f32 %v4174, %v4196
        %v4214 = vadd.f32 %v4175, %v4196
        %v4215 = vadd.f32 %v4176, %v4196
        %v4216 = vadd.f32 %v4177, %v4196
        %v4217 = vadd.f32 %v4178, %v4196
        %v4218 = vadd.f32 %v4179, %v4196
        %v4219 = vadd.f32 %v4180, %v4196
        %v4220 = vadd.f32 %v4181, %v4196
        %v4221 = vadd.f32 %v4182, %v4196
        %v4222 = vadd.f32 %v4183, %v4196
        %v4223 = vadd.f32 %v4184, %v4196
        %v4224 = vadd.f32 %v4185, %v4196
        %v4225 = vadd.f32 %v4186, %v4196
        %v4226 = vadd.f32 %v4187, %v4196
        %v4227 = vadd.f32 %v4188, %v4196
        %v4228 = vadd.f32 %v4189, %v4196
        %v4229 = vadd.f32 %v4190, %v4196
        %v4230 = vsub.f32 0.0, %v4198
        %v4231 = vsub.f32 0.0, %v4199
        %v4232 = vsub.f32 0.0, %v4200
        %v4233 = vsub.f32 0.0, %v4201
        %v4234 = vsub.f32 0.0, %v4202
        %v4235 = vsub.f32 0.0, %v4203
        %v4236 = vsub.f32 0.0, %v4204
        %v4237 = vsub.f32 0.0, %v4205
        %v4238 = vsub.f32 0.0, %v4206
        %v4239 = vsub.f32 0.0, %v4207
        %v4240 = vsub.f32 0.0, %v4208
        %v4241 = vsub.f32 0.0, %v4209
        %v4242 = vsub.f32 0.0, %v4210
        %v4243 = vsub.f32 0.0, %v4211
        %v4244 = vsub.f32 0.0, %v4212
        %v4245 = vsub.f32 0.0, %v4213
        %v4246 = vsub.f32 0.0, %v4214
        %v4247 = vsub.f32 0.0, %v4215
        %v4248 = vsub.f32 0.0, %v4216
        %v4249 = vsub.f32 0.0, %v4217
        %v4250 = vsub.f32 0.0, %v4218
        %v4251 = vsub.f32 0.0, %v4219
        %v4252 = vsub.f32 0.0, %v4220
        %v4253 = vsub.f32 0.0, %v4221
        %v4254 = vsub.f32 0.0, %v4222
        %v4255 = vsub.f32 0.0, %v4223
        %v4256 = vsub.f32 0.0, %v4224
        %v4257 = vsub.f32 0.0, %v4225
        %v4258 = vsub.f32 0.0, %v4226
        %v4259 = vsub.f32 0.0, %v4227
        %v4260 = vsub.f32 0.0, %v4228
        %v4261 = vsub.f32 0.0, %v4229
        %v4262 = vmul.f32 %v4230, 1.442695
        %v4263 = vpow.pop %v4262
        %v4264 = vmul.f32 %v4231, 1.442695
        %v4265 = vpow.pop %v4264
        %v4266 = vmul.f32 %v4232, 1.442695
        %v4267 = vpow.pop %v4266
        %v4268 = vmul.f32 %v4233, 1.442695
        %v4269 = vpow.pop %v4268
        %v4270 = vmul.f32 %v4234, 1.442695
        %v4271 = vpow.pop %v4270
        %v4272 = vmul.f32 %v4235, 1.442695
        %v4273 = vpow.pop %v4272
        %v4274 = vmul.f32 %v4236, 1.442695
        %v4275 = vpow.pop %v4274
        %v4276 = vmul.f32 %v4237, 1.442695
        %v4277 = vpow.pop %v4276
        %v4278 = vmul.f32 %v4238, 1.442695
        %v4279 = vpow.pop %v4278
        %v4280 = vmul.f32 %v4239, 1.442695
        %v4281 = vpow.pop %v4280
        %v4282 = vmul.f32 %v4240, 1.442695
        %v4283 = vpow.pop %v4282
        %v4284 = vmul.f32 %v4241, 1.442695
        %v4285 = vpow.pop %v4284
        %v4286 = vmul.f32 %v4242, 1.442695
        %v4287 = vpow.pop %v4286
        %v4288 = vmul.f32 %v4243, 1.442695
        %v4289 = vpow.pop %v4288
        %v4290 = vmul.f32 %v4244, 1.442695
        %v4291 = vpow.pop %v4290
        %v4292 = vmul.f32 %v4245, 1.442695
        %v4293 = vpow.pop %v4292
        %v4294 = vmul.f32 %v4246, 1.442695
        %v4295 = vpow.pop %v4294
        %v4296 = vmul.f32 %v4247, 1.442695
        %v4297 = vpow.pop %v4296
        %v4298 = vmul.f32 %v4248, 1.442695
        %v4299 = vpow.pop %v4298
        %v4300 = vmul.f32 %v4249, 1.442695
        %v4301 = vpow.pop %v4300
        %v4302 = vmul.f32 %v4250, 1.442695
        %v4303 = vpow.pop %v4302
        %v4304 = vmul.f32 %v4251, 1.442695
        %v4305 = vpow.pop %v4304
        %v4306 = vmul.f32 %v4252, 1.442695
        %v4307 = vpow.pop %v4306
        %v4308 = vmul.f32 %v4253, 1.442695
        %v4309 = vpow.pop %v4308
        %v4310 = vmul.f32 %v4254, 1.442695
        %v4311 = vpow.pop %v4310
        %v4312 = vmul.f32 %v4255, 1.442695
        %v4313 = vpow.pop %v4312
        %v4314 = vmul.f32 %v4256, 1.442695
        %v4315 = vpow.pop %v4314
        %v4316 = vmul.f32 %v4257, 1.442695
        %v4317 = vpow.pop %v4316
        %v4318 = vmul.f32 %v4258, 1.442695
        %v4319 = vpow.pop %v4318
        %v4320 = vmul.f32 %v4259, 1.442695
        %v4321 = vpow.pop %v4320
        %v4322 = vmul.f32 %v4260, 1.442695
        %v4323 = vpow.pop %v4322
        %v4324 = vmul.f32 %v4261, 1.442695
        %v4325 = vpow.pop %v4324
        %v4326 = vadd.f32 %v4263, 1.0
        %v4327 = vadd.f32 %v4265, 1.0
        %v4328 = vadd.f32 %v4267, 1.0
        %v4329 = vadd.f32 %v4269, 1.0
        %v4330 = vadd.f32 %v4271, 1.0
        %v4331 = vadd.f32 %v4273, 1.0
        %v4332 = vadd.f32 %v4275, 1.0
        %v4333 = vadd.f32 %v4277, 1.0
        %v4334 = vadd.f32 %v4279, 1.0
        %v4335 = vadd.f32 %v4281, 1.0
        %v4336 = vadd.f32 %v4283, 1.0
        %v4337 = vadd.f32 %v4285, 1.0
        %v4338 = vadd.f32 %v4287, 1.0
        %v4339 = vadd.f32 %v4289, 1.0
        %v4340 = vadd.f32 %v4291, 1.0
        %v4341 = vadd.f32 %v4293, 1.0
        %v4342 = vadd.f32 %v4295, 1.0
        %v4343 = vadd.f32 %v4297, 1.0
        %v4344 = vadd.f32 %v4299, 1.0
        %v4345 = vadd.f32 %v4301, 1.0
        %v4346 = vadd.f32 %v4303, 1.0
        %v4347 = vadd.f32 %v4305, 1.0
        %v4348 = vadd.f32 %v4307, 1.0
        %v4349 = vadd.f32 %v4309, 1.0
        %v4350 = vadd.f32 %v4311, 1.0
        %v4351 = vadd.f32 %v4313, 1.0
        %v4352 = vadd.f32 %v4315, 1.0
        %v4353 = vadd.f32 %v4317, 1.0
        %v4354 = vadd.f32 %v4319, 1.0
        %v4355 = vadd.f32 %v4321, 1.0
        %v4356 = vadd.f32 %v4323, 1.0
        %v4357 = vadd.f32 %v4325, 1.0
        %v4358 = vrcp.pop %v4326
        %v4359 = vmul.f32 1.0, %v4358
        %v4360 = vrcp.pop %v4327
        %v4361 = vmul.f32 1.0, %v4360
        %v4362 = vrcp.pop %v4328
        %v4363 = vmul.f32 1.0, %v4362
        %v4364 = vrcp.pop %v4329
        %v4365 = vmul.f32 1.0, %v4364
        %v4366 = vrcp.pop %v4330
        %v4367 = vmul.f32 1.0, %v4366
        %v4368 = vrcp.pop %v4331
        %v4369 = vmul.f32 1.0, %v4368
        %v4370 = vrcp.pop %v4332
        %v4371 = vmul.f32 1.0, %v4370
        %v4372 = vrcp.pop %v4333
        %v4373 = vmul.f32 1.0, %v4372
        %v4374 = vrcp.pop %v4334
        %v4375 = vmul.f32 1.0, %v4374
        %v4376 = vrcp.pop %v4335
        %v4377 = vmul.f32 1.0, %v4376
        %v4378 = vrcp.pop %v4336
        %v4379 = vmul.f32 1.0, %v4378
        %v4380 = vrcp.pop %v4337
        %v4381 = vmul.f32 1.0, %v4380
        %v4382 = vrcp.pop %v4338
        %v4383 = vmul.f32 1.0, %v4382
        %v4384 = vrcp.pop %v4339
        %v4385 = vmul.f32 1.0, %v4384
        %v4386 = vrcp.pop %v4340
        %v4387 = vmul.f32 1.0, %v4386
        %v4388 = vrcp.pop %v4341
        %v4389 = vmul.f32 1.0, %v4388
        %v4390 = vrcp.pop %v4342
        %v4391 = vmul.f32 1.0, %v4390
        %v4392 = vrcp.pop %v4343
        %v4393 = vmul.f32 1.0, %v4392
        %v4394 = vrcp.pop %v4344
        %v4395 = vmul.f32 1.0, %v4394
        %v4396 = vrcp.pop %v4345
        %v4397 = vmul.f32 1.0, %v4396
        %v4398 = vrcp.pop %v4346
        %v4399 = vmul.f32 1.0, %v4398
        %v4400 = vrcp.pop %v4347
        %v4401 = vmul.f32 1.0, %v4400
        %v4402 = vrcp.pop %v4348
        %v4403 = vmul.f32 1.0, %v4402
        %v4404 = vrcp.pop %v4349
        %v4405 = vmul.f32 1.0, %v4404
        %v4406 = vrcp.pop %v4350
        %v4407 = vmul.f32 1.0, %v4406
        %v4408 = vrcp.pop %v4351
        %v4409 = vmul.f32 1.0, %v4408
        %v4410 = vrcp.pop %v4352
        %v4411 = vmul.f32 1.0, %v4410
        %v4412 = vrcp.pop %v4353
        %v4413 = vmul.f32 1.0, %v4412
        %v4414 = vrcp.pop %v4354
        %v4415 = vmul.f32 1.0, %v4414
        %v4416 = vrcp.pop %v4355
        %v4417 = vmul.f32 1.0, %v4416
        %v4418 = vrcp.pop %v4356
        %v4419 = vmul.f32 1.0, %v4418
        %v4420 = vrcp.pop %v4357
        %v4421 = vmul.f32 1.0, %v4420
        %v4422 = vmul.f32 %v4198, %v4359
        %v4423 = vmul.f32 %v4199, %v4361
        %v4424 = vmul.f32 %v4200, %v4363
        %v4425 = vmul.f32 %v4201, %v4365
        %v4426 = vmul.f32 %v4202, %v4367
        %v4427 = vmul.f32 %v4203, %v4369
        %v4428 = vmul.f32 %v4204, %v4371
        %v4429 = vmul.f32 %v4205, %v4373
        %v4430 = vmul.f32 %v4206, %v4375
        %v4431 = vmul.f32 %v4207, %v4377
        %v4432 = vmul.f32 %v4208, %v4379
        %v4433 = vmul.f32 %v4209, %v4381
        %v4434 = vmul.f32 %v4210, %v4383
        %v4435 = vmul.f32 %v4211, %v4385
        %v4436 = vmul.f32 %v4212, %v4387
        %v4437 = vmul.f32 %v4213, %v4389
        %v4438 = vmul.f32 %v4214, %v4391
        %v4439 = vmul.f32 %v4215, %v4393
        %v4440 = vmul.f32 %v4216, %v4395
        %v4441 = vmul.f32 %v4217, %v4397
        %v4442 = vmul.f32 %v4218, %v4399
        %v4443 = vmul.f32 %v4219, %v4401
        %v4444 = vmul.f32 %v4220, %v4403
        %v4445 = vmul.f32 %v4221, %v4405
        %v4446 = vmul.f32 %v4222, %v4407
        %v4447 = vmul.f32 %v4223, %v4409
        %v4448 = vmul.f32 %v4224, %v4411
        %v4449 = vmul.f32 %v4225, %v4413
        %v4450 = vmul.f32 %v4226, %v4415
        %v4451 = vmul.f32 %v4227, %v4417
        %v4452 = vmul.f32 %v4228, %v4419
        %v4453 = vmul.f32 %v4229, %v4421
        %4454 = vst.msk [vmem:[%s257] sm:$0xff] %vm305, %v4422
        %4455 = vst.msk [vmem:[%s257 + $0x8] sm:$0xff] %vm305, %v4423
        %4456 = vst.msk [vmem:[%s257 + $0x10] sm:$0xff] %vm305, %v4424
        %4457 = vst.msk [vmem:[%s257 + $0x18] sm:$0xff] %vm305, %v4425
        %4458 = vst.msk [vmem:[%s257 + $0x20] sm:$0xff] %vm305, %v4426
        %4459 = vst.msk [vmem:[%s257 + $0x28] sm:$0xff] %vm305, %v4427
        %4460 = vst.msk [vmem:[%s257 + $0x30] sm:$0xff] %vm305, %v4428
        %4461 = vst.msk [vmem:[%s257 + $0x38] sm:$0xff] %vm305, %v4429
        %4462 = vst.msk [vmem:[%s257 + $0x40] sm:$0xff] %vm305, %v4430
        %4463 = vst.msk [vmem:[%s257 + $0x48] sm:$0xff] %vm305, %v4431
        %4464 = vst.msk [vmem:[%s257 + $0x50] sm:$0xff] %vm305, %v4432
        %4465 = vst.msk [vmem:[%s257 + $0x58] sm:$0xff] %vm305, %v4433
        %4466 = vst.msk [vmem:[%s257 + $0x60] sm:$0xff] %vm305, %v4434
        %4467 = vst.msk [vmem:[%s257 + $0x68] sm:$0xff] %vm305, %v4435
        %4468 = vst.msk [vmem:[%s257 + $0x70] sm:$0xff] %vm305, %v4436
        %4469 = vst.msk [vmem:[%s257 + $0x78] sm:$0xff] %vm305, %v4437
        %4470 = vst.msk [vmem:[%s257 + $0x80] sm:$0xff] %vm305, %v4438
        %4471 = vst.msk [vmem:[%s257 + $0x88] sm:$0xff] %vm305, %v4439
        %4472 = vst.msk [vmem:[%s257 + $0x90] sm:$0xff] %vm305, %v4440
        %4473 = vst.msk [vmem:[%s257 + $0x98] sm:$0xff] %vm305, %v4441
        %4474 = vst.msk [vmem:[%s257 + $0xa0] sm:$0xff] %vm305, %v4442
        %4475 = vst.msk [vmem:[%s257 + $0xa8] sm:$0xff] %vm305, %v4443
        %4476 = vst.msk [vmem:[%s257 + $0xb0] sm:$0xff] %vm305, %v4444
        %4477 = vst.msk [vmem:[%s257 + $0xb8] sm:$0xff] %vm305, %v4445
        %4478 = vst.msk [vmem:[%s257 + $0xc0] sm:$0xff] %vm305, %v4446
        %4479 = vst.msk [vmem:[%s257 + $0xc8] sm:$0xff] %vm305, %v4447
        %4480 = vst.msk [vmem:[%s257 + $0xd0] sm:$0xff] %vm305, %v4448
        %4481 = vst.msk [vmem:[%s257 + $0xd8] sm:$0xff] %vm305, %v4449
        %4482 = vst.msk [vmem:[%s257 + $0xe0] sm:$0xff] %vm305, %v4450
        %4483 = vst.msk [vmem:[%s257 + $0xe8] sm:$0xff] %vm305, %v4451
        %4484 = vst.msk [vmem:[%s257 + $0xf0] sm:$0xff] %vm305, %v4452
        %4485 = vst.msk [vmem:[%s257 + $0xf8] sm:$0xff] %vm305, %v4453
        %s4486 = sand.u32 %s141, 1
        %s4487 = scalar_lea.sflag [#allocation4], %s4486
        %s4488 = sand.u32 %s141, 1
        %s4489 = smul.addr %s4488, 256
        %s4490 = scalar_lea.vmem [#allocation7], %s4489
        // Predicated region
        $region49: #{tpu_custom_call.1} parent=39 // pred_check
          %p4491 = pneg %p151
        $region50: #{tpu_custom_call.1} parent=39 // pred_check_branch
          %4493 = sbr.rel (%p4491) target = $region52
        $region51: #{tpu_custom_call.1} parent=39 // pred_region
          %s4495 = ssub.s32 4096, 4096
          %4496 = vsyncadd %s4487, %s4495
          %s4497 = smul.addr %s23, 32
          %s4498 = smul.addr %s4497, 128
          %s4499 = scalar_lea.hbm %s5, %s4498
          %s4500 = sshll.u32 %s4490, 4
          %s4501 = int_to_ptr.vmem [resolvable:$true] %s4500
          %4506 = dma.vmem_to_hbm [thread:$0]  %s4501, 4096, %s4499, %s4487, 128, 128, 8
        $region52: #{tpu_custom_call.1} parent=39 // pred_fallthru
          _
      $region40: #{tpu_custom_call.1} parent=5 // pred_fallthru
        _
      %p4507 = scmp.le.s32.totalorder 2, %s18
      // Predicated region
      $region53: #{tpu_custom_call.1} parent=5 // pred_check
        %p4508 = pneg %p4507
      $region54: #{tpu_custom_call.1} parent=5 // pred_check_branch
        %4510 = sbr.rel (%p4508) target = $region56
      $region55: #{tpu_custom_call.1} parent=5 // pred_region
        %s4511 = ssub.s32 %s18, 2
        // Predicated region
        $region57: #{tpu_custom_call.1} parent=55 // pred_check
          %p4512 = pneg %p157
        $region58: #{tpu_custom_call.1} parent=55 // pred_check_branch
          %4514 = sbr.rel (%p4512) target = $region60
        $region59: #{tpu_custom_call.1} parent=55 // pred_region
          %s4515 = sand.u32 %s142, 1
          %s4516 = scalar_lea.sflag [#allocation4], %s4515
          %s4517 = sand.u32 %s142, 1
          %s4518 = smul.addr %s4517, 256
          %s4519 = scalar_lea.vmem [#allocation7], %s4518
          %4520 = dma.done %s4516, 4096
        $region60: #{tpu_custom_call.1} parent=55 // pred_fallthru
          _
      $region56: #{tpu_custom_call.1} parent=5 // pred_fallthru
        _
    $region6: #{tpu_custom_call.1} parent=1 // loop_footer
      %s22 = sadd.s32 1, %s18
    $region7: #{tpu_custom_call.1} parent=1 // loop_footer_branch
      %17 = sbr.rel target = $region3
    $region8: #{tpu_custom_call.1} parent=1 // loop_exit
      _
    %4521 = vsyncpa [#allocation3], 1
    %s4522 = scalar_lea.sflag [#allocation3], 1
    %4523 = vsyncpa %s4522, 1
    %4524 = vsyncpa [#allocation6], 1
    %4525 = vsyncpa [#allocation4], 1
    %s4526 = scalar_lea.sflag [#allocation4], 1
    %4527 = vsyncpa %s4526, 1

</llo_original>
